<compile_context>
chip_gen: v6e
topology: v6e:2x2x1
jax: 0.10.0
libtpu: 0.0.40
codegen_flags: <defaults>
</compile_context>

<pallas_src>
import numpy as np
import jax
import jax.numpy as jnp
from jax import lax
from jax.experimental import pallas as pl
from jax.experimental.pallas import tpu as pltpu

KSIZE = 7
PAD = (KSIZE - 1) // 2          # "same" padding for the 7x7 depthwise convs
BN_EPS = 1e-5
HIGHEST = jax.lax.Precision.HIGHEST


def _round_up(x, m):
    return (x + m - 1) // m * m


def _device_kind():
    try:
        return jax.devices()[0].device_kind.lower()
    except Exception:
        return ""


def _default_conv_dtype():
    """Staging-buffer dtype: bf16 on v6e/v7x (native bf16 VPU; halves scratch
    VMEM and per-tap vld bytes), f32 on v5e and unknown chips (no bf16 VALUs,
    so a bf16 buffer would only add converts to the binding VALU slot)."""
    kind = _device_kind()
    if ("v6" in kind) or ("v7" in kind):
        return jnp.bfloat16
    return jnp.float32


# ----------------------------- Pallas kernel -------------------------------

def _make_kernel(W, L, Lp, Mp, Nb, halo, conv_dtype):
    """StarNetBlock kernel for a fixed spatial layout.

    L = H*W is the true flattened spatial size, Lp = round_up(L, 128) is the
    lane-dense padded size; lanes [L, Lp) are padding (zeroed in the staging
    buffer, discarded at the output)."""

    def kernel(masks_ref,                 # (7, Lp)   f32 per-kw horizontal border masks
               x_ref,                     # (Nb, C, Lp) input block (flattened NCHW, lane-padded)
               dw1_w_ref,                 # (C, 49)   f32 depthwise-1 taps
               w12_ref, b12_ref,          # (2Mp, C) bf16, (2Mp, 1) f32  fused f1|f2 (BN1 + dw1 bias folded)
               wg_ref, bg_ref,            # (C, Mp)  bf16, (C, 1)   f32  g (BN2 folded)
               dw2_w_ref, dw2_b_ref,      # (C, 49)  f32,  (C, 1)   f32
               out_ref,                   # (Nb, C, Lp)
               pad_ref):                  # VMEM scratch (C, halo + Lp + halo), conv_dtype
        C = x_ref.shape[1]

        # Zero ONLY the two halo strips (tiny, aligned).  Vertical out-of-range
        # tap reads land here (or in the zeroed [L, Lp) pad strip) and therefore
        # contribute exact zeros; horizontal out-of-range reads are killed by
        # the per-kw masks.  Keep both invariants if the conv loop is edited.
        zero_halo = jnp.zeros((C, halo), conv_dtype)
        pad_ref[:, :halo] = zero_halo
        pad_ref[:, halo + Lp:] = zero_halo

        def stage(v):
            """Stage a (C, Lp) image into the conv buffer; zero the pad strip."""
            pad_ref[:, halo:halo + Lp] = v.astype(conv_dtype)
            if Lp > L:
                pad_ref[:, halo + L:halo + Lp] = jnp.zeros((C, Lp - L), conv_dtype)

        def dwconv7x7(w_ref):
            """7x7 depthwise 'same' conv of the staged image, flat (C, Lp) layout.

            Taps are grouped by kw: one horizontal border-mask multiply per
            column group (7 instead of 49); the centre column (kw == PAD) needs
            no mask since its only out-of-range reads are vertical and those
            hit the zeroed halo / pad strip.  Tap weights and the group mask
            are sliced from their refs at the point of use (no hoisted (49,L)
            or (C,49) values living across the loop)."""
            acc = jnp.zeros((C, Lp), jnp.float32)
            for kw in range(KSIZE):
                ow = kw - PAD
                g = jnp.zeros((C, Lp), jnp.float32)
                for kh in range(KSIZE):
                    k = kh * KSIZE + kw
                    d = (kh - PAD) * W + ow                         # flat displacement
                    shifted = pad_ref[:, halo + d:halo + d + Lp]    # static lane shift
                    g = g + shifted * w_ref[:, k:k + 1]             # f32 accumulate
                if kw == PAD:
                    acc = acc + g
                else:
                    acc = acc + g * masks_ref[kw:kw + 1, :]
            return acc

        def per_image(b):
            # dwconv1: stage the input directly (cast happens in the store);
            # x is NOT kept live across the body -- re-loaded at the residual.
            stage(x_ref[b])
            y = dwconv7x7(dw1_w_ref)                                 # (C, Lp) f32

            # f1 | f2 fused into a single MXU matmul (bf16 in, f32 accumulate).
            # TODO(synk): for larger Nb, batch this matmul over the Nb images
            # ((2Mp, C) @ (C, Nb*Lp)) to amortise MXU fill/drain; needs a
            # (C, Nb*Lp) staging buffer -- check against the v7x 64 MiB budget.
            x12 = jnp.dot(w12_ref[...], y.astype(jnp.bfloat16),
                          preferred_element_type=jnp.float32) + b12_ref[...]
            s = jnp.clip(x12[:Mp], 0.0, 6.0) * x12[Mp:]              # star: ReLU6(x1)*x2

            # g (1x1, M -> C) with BN2 folded in.
            z = jnp.dot(wg_ref[...], s.astype(jnp.bfloat16),
                        preferred_element_type=jnp.float32) + bg_ref[...]

            # dwconv2 (7x7 depthwise + bias) and residual (drop_path == Identity).
            stage(z)
            z = dwconv7x7(dw2_w_ref) + dw2_b_ref[...]
            out_ref[b] = (x_ref[b].astype(jnp.float32) + z).astype(out_ref.dtype)

        if Nb == 1:
            per_image(0)
        else:
            # fori_loop (not a static unroll): one body regardless of Nb keeps
            # vreg live ranges and code size bounded at real StarNet shapes.
            def body(b, carry):
                per_image(b)
                return carry
            lax.fori_loop(0, Nb, body, 0)

    return kernel


# ------------------------ wrapper-side preparation ---------------------------

def _kw_masks(H, W, Lp):
    """(7, Lp) {0,1} f32 masks: column group kw is horizontally valid at flat
    position h*W + w iff 0 <= w + (kw - PAD) < W.  Pad lanes [H*W, Lp) are 0."""
    L = H * W
    ww = np.arange(L) % W
    m = np.zeros((KSIZE, Lp), np.float32)
    for kw in range(KSIZE):
        ow = kw - PAD
        m[kw, :L] = ((ww + ow >= 0) & (ww + ow < W)).astype(np.float32)
    return jnp.asarray(m)


def _bn_fold(gamma, beta, mean, var):
    scale = gamma / jnp.sqrt(var + BN_EPS)
    return scale, beta - mean * scale


def prepare_params(p, mm_dtype=jnp.bfloat16):
    """Folds BN1/BN2 + the dwconv1 bias into the 1x1-conv weights/biases, fuses
    f1|f2 into one matmul, pads the hidden dim to a sublane-tile multiple and
    casts the matmul weights to bf16 (f32 accumulation in-kernel)."""
    M, C = p["f1_w"].shape
    Mp = _round_up(M, 8)
    f32 = jnp.float32

    s1, t1 = _bn_fold(p["bn1_g"], p["bn1_b"], p["bn1_m"], p["bn1_v"])
    s2, t2 = _bn_fold(p["bn2_g"], p["bn2_b"], p["bn2_m"], p["bn2_v"])

    # y_bn = s1*(dwconv(x) + dw1_b) + t1
    # f(y_bn) = (W * s1) @ dwconv(x) + W @ (s1*dw1_b + t1) + b
    yoff = s1 * p["dw1_b"] + t1                                   # (C,)
    w1 = p["f1_w"] * s1[None, :]
    w2 = p["f2_w"] * s1[None, :]
    b1 = p["f1_w"] @ yoff + p["f1_b"]
    b2 = p["f2_w"] @ yoff + p["f2_b"]
    w12 = jnp.zeros((2 * Mp, C), f32).at[:M].set(w1).at[Mp:Mp + M].set(w2)
    b12 = jnp.zeros((2 * Mp,), f32).at[:M].set(b1).at[Mp:Mp + M].set(b2)

    # z = s2*(g_w @ s + g_b) + t2
    wg = jnp.pad(p["g_w"] * s2[:, None], ((0, 0), (0, Mp - M)))
    bg = s2 * p["g_b"] + t2

    kp = dict(
        dw1_w=p["dw1_w"].reshape(C, KSIZE * KSIZE).astype(f32),
        w12=w12.astype(mm_dtype),
        b12=b12.reshape(2 * Mp, 1),
        wg=wg.astype(mm_dtype),
        bg=bg.reshape(C, 1).astype(f32),
        dw2_w=p["dw2_w"].reshape(C, KSIZE * KSIZE).astype(f32),
        dw2_b=p["dw2_b"].reshape(C, 1).astype(f32),
    )
    return kp, Mp


def _pick_images_per_step(N, images_per_step):
    """Largest divisor of N that is <= images_per_step while keeping >= 2 grid
    steps when possible (v7x has 2 TensorCores; a 1-step 'parallel' grid would
    idle one of them)."""
    nb = max(1, min(int(images_per_step), N))
    while nb > 1 and (N % nb != 0 or N // nb < 2):
        nb -= 1
    return nb


# ------------------------------- wrapper -------------------------------------

def starnet_block(x_nchw, params, images_per_step=4, conv_dtype=None):
    """StarNetBlock forward.  x_nchw: (N, C, H, W) -> (N, C, H, W)."""
    N, C, H, W = x_nchw.shape
    L = H * W
    Lp = _round_up(L, 128)                       # lane-dense spatial axis (unmasked vst)
    if conv_dtype is None:
        conv_dtype = _default_conv_dtype()

    kp, Mp = prepare_params(params)
    masks = _kw_masks(H, W, Lp)
    halo = _round_up(PAD * W + PAD, 128)         # lane halo for the tap shifts

    Nb = _pick_images_per_step(N, images_per_step)

    x_flat = x_nchw.reshape(N, C, L)             # free reshape (no transpose)
    if Lp > L:
        # lane-pad with zeros (one HBM pass); free when L is already 128-dense.
        x_flat = jnp.pad(x_flat, ((0, 0), (0, 0), (0, Lp - L)))

    def const(shape):
        return pl.BlockSpec(shape, lambda i: (0,) * len(shape))
    # TODO(synk): constants never change block index -- single-buffer them
    # (pipeline_mode=pl.Buffered(1)) to reclaim the second copy under the
    # tighter 64 MiB v7x VMEM budget.

    in_specs = [
        const((KSIZE, Lp)),                                   # per-kw masks
        pl.BlockSpec((Nb, C, Lp), lambda i: (i, 0, 0)),       # x
        const((C, KSIZE * KSIZE)),                            # dwconv1 taps
        const((2 * Mp, C)), const((2 * Mp, 1)),               # fused f1|f2 (BN1 folded)
        const((C, Mp)), const((C, 1)),                        # g (BN2 folded)
        const((C, KSIZE * KSIZE)), const((C, 1)),             # dwconv2
    ]

    # Per-step VMEM budget: double-buffered in+out blocks + constants + the conv
    # staging scratch, with headroom; capped per generation (v7x: 64 MiB VMEM).
    elt_x = jnp.dtype(x_nchw.dtype).itemsize
    elt_pad = jnp.dtype(conv_dtype).itemsize
    const_bytes = (KSIZE * Lp * 4 + 2 * C * KSIZE * KSIZE * 4
                   + (2 * Mp * C + C * Mp) * 2 + (2 * Mp + 2 * C) * 4)
    need = (2 * 2 * Nb * C * Lp * elt_x + 2 * const_bytes
            + C * (2 * halo + Lp) * elt_pad)
    cap = (48 << 20) if "v7" in _device_kind() else (96 << 20)
    vmem_limit = int(min(max(2 * need + (8 << 20), 16 << 20), cap))

    out_flat = pl.pallas_call(
        _make_kernel(W, L, Lp, Mp, Nb, halo, conv_dtype),
        out_shape=jax.ShapeDtypeStruct((N, C, Lp), x_nchw.dtype),
        grid_spec=pltpu.PrefetchScalarGridSpec(
            num_scalar_prefetch=0,
            grid=(N // Nb,),
            in_specs=in_specs,
            out_specs=pl.BlockSpec((Nb, C, Lp), lambda i: (i, 0, 0)),
            scratch_shapes=[pltpu.VMEM((C, 2 * halo + Lp), conv_dtype)],
        ),
        compiler_params=pltpu.CompilerParams(
            dimension_semantics=("parallel",),
            vmem_limit_bytes=vmem_limit,
        ),
        # TODO(synk): for 56x56 StarNet stages on v7x add an H-tiled (3-row
        # halo) parallel grid axis instead of growing Nb.
    )(masks, x_flat, kp["dw1_w"], kp["w12"], kp["b12"],
      kp["wg"], kp["bg"], kp["dw2_w"], kp["dw2_b"])

    if Lp > L:
        out_flat = out_flat[:, :, :L]
    return out_flat.reshape(N, C, H, W)


# -------------------------- deterministic params ----------------------------

def init_params(key, dim, mlp_ratio=3):
    """Raw (PyTorch-like) parameters for StarNetBlock with eval-mode fresh BN."""
    M = mlp_ratio * dim
    ks = jax.random.split(key, 10)
    f32 = jnp.float32

    def rnd(k, shape, scale=0.2):
        return scale * jax.random.normal(k, shape, f32)

    ones = jnp.ones((dim,), f32)
    zeros = jnp.zeros((dim,), f32)
    return dict(
        dw1_w=rnd(ks[0], (dim, KSIZE, KSIZE)), dw1_b=rnd(ks[1], (dim,)),
        bn1_g=ones, bn1_b=zeros, bn1_m=zeros, bn1_v=ones,     # fresh BatchNorm2d (eval)
        f1_w=rnd(ks[2], (M, dim)), f1_b=rnd(ks[3], (M,)),
        f2_w=rnd(ks[4], (M, dim)), f2_b=rnd(ks[5], (M,)),
        g_w=rnd(ks[6], (dim, M)), g_b=rnd(ks[7], (dim,)),
        bn2_g=ones, bn2_b=zeros, bn2_m=zeros, bn2_v=ones,
        dw2_w=rnd(ks[8], (dim, KSIZE, KSIZE)), dw2_b=rnd(ks[9], (dim,)),
    )


# ---------------------------- pure-JAX reference ----------------------------

def starnet_block_ref(x_nchw, p):
    """Pure-JAX NCHW reference (eval-mode BN, f32, HIGHEST conv precision)."""
    C = x_nchw.shape[1]
    x = x_nchw.astype(jnp.float32)

    def dw7(v, w, b):                                   # w: (C, 7, 7) depthwise
        y = lax.conv_general_dilated(
            v, w[:, None, :, :], (1, 1), [(PAD, PAD), (PAD, PAD)],
            dimension_numbers=("NCHW", "OIHW", "NCHW"),
            feature_group_count=C, precision=HIGHEST)
        return y + b[None, :, None, None]

    def pw(v, w, b):                                    # w: (O, I) 1x1 conv
        y = lax.conv_general_dilated(
            v, w[:, :, None, None], (1, 1), "VALID",
            dimension_numbers=("NCHW", "OIHW", "NCHW"), precision=HIGHEST)
        return y + b[None, :, None, None]

    def bn(v, g, beta, m, var):
        s = g / jnp.sqrt(var + BN_EPS)
        t = beta - m * s
        return v * s[None, :, None, None] + t[None, :, None, None]

    y = bn(dw7(x, p["dw1_w"], p["dw1_b"]),
           p["bn1_g"], p["bn1_b"], p["bn1_m"], p["bn1_v"])
    x1 = pw(y, p["f1_w"], p["f1_b"])
    x2 = pw(y, p["f2_w"], p["f2_b"])
    s = jnp.clip(x1, 0.0, 6.0) * x2                     # ReLU6(x1) * x2
    z = bn(pw(s, p["g_w"], p["g_b"]),
           p["bn2_g"], p["bn2_b"], p["bn2_m"], p["bn2_v"])
    z = dw7(z, p["dw2_w"], p["dw2_b"])
    return (x + z).astype(x_nchw.dtype)


# ---------------------------------- main -------------------------------------

if __name__ == "__main__":
    key = jax.random.PRNGKey(0)
    conv_dtype = _default_conv_dtype()
    # Accuracy contract vs the f32/HIGHEST reference: the kernel uses bf16 MXU
    # inputs (f32 accumulate) everywhere, plus a bf16 conv staging buffer on
    # v6e/v7x -> ~2e-2 (f32 staging) / ~4e-2 (bf16 staging) tolerance.
    tol = 2e-2 if jnp.dtype(conv_dtype) == jnp.dtype(jnp.float32) else 4e-2

    # First config matches the module's small test shape (NCHW = 2,4,16,16,
    # L already 128-dense, grid of 2).  Second config exercises the lane
    # padding path (L = 49 -> 128) and the multi-image fori_loop (Nb = 2).
    for (N, dim, H, W, ips) in [(2, 4, 16, 16, 4), (4, 8, 7, 7, 2)]:
        key, kx, kparam = jax.random.split(key, 3)
        x = jax.random.normal(kx, (N, dim, H, W), jnp.float32)
        params = init_params(kparam, dim, mlp_ratio=3)

        out = jax.block_until_ready(starnet_block(x, params, images_per_step=ips))
        ref = jax.block_until_ready(starnet_block_ref(x, params))

        assert out.shape == x.shape and out.dtype == x.dtype
        err = float(jnp.max(jnp.abs(out - ref)))
        if not bool(jnp.allclose(out, ref, atol=tol, rtol=tol)):
            raise SystemExit(
                f"mismatch vs reference at {(N, dim, H, W)}: max abs err = {err}")

    print("KERNEL_OK")
</pallas_src>

<mosaic_0001>
module attributes {stable_mosaic.version = 11 : i64} {
  func.func @kernel(%arg0: i32, %arg1: memref<7x256xf32, #tpu.memory_space<vmem>>, %arg2: memref<1x4x256xf32, #tpu.memory_space<vmem>>, %arg3: memref<4x49xf32, #tpu.memory_space<vmem>>, %arg4: memref<32x4xbf16, #tpu.memory_space<vmem>>, %arg5: memref<32x1xf32, #tpu.memory_space<vmem>>, %arg6: memref<4x16xbf16, #tpu.memory_space<vmem>>, %arg7: memref<4x1xf32, #tpu.memory_space<vmem>>, %arg8: memref<4x49xf32, #tpu.memory_space<vmem>>, %arg9: memref<4x1xf32, #tpu.memory_space<vmem>>, %arg10: memref<1x4x256xf32, #tpu.memory_space<vmem>>, %arg11: memref<4x512xf32, #tpu.memory_space<vmem>>) attributes {dimension_semantics = [#tpu.dimension_semantics<parallel>], iteration_bounds = array<i64: 2>, scalar_prefetch = 0 : i64, scratch_operands = 1 : i64, tpu.core_type = #tpu.core_type<tc>, window_params = [{pipeline_mode = #tpu.pipeline_mode<synchronous>, transform_indices = @transform_0, window_bounds = array<i64: 7, 256>}, {transform_indices = @transform_1, window_bounds = array<i64: 1, 4, 256>}, {pipeline_mode = #tpu.pipeline_mode<synchronous>, transform_indices = @transform_2, window_bounds = array<i64: 4, 49>}, {pipeline_mode = #tpu.pipeline_mode<synchronous>, transform_indices = @transform_3, window_bounds = array<i64: 32, 4>}, {pipeline_mode = #tpu.pipeline_mode<synchronous>, transform_indices = @transform_4, window_bounds = array<i64: 32, 1>}, {pipeline_mode = #tpu.pipeline_mode<synchronous>, transform_indices = @transform_5, window_bounds = array<i64: 4, 16>}, {pipeline_mode = #tpu.pipeline_mode<synchronous>, transform_indices = @transform_6, window_bounds = array<i64: 4, 1>}, {pipeline_mode = #tpu.pipeline_mode<synchronous>, transform_indices = @transform_7, window_bounds = array<i64: 4, 49>}, {pipeline_mode = #tpu.pipeline_mode<synchronous>, transform_indices = @transform_8, window_bounds = array<i64: 4, 1>}, {transform_indices = @transform_9, window_bounds = array<i64: 1, 4, 256>}]} {
    %cst = arith.constant 0.000000e+00 : f32
    %0 = vector.broadcast %cst : f32 to vector<4x128xf32>
    %c0 = arith.constant 0 : index
    %c0_0 = arith.constant 0 : index
    %1 = vector.load %arg11[%c0, %c0_0] : memref<4x512xf32, #tpu.memory_space<vmem>>, vector<4x128xf32>
    tpu.vector_store %arg11[%c0, %c0_0], %0 {strides = array<i32>} : memref<4x512xf32, #tpu.memory_space<vmem>>, vector<4x128xf32>,
    %c0_1 = arith.constant 0 : index
    %c384 = arith.constant 384 : index
    %2 = vector.load %arg11[%c0_1, %c384] : memref<4x512xf32, #tpu.memory_space<vmem>>, vector<4x128xf32>
    tpu.vector_store %arg11[%c0_1, %c384], %0 {strides = array<i32>} : memref<4x512xf32, #tpu.memory_space<vmem>>, vector<4x128xf32>,
    %c0_2 = arith.constant 0 : index
    %c0_3 = arith.constant 0 : index
    %c0_4 = arith.constant 0 : index
    %3 = vector.load %arg2[%c0_2, %c0_3, %c0_4] : memref<1x4x256xf32, #tpu.memory_space<vmem>>, vector<1x4x256xf32>
    %4 = vector.shape_cast %3 : vector<1x4x256xf32> to vector<4x256xf32>
    %c0_5 = arith.constant 0 : index
    %c128 = arith.constant 128 : index
    %5 = vector.load %arg11[%c0_5, %c128] : memref<4x512xf32, #tpu.memory_space<vmem>>, vector<4x256xf32>
    tpu.vector_store %arg11[%c0_5, %c128], %4 {strides = array<i32>} : memref<4x512xf32, #tpu.memory_space<vmem>>, vector<4x256xf32>,
    %cst_6 = arith.constant 0.000000e+00 : f32
    %6 = vector.broadcast %cst_6 : f32 to vector<4x256xf32>
    %cst_7 = arith.constant 0.000000e+00 : f32
    %7 = vector.broadcast %cst_7 : f32 to vector<4x256xf32>
    %c0_8 = arith.constant 0 : index
    %c77 = arith.constant 77 : index
    %8 = vector.load %arg11[%c0_8, %c77] : memref<4x512xf32, #tpu.memory_space<vmem>>, vector<4x256xf32>
    %c0_9 = arith.constant 0 : index
    %c0_10 = arith.constant 0 : index
    %9 = vector.load %arg3[%c0_9, %c0_10] : memref<4x49xf32, #tpu.memory_space<vmem>>, vector<4x1xf32>
    %10 = vector.broadcast %9 : vector<4x1xf32> to vector<4x256xf32>
    %11 = arith.mulf %8, %10 : vector<4x256xf32>
    %12 = arith.addf %7, %11 : vector<4x256xf32>
    %c0_11 = arith.constant 0 : index
    %c93 = arith.constant 93 : index
    %13 = vector.load %arg11[%c0_11, %c93] : memref<4x512xf32, #tpu.memory_space<vmem>>, vector<4x256xf32>
    %c0_12 = arith.constant 0 : index
    %c7 = arith.constant 7 : index
    %14 = vector.load %arg3[%c0_12, %c7] : memref<4x49xf32, #tpu.memory_space<vmem>>, vector<4x1xf32>
    %15 = vector.broadcast %14 : vector<4x1xf32> to vector<4x256xf32>
    %16 = arith.mulf %13, %15 : vector<4x256xf32>
    %17 = arith.addf %12, %16 : vector<4x256xf32>
    %c0_13 = arith.constant 0 : index
    %c109 = arith.constant 109 : index
    %18 = vector.load %arg11[%c0_13, %c109] : memref<4x512xf32, #tpu.memory_space<vmem>>, vector<4x256xf32>
    %c0_14 = arith.constant 0 : index
    %c14 = arith.constant 14 : index
    %19 = vector.load %arg3[%c0_14, %c14] : memref<4x49xf32, #tpu.memory_space<vmem>>, vector<4x1xf32>
    %20 = vector.broadcast %19 : vector<4x1xf32> to vector<4x256xf32>
    %21 = arith.mulf %18, %20 : vector<4x256xf32>
    %22 = arith.addf %17, %21 : vector<4x256xf32>
    %c0_15 = arith.constant 0 : index
    %c125 = arith.constant 125 : index
    %23 = vector.load %arg11[%c0_15, %c125] : memref<4x512xf32, #tpu.memory_space<vmem>>, vector<4x256xf32>
    %c0_16 = arith.constant 0 : index
    %c21 = arith.constant 21 : index
    %24 = vector.load %arg3[%c0_16, %c21] : memref<4x49xf32, #tpu.memory_space<vmem>>, vector<4x1xf32>
    %25 = vector.broadcast %24 : vector<4x1xf32> to vector<4x256xf32>
    %26 = arith.mulf %23, %25 : vector<4x256xf32>
    %27 = arith.addf %22, %26 : vector<4x256xf32>
    %c0_17 = arith.constant 0 : index
    %c141 = arith.constant 141 : index
    %28 = vector.load %arg11[%c0_17, %c141] : memref<4x512xf32, #tpu.memory_space<vmem>>, vector<4x256xf32>
    %c0_18 = arith.constant 0 : index
    %c28 = arith.constant 28 : index
    %29 = vector.load %arg3[%c0_18, %c28] : memref<4x49xf32, #tpu.memory_space<vmem>>, vector<4x1xf32>
    %30 = vector.broadcast %29 : vector<4x1xf32> to vector<4x256xf32>
    %31 = arith.mulf %28, %30 : vector<4x256xf32>
    %32 = arith.addf %27, %31 : vector<4x256xf32>
    %c0_19 = arith.constant 0 : index
    %c157 = arith.constant 157 : index
    %33 = vector.load %arg11[%c0_19, %c157] : memref<4x512xf32, #tpu.memory_space<vmem>>, vector<4x256xf32>
    %c0_20 = arith.constant 0 : index
    %c35 = arith.constant 35 : index
    %34 = vector.load %arg3[%c0_20, %c35] : memref<4x49xf32, #tpu.memory_space<vmem>>, vector<4x1xf32>
    %35 = vector.broadcast %34 : vector<4x1xf32> to vector<4x256xf32>
    %36 = arith.mulf %33, %35 : vector<4x256xf32>
    %37 = arith.addf %32, %36 : vector<4x256xf32>
    %c0_21 = arith.constant 0 : index
    %c173 = arith.constant 173 : index
    %38 = vector.load %arg11[%c0_21, %c173] : memref<4x512xf32, #tpu.memory_space<vmem>>, vector<4x256xf32>
    %c0_22 = arith.constant 0 : index
    %c42 = arith.constant 42 : index
    %39 = vector.load %arg3[%c0_22, %c42] : memref<4x49xf32, #tpu.memory_space<vmem>>, vector<4x1xf32>
    %40 = vector.broadcast %39 : vector<4x1xf32> to vector<4x256xf32>
    %41 = arith.mulf %38, %40 : vector<4x256xf32>
    %42 = arith.addf %37, %41 : vector<4x256xf32>
    %c0_23 = arith.constant 0 : index
    %c0_24 = arith.constant 0 : index
    %43 = vector.load %arg1[%c0_23, %c0_24] : memref<7x256xf32, #tpu.memory_space<vmem>>, vector<1x256xf32>
    %44 = vector.broadcast %43 : vector<1x256xf32> to vector<4x256xf32>
    %45 = arith.mulf %42, %44 : vector<4x256xf32>
    %46 = arith.addf %6, %45 : vector<4x256xf32>
    %cst_25 = arith.constant 0.000000e+00 : f32
    %47 = vector.broadcast %cst_25 : f32 to vector<4x256xf32>
    %c0_26 = arith.constant 0 : index
    %c78 = arith.constant 78 : index
    %48 = vector.load %arg11[%c0_26, %c78] : memref<4x512xf32, #tpu.memory_space<vmem>>, vector<4x256xf32>
    %c0_27 = arith.constant 0 : index
    %c1 = arith.constant 1 : index
    %49 = vector.load %arg3[%c0_27, %c1] : memref<4x49xf32, #tpu.memory_space<vmem>>, vector<4x1xf32>
    %50 = vector.broadcast %49 : vector<4x1xf32> to vector<4x256xf32>
    %51 = arith.mulf %48, %50 : vector<4x256xf32>
    %52 = arith.addf %47, %51 : vector<4x256xf32>
    %c0_28 = arith.constant 0 : index
    %c94 = arith.constant 94 : index
    %53 = vector.load %arg11[%c0_28, %c94] : memref<4x512xf32, #tpu.memory_space<vmem>>, vector<4x256xf32>
    %c0_29 = arith.constant 0 : index
    %c8 = arith.constant 8 : index
    %54 = vector.load %arg3[%c0_29, %c8] : memref<4x49xf32, #tpu.memory_space<vmem>>, vector<4x1xf32>
    %55 = vector.broadcast %54 : vector<4x1xf32> to vector<4x256xf32>
    %56 = arith.mulf %53, %55 : vector<4x256xf32>
    %57 = arith.addf %52, %56 : vector<4x256xf32>
    %c0_30 = arith.constant 0 : index
    %c110 = arith.constant 110 : index
    %58 = vector.load %arg11[%c0_30, %c110] : memref<4x512xf32, #tpu.memory_space<vmem>>, vector<4x256xf32>
    %c0_31 = arith.constant 0 : index
    %c15 = arith.constant 15 : index
    %59 = vector.load %arg3[%c0_31, %c15] : memref<4x49xf32, #tpu.memory_space<vmem>>, vector<4x1xf32>
    %60 = vector.broadcast %59 : vector<4x1xf32> to vector<4x256xf32>
    %61 = arith.mulf %58, %60 : vector<4x256xf32>
    %62 = arith.addf %57, %61 : vector<4x256xf32>
    %c0_32 = arith.constant 0 : index
    %c126 = arith.constant 126 : index
    %63 = vector.load %arg11[%c0_32, %c126] : memref<4x512xf32, #tpu.memory_space<vmem>>, vector<4x256xf32>
    %c0_33 = arith.constant 0 : index
    %c22 = arith.constant 22 : index
    %64 = vector.load %arg3[%c0_33, %c22] : memref<4x49xf32, #tpu.memory_space<vmem>>, vector<4x1xf32>
    %65 = vector.broadcast %64 : vector<4x1xf32> to vector<4x256xf32>
    %66 = arith.mulf %63, %65 : vector<4x256xf32>
    %67 = arith.addf %62, %66 : vector<4x256xf32>
    %c0_34 = arith.constant 0 : index
    %c142 = arith.constant 142 : index
    %68 = vector.load %arg11[%c0_34, %c142] : memref<4x512xf32, #tpu.memory_space<vmem>>, vector<4x256xf32>
    %c0_35 = arith.constant 0 : index
    %c29 = arith.constant 29 : index
    %69 = vector.load %arg3[%c0_35, %c29] : memref<4x49xf32, #tpu.memory_space<vmem>>, vector<4x1xf32>
    %70 = vector.broadcast %69 : vector<4x1xf32> to vector<4x256xf32>
    %71 = arith.mulf %68, %70 : vector<4x256xf32>
    %72 = arith.addf %67, %71 : vector<4x256xf32>
    %c0_36 = arith.constant 0 : index
    %c158 = arith.constant 158 : index
    %73 = vector.load %arg11[%c0_36, %c158] : memref<4x512xf32, #tpu.memory_space<vmem>>, vector<4x256xf32>
    %c0_37 = arith.constant 0 : index
    %c36 = arith.constant 36 : index
    %74 = vector.load %arg3[%c0_37, %c36] : memref<4x49xf32, #tpu.memory_space<vmem>>, vector<4x1xf32>
    %75 = vector.broadcast %74 : vector<4x1xf32> to vector<4x256xf32>
    %76 = arith.mulf %73, %75 : vector<4x256xf32>
    %77 = arith.addf %72, %76 : vector<4x256xf32>
    %c0_38 = arith.constant 0 : index
    %c174 = arith.constant 174 : index
    %78 = vector.load %arg11[%c0_38, %c174] : memref<4x512xf32, #tpu.memory_space<vmem>>, vector<4x256xf32>
    %c0_39 = arith.constant 0 : index
    %c43 = arith.constant 43 : index
    %79 = vector.load %arg3[%c0_39, %c43] : memref<4x49xf32, #tpu.memory_space<vmem>>, vector<4x1xf32>
    %80 = vector.broadcast %79 : vector<4x1xf32> to vector<4x256xf32>
    %81 = arith.mulf %78, %80 : vector<4x256xf32>
    %82 = arith.addf %77, %81 : vector<4x256xf32>
    %c1_40 = arith.constant 1 : index
    %c0_41 = arith.constant 0 : index
    %83 = vector.load %arg1[%c1_40, %c0_41] : memref<7x256xf32, #tpu.memory_space<vmem>>, vector<1x256xf32>
    %84 = vector.broadcast %83 : vector<1x256xf32> to vector<4x256xf32>
    %85 = arith.mulf %82, %84 : vector<4x256xf32>
    %86 = arith.addf %46, %85 : vector<4x256xf32>
    %cst_42 = arith.constant 0.000000e+00 : f32
    %87 = vector.broadcast %cst_42 : f32 to vector<4x256xf32>
    %c0_43 = arith.constant 0 : index
    %c79 = arith.constant 79 : index
    %88 = vector.load %arg11[%c0_43, %c79] : memref<4x512xf32, #tpu.memory_space<vmem>>, vector<4x256xf32>
    %c0_44 = arith.constant 0 : index
    %c2 = arith.constant 2 : index
    %89 = vector.load %arg3[%c0_44, %c2] : memref<4x49xf32, #tpu.memory_space<vmem>>, vector<4x1xf32>
    %90 = vector.broadcast %89 : vector<4x1xf32> to vector<4x256xf32>
    %91 = arith.mulf %88, %90 : vector<4x256xf32>
    %92 = arith.addf %87, %91 : vector<4x256xf32>
    %c0_45 = arith.constant 0 : index
    %c95 = arith.constant 95 : index
    %93 = vector.load %arg11[%c0_45, %c95] : memref<4x512xf32, #tpu.memory_space<vmem>>, vector<4x256xf32>
    %c0_46 = arith.constant 0 : index
    %c9 = arith.constant 9 : index
    %94 = vector.load %arg3[%c0_46, %c9] : memref<4x49xf32, #tpu.memory_space<vmem>>, vector<4x1xf32>
    %95 = vector.broadcast %94 : vector<4x1xf32> to vector<4x256xf32>
    %96 = arith.mulf %93, %95 : vector<4x256xf32>
    %97 = arith.addf %92, %96 : vector<4x256xf32>
    %c0_47 = arith.constant 0 : index
    %c111 = arith.constant 111 : index
    %98 = vector.load %arg11[%c0_47, %c111] : memref<4x512xf32, #tpu.memory_space<vmem>>, vector<4x256xf32>
    %c0_48 = arith.constant 0 : index
    %c16 = arith.constant 16 : index
    %99 = vector.load %arg3[%c0_48, %c16] : memref<4x49xf32, #tpu.memory_space<vmem>>, vector<4x1xf32>
    %100 = vector.broadcast %99 : vector<4x1xf32> to vector<4x256xf32>
    %101 = arith.mulf %98, %100 : vector<4x256xf32>
    %102 = arith.addf %97, %101 : vector<4x256xf32>
    %c0_49 = arith.constant 0 : index
    %c127 = arith.constant 127 : index
    %103 = vector.load %arg11[%c0_49, %c127] : memref<4x512xf32, #tpu.memory_space<vmem>>, vector<4x256xf32>
    %c0_50 = arith.constant 0 : index
    %c23 = arith.constant 23 : index
    %104 = vector.load %arg3[%c0_50, %c23] : memref<4x49xf32, #tpu.memory_space<vmem>>, vector<4x1xf32>
    %105 = vector.broadcast %104 : vector<4x1xf32> to vector<4x256xf32>
    %106 = arith.mulf %103, %105 : vector<4x256xf32>
    %107 = arith.addf %102, %106 : vector<4x256xf32>
    %c0_51 = arith.constant 0 : index
    %c143 = arith.constant 143 : index
    %108 = vector.load %arg11[%c0_51, %c143] : memref<4x512xf32, #tpu.memory_space<vmem>>, vector<4x256xf32>
    %c0_52 = arith.constant 0 : index
    %c30 = arith.constant 30 : index
    %109 = vector.load %arg3[%c0_52, %c30] : memref<4x49xf32, #tpu.memory_space<vmem>>, vector<4x1xf32>
    %110 = vector.broadcast %109 : vector<4x1xf32> to vector<4x256xf32>
    %111 = arith.mulf %108, %110 : vector<4x256xf32>
    %112 = arith.addf %107, %111 : vector<4x256xf32>
    %c0_53 = arith.constant 0 : index
    %c159 = arith.constant 159 : index
    %113 = vector.load %arg11[%c0_53, %c159] : memref<4x512xf32, #tpu.memory_space<vmem>>, vector<4x256xf32>
    %c0_54 = arith.constant 0 : index
    %c37 = arith.constant 37 : index
    %114 = vector.load %arg3[%c0_54, %c37] : memref<4x49xf32, #tpu.memory_space<vmem>>, vector<4x1xf32>
    %115 = vector.broadcast %114 : vector<4x1xf32> to vector<4x256xf32>
    %116 = arith.mulf %113, %115 : vector<4x256xf32>
    %117 = arith.addf %112, %116 : vector<4x256xf32>
    %c0_55 = arith.constant 0 : index
    %c175 = arith.constant 175 : index
    %118 = vector.load %arg11[%c0_55, %c175] : memref<4x512xf32, #tpu.memory_space<vmem>>, vector<4x256xf32>
    %c0_56 = arith.constant 0 : index
    %c44 = arith.constant 44 : index
    %119 = vector.load %arg3[%c0_56, %c44] : memref<4x49xf32, #tpu.memory_space<vmem>>, vector<4x1xf32>
    %120 = vector.broadcast %119 : vector<4x1xf32> to vector<4x256xf32>
    %121 = arith.mulf %118, %120 : vector<4x256xf32>
    %122 = arith.addf %117, %121 : vector<4x256xf32>
    %c2_57 = arith.constant 2 : index
    %c0_58 = arith.constant 0 : index
    %123 = vector.load %arg1[%c2_57, %c0_58] : memref<7x256xf32, #tpu.memory_space<vmem>>, vector<1x256xf32>
    %124 = vector.broadcast %123 : vector<1x256xf32> to vector<4x256xf32>
    %125 = arith.mulf %122, %124 : vector<4x256xf32>
    %126 = arith.addf %86, %125 : vector<4x256xf32>
    %cst_59 = arith.constant 0.000000e+00 : f32
    %127 = vector.broadcast %cst_59 : f32 to vector<4x256xf32>
    %c0_60 = arith.constant 0 : index
    %c80 = arith.constant 80 : index
    %128 = vector.load %arg11[%c0_60, %c80] : memref<4x512xf32, #tpu.memory_space<vmem>>, vector<4x256xf32>
    %c0_61 = arith.constant 0 : index
    %c3 = arith.constant 3 : index
    %129 = vector.load %arg3[%c0_61, %c3] : memref<4x49xf32, #tpu.memory_space<vmem>>, vector<4x1xf32>
    %130 = vector.broadcast %129 : vector<4x1xf32> to vector<4x256xf32>
    %131 = arith.mulf %128, %130 : vector<4x256xf32>
    %132 = arith.addf %127, %131 : vector<4x256xf32>
    %c0_62 = arith.constant 0 : index
    %c96 = arith.constant 96 : index
    %133 = vector.load %arg11[%c0_62, %c96] : memref<4x512xf32, #tpu.memory_space<vmem>>, vector<4x256xf32>
    %c0_63 = arith.constant 0 : index
    %c10 = arith.constant 10 : index
    %134 = vector.load %arg3[%c0_63, %c10] : memref<4x49xf32, #tpu.memory_space<vmem>>, vector<4x1xf32>
    %135 = vector.broadcast %134 : vector<4x1xf32> to vector<4x256xf32>
    %136 = arith.mulf %133, %135 : vector<4x256xf32>
    %137 = arith.addf %132, %136 : vector<4x256xf32>
    %c0_64 = arith.constant 0 : index
    %c112 = arith.constant 112 : index
    %138 = vector.load %arg11[%c0_64, %c112] : memref<4x512xf32, #tpu.memory_space<vmem>>, vector<4x256xf32>
    %c0_65 = arith.constant 0 : index
    %c17 = arith.constant 17 : index
    %139 = vector.load %arg3[%c0_65, %c17] : memref<4x49xf32, #tpu.memory_space<vmem>>, vector<4x1xf32>
    %140 = vector.broadcast %139 : vector<4x1xf32> to vector<4x256xf32>
    %141 = arith.mulf %138, %140 : vector<4x256xf32>
    %142 = arith.addf %137, %141 : vector<4x256xf32>
    %c0_66 = arith.constant 0 : index
    %c128_67 = arith.constant 128 : index
    %143 = vector.load %arg11[%c0_66, %c128_67] : memref<4x512xf32, #tpu.memory_space<vmem>>, vector<4x256xf32>
    %c0_68 = arith.constant 0 : index
    %c24 = arith.constant 24 : index
    %144 = vector.load %arg3[%c0_68, %c24] : memref<4x49xf32, #tpu.memory_space<vmem>>, vector<4x1xf32>
    %145 = vector.broadcast %144 : vector<4x1xf32> to vector<4x256xf32>
    %146 = arith.mulf %143, %145 : vector<4x256xf32>
    %147 = arith.addf %142, %146 : vector<4x256xf32>
    %c0_69 = arith.constant 0 : index
    %c144 = arith.constant 144 : index
    %148 = vector.load %arg11[%c0_69, %c144] : memref<4x512xf32, #tpu.memory_space<vmem>>, vector<4x256xf32>
    %c0_70 = arith.constant 0 : index
    %c31 = arith.constant 31 : index
    %149 = vector.load %arg3[%c0_70, %c31] : memref<4x49xf32, #tpu.memory_space<vmem>>, vector<4x1xf32>
    %150 = vector.broadcast %149 : vector<4x1xf32> to vector<4x256xf32>
    %151 = arith.mulf %148, %150 : vector<4x256xf32>
    %152 = arith.addf %147, %151 : vector<4x256xf32>
    %c0_71 = arith.constant 0 : index
    %c160 = arith.constant 160 : index
    %153 = vector.load %arg11[%c0_71, %c160] : memref<4x512xf32, #tpu.memory_space<vmem>>, vector<4x256xf32>
    %c0_72 = arith.constant 0 : index
    %c38 = arith.constant 38 : index
    %154 = vector.load %arg3[%c0_72, %c38] : memref<4x49xf32, #tpu.memory_space<vmem>>, vector<4x1xf32>
    %155 = vector.broadcast %154 : vector<4x1xf32> to vector<4x256xf32>
    %156 = arith.mulf %153, %155 : vector<4x256xf32>
    %157 = arith.addf %152, %156 : vector<4x256xf32>
    %c0_73 = arith.constant 0 : index
    %c176 = arith.constant 176 : index
    %158 = vector.load %arg11[%c0_73, %c176] : memref<4x512xf32, #tpu.memory_space<vmem>>, vector<4x256xf32>
    %c0_74 = arith.constant 0 : index
    %c45 = arith.constant 45 : index
    %159 = vector.load %arg3[%c0_74, %c45] : memref<4x49xf32, #tpu.memory_space<vmem>>, vector<4x1xf32>
    %160 = vector.broadcast %159 : vector<4x1xf32> to vector<4x256xf32>
    %161 = arith.mulf %158, %160 : vector<4x256xf32>
    %162 = arith.addf %157, %161 : vector<4x256xf32>
    %163 = arith.addf %126, %162 : vector<4x256xf32>
    %cst_75 = arith.constant 0.000000e+00 : f32
    %164 = vector.broadcast %cst_75 : f32 to vector<4x256xf32>
    %c0_76 = arith.constant 0 : index
    %c81 = arith.constant 81 : index
    %165 = vector.load %arg11[%c0_76, %c81] : memref<4x512xf32, #tpu.memory_space<vmem>>, vector<4x256xf32>
    %c0_77 = arith.constant 0 : index
    %c4 = arith.constant 4 : index
    %166 = vector.load %arg3[%c0_77, %c4] : memref<4x49xf32, #tpu.memory_space<vmem>>, vector<4x1xf32>
    %167 = vector.broadcast %166 : vector<4x1xf32> to vector<4x256xf32>
    %168 = arith.mulf %165, %167 : vector<4x256xf32>
    %169 = arith.addf %164, %168 : vector<4x256xf32>
    %c0_78 = arith.constant 0 : index
    %c97 = arith.constant 97 : index
    %170 = vector.load %arg11[%c0_78, %c97] : memref<4x512xf32, #tpu.memory_space<vmem>>, vector<4x256xf32>
    %c0_79 = arith.constant 0 : index
    %c11 = arith.constant 11 : index
    %171 = vector.load %arg3[%c0_79, %c11] : memref<4x49xf32, #tpu.memory_space<vmem>>, vector<4x1xf32>
    %172 = vector.broadcast %171 : vector<4x1xf32> to vector<4x256xf32>
    %173 = arith.mulf %170, %172 : vector<4x256xf32>
    %174 = arith.addf %169, %173 : vector<4x256xf32>
    %c0_80 = arith.constant 0 : index
    %c113 = arith.constant 113 : index
    %175 = vector.load %arg11[%c0_80, %c113] : memref<4x512xf32, #tpu.memory_space<vmem>>, vector<4x256xf32>
    %c0_81 = arith.constant 0 : index
    %c18 = arith.constant 18 : index
    %176 = vector.load %arg3[%c0_81, %c18] : memref<4x49xf32, #tpu.memory_space<vmem>>, vector<4x1xf32>
    %177 = vector.broadcast %176 : vector<4x1xf32> to vector<4x256xf32>
    %178 = arith.mulf %175, %177 : vector<4x256xf32>
    %179 = arith.addf %174, %178 : vector<4x256xf32>
    %c0_82 = arith.constant 0 : index
    %c129 = arith.constant 129 : index
    %180 = vector.load %arg11[%c0_82, %c129] : memref<4x512xf32, #tpu.memory_space<vmem>>, vector<4x256xf32>
    %c0_83 = arith.constant 0 : index
    %c25 = arith.constant 25 : index
    %181 = vector.load %arg3[%c0_83, %c25] : memref<4x49xf32, #tpu.memory_space<vmem>>, vector<4x1xf32>
    %182 = vector.broadcast %181 : vector<4x1xf32> to vector<4x256xf32>
    %183 = arith.mulf %180, %182 : vector<4x256xf32>
    %184 = arith.addf %179, %183 : vector<4x256xf32>
    %c0_84 = arith.constant 0 : index
    %c145 = arith.constant 145 : index
    %185 = vector.load %arg11[%c0_84, %c145] : memref<4x512xf32, #tpu.memory_space<vmem>>, vector<4x256xf32>
    %c0_85 = arith.constant 0 : index
    %c32 = arith.constant 32 : index
    %186 = vector.load %arg3[%c0_85, %c32] : memref<4x49xf32, #tpu.memory_space<vmem>>, vector<4x1xf32>
    %187 = vector.broadcast %186 : vector<4x1xf32> to vector<4x256xf32>
    %188 = arith.mulf %185, %187 : vector<4x256xf32>
    %189 = arith.addf %184, %188 : vector<4x256xf32>
    %c0_86 = arith.constant 0 : index
    %c161 = arith.constant 161 : index
    %190 = vector.load %arg11[%c0_86, %c161] : memref<4x512xf32, #tpu.memory_space<vmem>>, vector<4x256xf32>
    %c0_87 = arith.constant 0 : index
    %c39 = arith.constant 39 : index
    %191 = vector.load %arg3[%c0_87, %c39] : memref<4x49xf32, #tpu.memory_space<vmem>>, vector<4x1xf32>
    %192 = vector.broadcast %191 : vector<4x1xf32> to vector<4x256xf32>
    %193 = arith.mulf %190, %192 : vector<4x256xf32>
    %194 = arith.addf %189, %193 : vector<4x256xf32>
    %c0_88 = arith.constant 0 : index
    %c177 = arith.constant 177 : index
    %195 = vector.load %arg11[%c0_88, %c177] : memref<4x512xf32, #tpu.memory_space<vmem>>, vector<4x256xf32>
    %c0_89 = arith.constant 0 : index
    %c46 = arith.constant 46 : index
    %196 = vector.load %arg3[%c0_89, %c46] : memref<4x49xf32, #tpu.memory_space<vmem>>, vector<4x1xf32>
    %197 = vector.broadcast %196 : vector<4x1xf32> to vector<4x256xf32>
    %198 = arith.mulf %195, %197 : vector<4x256xf32>
    %199 = arith.addf %194, %198 : vector<4x256xf32>
    %c4_90 = arith.constant 4 : index
    %c0_91 = arith.constant 0 : index
    %200 = vector.load %arg1[%c4_90, %c0_91] : memref<7x256xf32, #tpu.memory_space<vmem>>, vector<1x256xf32>
    %201 = vector.broadcast %200 : vector<1x256xf32> to vector<4x256xf32>
    %202 = arith.mulf %199, %201 : vector<4x256xf32>
    %203 = arith.addf %163, %202 : vector<4x256xf32>
    %cst_92 = arith.constant 0.000000e+00 : f32
    %204 = vector.broadcast %cst_92 : f32 to vector<4x256xf32>
    %c0_93 = arith.constant 0 : index
    %c82 = arith.constant 82 : index
    %205 = vector.load %arg11[%c0_93, %c82] : memref<4x512xf32, #tpu.memory_space<vmem>>, vector<4x256xf32>
    %c0_94 = arith.constant 0 : index
    %c5 = arith.constant 5 : index
    %206 = vector.load %arg3[%c0_94, %c5] : memref<4x49xf32, #tpu.memory_space<vmem>>, vector<4x1xf32>
    %207 = vector.broadcast %206 : vector<4x1xf32> to vector<4x256xf32>
    %208 = arith.mulf %205, %207 : vector<4x256xf32>
    %209 = arith.addf %204, %208 : vector<4x256xf32>
    %c0_95 = arith.constant 0 : index
    %c98 = arith.constant 98 : index
    %210 = vector.load %arg11[%c0_95, %c98] : memref<4x512xf32, #tpu.memory_space<vmem>>, vector<4x256xf32>
    %c0_96 = arith.constant 0 : index
    %c12 = arith.constant 12 : index
    %211 = vector.load %arg3[%c0_96, %c12] : memref<4x49xf32, #tpu.memory_space<vmem>>, vector<4x1xf32>
    %212 = vector.broadcast %211 : vector<4x1xf32> to vector<4x256xf32>
    %213 = arith.mulf %210, %212 : vector<4x256xf32>
    %214 = arith.addf %209, %213 : vector<4x256xf32>
    %c0_97 = arith.constant 0 : index
    %c114 = arith.constant 114 : index
    %215 = vector.load %arg11[%c0_97, %c114] : memref<4x512xf32, #tpu.memory_space<vmem>>, vector<4x256xf32>
    %c0_98 = arith.constant 0 : index
    %c19 = arith.constant 19 : index
    %216 = vector.load %arg3[%c0_98, %c19] : memref<4x49xf32, #tpu.memory_space<vmem>>, vector<4x1xf32>
    %217 = vector.broadcast %216 : vector<4x1xf32> to vector<4x256xf32>
    %218 = arith.mulf %215, %217 : vector<4x256xf32>
    %219 = arith.addf %214, %218 : vector<4x256xf32>
    %c0_99 = arith.constant 0 : index
    %c130 = arith.constant 130 : index
    %220 = vector.load %arg11[%c0_99, %c130] : memref<4x512xf32, #tpu.memory_space<vmem>>, vector<4x256xf32>
    %c0_100 = arith.constant 0 : index
    %c26 = arith.constant 26 : index
    %221 = vector.load %arg3[%c0_100, %c26] : memref<4x49xf32, #tpu.memory_space<vmem>>, vector<4x1xf32>
    %222 = vector.broadcast %221 : vector<4x1xf32> to vector<4x256xf32>
    %223 = arith.mulf %220, %222 : vector<4x256xf32>
    %224 = arith.addf %219, %223 : vector<4x256xf32>
    %c0_101 = arith.constant 0 : index
    %c146 = arith.constant 146 : index
    %225 = vector.load %arg11[%c0_101, %c146] : memref<4x512xf32, #tpu.memory_space<vmem>>, vector<4x256xf32>
    %c0_102 = arith.constant 0 : index
    %c33 = arith.constant 33 : index
    %226 = vector.load %arg3[%c0_102, %c33] : memref<4x49xf32, #tpu.memory_space<vmem>>, vector<4x1xf32>
    %227 = vector.broadcast %226 : vector<4x1xf32> to vector<4x256xf32>
    %228 = arith.mulf %225, %227 : vector<4x256xf32>
    %229 = arith.addf %224, %228 : vector<4x256xf32>
    %c0_103 = arith.constant 0 : index
    %c162 = arith.constant 162 : index
    %230 = vector.load %arg11[%c0_103, %c162] : memref<4x512xf32, #tpu.memory_space<vmem>>, vector<4x256xf32>
    %c0_104 = arith.constant 0 : index
    %c40 = arith.constant 40 : index
    %231 = vector.load %arg3[%c0_104, %c40] : memref<4x49xf32, #tpu.memory_space<vmem>>, vector<4x1xf32>
    %232 = vector.broadcast %231 : vector<4x1xf32> to vector<4x256xf32>
    %233 = arith.mulf %230, %232 : vector<4x256xf32>
    %234 = arith.addf %229, %233 : vector<4x256xf32>
    %c0_105 = arith.constant 0 : index
    %c178 = arith.constant 178 : index
    %235 = vector.load %arg11[%c0_105, %c178] : memref<4x512xf32, #tpu.memory_space<vmem>>, vector<4x256xf32>
    %c0_106 = arith.constant 0 : index
    %c47 = arith.constant 47 : index
    %236 = vector.load %arg3[%c0_106, %c47] : memref<4x49xf32, #tpu.memory_space<vmem>>, vector<4x1xf32>
    %237 = vector.broadcast %236 : vector<4x1xf32> to vector<4x256xf32>
    %238 = arith.mulf %235, %237 : vector<4x256xf32>
    %239 = arith.addf %234, %238 : vector<4x256xf32>
    %c5_107 = arith.constant 5 : index
    %c0_108 = arith.constant 0 : index
    %240 = vector.load %arg1[%c5_107, %c0_108] : memref<7x256xf32, #tpu.memory_space<vmem>>, vector<1x256xf32>
    %241 = vector.broadcast %240 : vector<1x256xf32> to vector<4x256xf32>
    %242 = arith.mulf %239, %241 : vector<4x256xf32>
    %243 = arith.addf %203, %242 : vector<4x256xf32>
    %cst_109 = arith.constant 0.000000e+00 : f32
    %244 = vector.broadcast %cst_109 : f32 to vector<4x256xf32>
    %c0_110 = arith.constant 0 : index
    %c83 = arith.constant 83 : index
    %245 = vector.load %arg11[%c0_110, %c83] : memref<4x512xf32, #tpu.memory_space<vmem>>, vector<4x256xf32>
    %c0_111 = arith.constant 0 : index
    %c6 = arith.constant 6 : index
    %246 = vector.load %arg3[%c0_111, %c6] : memref<4x49xf32, #tpu.memory_space<vmem>>, vector<4x1xf32>
    %247 = vector.broadcast %246 : vector<4x1xf32> to vector<4x256xf32>
    %248 = arith.mulf %245, %247 : vector<4x256xf32>
    %249 = arith.addf %244, %248 : vector<4x256xf32>
    %c0_112 = arith.constant 0 : index
    %c99 = arith.constant 99 : index
    %250 = vector.load %arg11[%c0_112, %c99] : memref<4x512xf32, #tpu.memory_space<vmem>>, vector<4x256xf32>
    %c0_113 = arith.constant 0 : index
    %c13 = arith.constant 13 : index
    %251 = vector.load %arg3[%c0_113, %c13] : memref<4x49xf32, #tpu.memory_space<vmem>>, vector<4x1xf32>
    %252 = vector.broadcast %251 : vector<4x1xf32> to vector<4x256xf32>
    %253 = arith.mulf %250, %252 : vector<4x256xf32>
    %254 = arith.addf %249, %253 : vector<4x256xf32>
    %c0_114 = arith.constant 0 : index
    %c115 = arith.constant 115 : index
    %255 = vector.load %arg11[%c0_114, %c115] : memref<4x512xf32, #tpu.memory_space<vmem>>, vector<4x256xf32>
    %c0_115 = arith.constant 0 : index
    %c20 = arith.constant 20 : index
    %256 = vector.load %arg3[%c0_115, %c20] : memref<4x49xf32, #tpu.memory_space<vmem>>, vector<4x1xf32>
    %257 = vector.broadcast %256 : vector<4x1xf32> to vector<4x256xf32>
    %258 = arith.mulf %255, %257 : vector<4x256xf32>
    %259 = arith.addf %254, %258 : vector<4x256xf32>
    %c0_116 = arith.constant 0 : index
    %c131 = arith.constant 131 : index
    %260 = vector.load %arg11[%c0_116, %c131] : memref<4x512xf32, #tpu.memory_space<vmem>>, vector<4x256xf32>
    %c0_117 = arith.constant 0 : index
    %c27 = arith.constant 27 : index
    %261 = vector.load %arg3[%c0_117, %c27] : memref<4x49xf32, #tpu.memory_space<vmem>>, vector<4x1xf32>
    %262 = vector.broadcast %261 : vector<4x1xf32> to vector<4x256xf32>
    %263 = arith.mulf %260, %262 : vector<4x256xf32>
    %264 = arith.addf %259, %263 : vector<4x256xf32>
    %c0_118 = arith.constant 0 : index
    %c147 = arith.constant 147 : index
    %265 = vector.load %arg11[%c0_118, %c147] : memref<4x512xf32, #tpu.memory_space<vmem>>, vector<4x256xf32>
    %c0_119 = arith.constant 0 : index
    %c34 = arith.constant 34 : index
    %266 = vector.load %arg3[%c0_119, %c34] : memref<4x49xf32, #tpu.memory_space<vmem>>, vector<4x1xf32>
    %267 = vector.broadcast %266 : vector<4x1xf32> to vector<4x256xf32>
    %268 = arith.mulf %265, %267 : vector<4x256xf32>
    %269 = arith.addf %264, %268 : vector<4x256xf32>
    %c0_120 = arith.constant 0 : index
    %c163 = arith.constant 163 : index
    %270 = vector.load %arg11[%c0_120, %c163] : memref<4x512xf32, #tpu.memory_space<vmem>>, vector<4x256xf32>
    %c0_121 = arith.constant 0 : index
    %c41 = arith.constant 41 : index
    %271 = vector.load %arg3[%c0_121, %c41] : memref<4x49xf32, #tpu.memory_space<vmem>>, vector<4x1xf32>
    %272 = vector.broadcast %271 : vector<4x1xf32> to vector<4x256xf32>
    %273 = arith.mulf %270, %272 : vector<4x256xf32>
    %274 = arith.addf %269, %273 : vector<4x256xf32>
    %c0_122 = arith.constant 0 : index
    %c179 = arith.constant 179 : index
    %275 = vector.load %arg11[%c0_122, %c179] : memref<4x512xf32, #tpu.memory_space<vmem>>, vector<4x256xf32>
    %c0_123 = arith.constant 0 : index
    %c48 = arith.constant 48 : index
    %276 = vector.load %arg3[%c0_123, %c48] : memref<4x49xf32, #tpu.memory_space<vmem>>, vector<4x1xf32>
    %277 = vector.broadcast %276 : vector<4x1xf32> to vector<4x256xf32>
    %278 = arith.mulf %275, %277 : vector<4x256xf32>
    %279 = arith.addf %274, %278 : vector<4x256xf32>
    %c6_124 = arith.constant 6 : index
    %c0_125 = arith.constant 0 : index
    %280 = vector.load %arg1[%c6_124, %c0_125] : memref<7x256xf32, #tpu.memory_space<vmem>>, vector<1x256xf32>
    %281 = vector.broadcast %280 : vector<1x256xf32> to vector<4x256xf32>
    %282 = arith.mulf %279, %281 : vector<4x256xf32>
    %283 = arith.addf %243, %282 : vector<4x256xf32>
    %c0_126 = arith.constant 0 : index
    %c0_127 = arith.constant 0 : index
    %284 = vector.load %arg4[%c0_126, %c0_127] : memref<32x4xbf16, #tpu.memory_space<vmem>>, vector<32x4xbf16>
    %285 = arith.truncf %283 : vector<4x256xf32> to vector<4x256xbf16>
    %cst_128 = arith.constant dense<0.000000e+00> : vector<32x256xf32>
    %286 = tpu.matmul %284, %285, %cst_128 {dimension_numbers = #tpu.dot_dimension_numbers<[1], [0], [0], [1], [0, 0, 1, 1], [], []>} : vector<32x4xbf16>, vector<4x256xbf16>, vector<32x256xf32> -> vector<32x256xf32>
    %c0_129 = arith.constant 0 : index
    %c0_130 = arith.constant 0 : index
    %287 = vector.load %arg5[%c0_129, %c0_130] : memref<32x1xf32, #tpu.memory_space<vmem>>, vector<32x1xf32>
    %288 = vector.broadcast %287 : vector<32x1xf32> to vector<32x256xf32>
    %289 = arith.addf %286, %288 : vector<32x256xf32>
    %290 = vector.extract_strided_slice %289 {offsets = [0, 0], sizes = [16, 256], strides = [1, 1]} : vector<32x256xf32> to vector<16x256xf32>
    %cst_131 = arith.constant 0.000000e+00 : f32
    %cst_132 = arith.constant 6.000000e+00 : f32
    %291 = vector.broadcast %cst_131 : f32 to vector<16x256xf32>
    %292 = arith.maximumf %291, %290 : vector<16x256xf32>
    %293 = vector.broadcast %cst_132 : f32 to vector<16x256xf32>
    %294 = arith.minimumf %293, %292 : vector<16x256xf32>
    %295 = vector.extract_strided_slice %289 {offsets = [16, 0], sizes = [16, 256], strides = [1, 1]} : vector<32x256xf32> to vector<16x256xf32>
    %296 = arith.mulf %294, %295 : vector<16x256xf32>
    %c0_133 = arith.constant 0 : index
    %c0_134 = arith.constant 0 : index
    %297 = vector.load %arg6[%c0_133, %c0_134] : memref<4x16xbf16, #tpu.memory_space<vmem>>, vector<4x16xbf16>
    %298 = arith.truncf %296 : vector<16x256xf32> to vector<16x256xbf16>
    %cst_135 = arith.constant dense<0.000000e+00> : vector<4x256xf32>
    %299 = tpu.matmul %297, %298, %cst_135 {dimension_numbers = #tpu.dot_dimension_numbers<[1], [0], [0], [1], [0, 0, 1, 1], [], []>} : vector<4x16xbf16>, vector<16x256xbf16>, vector<4x256xf32> -> vector<4x256xf32>
    %c0_136 = arith.constant 0 : index
    %c0_137 = arith.constant 0 : index
    %300 = vector.load %arg7[%c0_136, %c0_137] : memref<4x1xf32, #tpu.memory_space<vmem>>, vector<4x1xf32>
    %301 = vector.broadcast %300 : vector<4x1xf32> to vector<4x256xf32>
    %302 = arith.addf %299, %301 : vector<4x256xf32>
    %c0_138 = arith.constant 0 : index
    %c128_139 = arith.constant 128 : index
    %303 = vector.load %arg11[%c0_138, %c128_139] : memref<4x512xf32, #tpu.memory_space<vmem>>, vector<4x256xf32>
    tpu.vector_store %arg11[%c0_138, %c128_139], %302 {strides = array<i32>} : memref<4x512xf32, #tpu.memory_space<vmem>>, vector<4x256xf32>,
    %cst_140 = arith.constant 0.000000e+00 : f32
    %304 = vector.broadcast %cst_140 : f32 to vector<4x256xf32>
    %cst_141 = arith.constant 0.000000e+00 : f32
    %305 = vector.broadcast %cst_141 : f32 to vector<4x256xf32>
    %c0_142 = arith.constant 0 : index
    %c77_143 = arith.constant 77 : index
    %306 = vector.load %arg11[%c0_142, %c77_143] : memref<4x512xf32, #tpu.memory_space<vmem>>, vector<4x256xf32>
    %c0_144 = arith.constant 0 : index
    %c0_145 = arith.constant 0 : index
    %307 = vector.load %arg8[%c0_144, %c0_145] : memref<4x49xf32, #tpu.memory_space<vmem>>, vector<4x1xf32>
    %308 = vector.broadcast %307 : vector<4x1xf32> to vector<4x256xf32>
    %309 = arith.mulf %306, %308 : vector<4x256xf32>
    %310 = arith.addf %305, %309 : vector<4x256xf32>
    %c0_146 = arith.constant 0 : index
    %c93_147 = arith.constant 93 : index
    %311 = vector.load %arg11[%c0_146, %c93_147] : memref<4x512xf32, #tpu.memory_space<vmem>>, vector<4x256xf32>
    %c0_148 = arith.constant 0 : index
    %c7_149 = arith.constant 7 : index
    %312 = vector.load %arg8[%c0_148, %c7_149] : memref<4x49xf32, #tpu.memory_space<vmem>>, vector<4x1xf32>
    %313 = vector.broadcast %312 : vector<4x1xf32> to vector<4x256xf32>
    %314 = arith.mulf %311, %313 : vector<4x256xf32>
    %315 = arith.addf %310, %314 : vector<4x256xf32>
    %c0_150 = arith.constant 0 : index
    %c109_151 = arith.constant 109 : index
    %316 = vector.load %arg11[%c0_150, %c109_151] : memref<4x512xf32, #tpu.memory_space<vmem>>, vector<4x256xf32>
    %c0_152 = arith.constant 0 : index
    %c14_153 = arith.constant 14 : index
    %317 = vector.load %arg8[%c0_152, %c14_153] : memref<4x49xf32, #tpu.memory_space<vmem>>, vector<4x1xf32>
    %318 = vector.broadcast %317 : vector<4x1xf32> to vector<4x256xf32>
    %319 = arith.mulf %316, %318 : vector<4x256xf32>
    %320 = arith.addf %315, %319 : vector<4x256xf32>
    %c0_154 = arith.constant 0 : index
    %c125_155 = arith.constant 125 : index
    %321 = vector.load %arg11[%c0_154, %c125_155] : memref<4x512xf32, #tpu.memory_space<vmem>>, vector<4x256xf32>
    %c0_156 = arith.constant 0 : index
    %c21_157 = arith.constant 21 : index
    %322 = vector.load %arg8[%c0_156, %c21_157] : memref<4x49xf32, #tpu.memory_space<vmem>>, vector<4x1xf32>
    %323 = vector.broadcast %322 : vector<4x1xf32> to vector<4x256xf32>
    %324 = arith.mulf %321, %323 : vector<4x256xf32>
    %325 = arith.addf %320, %324 : vector<4x256xf32>
    %c0_158 = arith.constant 0 : index
    %c141_159 = arith.constant 141 : index
    %326 = vector.load %arg11[%c0_158, %c141_159] : memref<4x512xf32, #tpu.memory_space<vmem>>, vector<4x256xf32>
    %c0_160 = arith.constant 0 : index
    %c28_161 = arith.constant 28 : index
    %327 = vector.load %arg8[%c0_160, %c28_161] : memref<4x49xf32, #tpu.memory_space<vmem>>, vector<4x1xf32>
    %328 = vector.broadcast %327 : vector<4x1xf32> to vector<4x256xf32>
    %329 = arith.mulf %326, %328 : vector<4x256xf32>
    %330 = arith.addf %325, %329 : vector<4x256xf32>
    %c0_162 = arith.constant 0 : index
    %c157_163 = arith.constant 157 : index
    %331 = vector.load %arg11[%c0_162, %c157_163] : memref<4x512xf32, #tpu.memory_space<vmem>>, vector<4x256xf32>
    %c0_164 = arith.constant 0 : index
    %c35_165 = arith.constant 35 : index
    %332 = vector.load %arg8[%c0_164, %c35_165] : memref<4x49xf32, #tpu.memory_space<vmem>>, vector<4x1xf32>
    %333 = vector.broadcast %332 : vector<4x1xf32> to vector<4x256xf32>
    %334 = arith.mulf %331, %333 : vector<4x256xf32>
    %335 = arith.addf %330, %334 : vector<4x256xf32>
    %c0_166 = arith.constant 0 : index
    %c173_167 = arith.constant 173 : index
    %336 = vector.load %arg11[%c0_166, %c173_167] : memref<4x512xf32, #tpu.memory_space<vmem>>, vector<4x256xf32>
    %c0_168 = arith.constant 0 : index
    %c42_169 = arith.constant 42 : index
    %337 = vector.load %arg8[%c0_168, %c42_169] : memref<4x49xf32, #tpu.memory_space<vmem>>, vector<4x1xf32>
    %338 = vector.broadcast %337 : vector<4x1xf32> to vector<4x256xf32>
    %339 = arith.mulf %336, %338 : vector<4x256xf32>
    %340 = arith.addf %335, %339 : vector<4x256xf32>
    %c0_170 = arith.constant 0 : index
    %c0_171 = arith.constant 0 : index
    %341 = vector.load %arg1[%c0_170, %c0_171] : memref<7x256xf32, #tpu.memory_space<vmem>>, vector<1x256xf32>
    %342 = vector.broadcast %341 : vector<1x256xf32> to vector<4x256xf32>
    %343 = arith.mulf %340, %342 : vector<4x256xf32>
    %344 = arith.addf %304, %343 : vector<4x256xf32>
    %cst_172 = arith.constant 0.000000e+00 : f32
    %345 = vector.broadcast %cst_172 : f32 to vector<4x256xf32>
    %c0_173 = arith.constant 0 : index
    %c78_174 = arith.constant 78 : index
    %346 = vector.load %arg11[%c0_173, %c78_174] : memref<4x512xf32, #tpu.memory_space<vmem>>, vector<4x256xf32>
    %c0_175 = arith.constant 0 : index
    %c1_176 = arith.constant 1 : index
    %347 = vector.load %arg8[%c0_175, %c1_176] : memref<4x49xf32, #tpu.memory_space<vmem>>, vector<4x1xf32>
    %348 = vector.broadcast %347 : vector<4x1xf32> to vector<4x256xf32>
    %349 = arith.mulf %346, %348 : vector<4x256xf32>
    %350 = arith.addf %345, %349 : vector<4x256xf32>
    %c0_177 = arith.constant 0 : index
    %c94_178 = arith.constant 94 : index
    %351 = vector.load %arg11[%c0_177, %c94_178] : memref<4x512xf32, #tpu.memory_space<vmem>>, vector<4x256xf32>
    %c0_179 = arith.constant 0 : index
    %c8_180 = arith.constant 8 : index
    %352 = vector.load %arg8[%c0_179, %c8_180] : memref<4x49xf32, #tpu.memory_space<vmem>>, vector<4x1xf32>
    %353 = vector.broadcast %352 : vector<4x1xf32> to vector<4x256xf32>
    %354 = arith.mulf %351, %353 : vector<4x256xf32>
    %355 = arith.addf %350, %354 : vector<4x256xf32>
    %c0_181 = arith.constant 0 : index
    %c110_182 = arith.constant 110 : index
    %356 = vector.load %arg11[%c0_181, %c110_182] : memref<4x512xf32, #tpu.memory_space<vmem>>, vector<4x256xf32>
    %c0_183 = arith.constant 0 : index
    %c15_184 = arith.constant 15 : index
    %357 = vector.load %arg8[%c0_183, %c15_184] : memref<4x49xf32, #tpu.memory_space<vmem>>, vector<4x1xf32>
    %358 = vector.broadcast %357 : vector<4x1xf32> to vector<4x256xf32>
    %359 = arith.mulf %356, %358 : vector<4x256xf32>
    %360 = arith.addf %355, %359 : vector<4x256xf32>
    %c0_185 = arith.constant 0 : index
    %c126_186 = arith.constant 126 : index
    %361 = vector.load %arg11[%c0_185, %c126_186] : memref<4x512xf32, #tpu.memory_space<vmem>>, vector<4x256xf32>
    %c0_187 = arith.constant 0 : index
    %c22_188 = arith.constant 22 : index
    %362 = vector.load %arg8[%c0_187, %c22_188] : memref<4x49xf32, #tpu.memory_space<vmem>>, vector<4x1xf32>
    %363 = vector.broadcast %362 : vector<4x1xf32> to vector<4x256xf32>
    %364 = arith.mulf %361, %363 : vector<4x256xf32>
    %365 = arith.addf %360, %364 : vector<4x256xf32>
    %c0_189 = arith.constant 0 : index
    %c142_190 = arith.constant 142 : index
    %366 = vector.load %arg11[%c0_189, %c142_190] : memref<4x512xf32, #tpu.memory_space<vmem>>, vector<4x256xf32>
    %c0_191 = arith.constant 0 : index
    %c29_192 = arith.constant 29 : index
    %367 = vector.load %arg8[%c0_191, %c29_192] : memref<4x49xf32, #tpu.memory_space<vmem>>, vector<4x1xf32>
    %368 = vector.broadcast %367 : vector<4x1xf32> to vector<4x256xf32>
    %369 = arith.mulf %366, %368 : vector<4x256xf32>
    %370 = arith.addf %365, %369 : vector<4x256xf32>
    %c0_193 = arith.constant 0 : index
    %c158_194 = arith.constant 158 : index
    %371 = vector.load %arg11[%c0_193, %c158_194] : memref<4x512xf32, #tpu.memory_space<vmem>>, vector<4x256xf32>
    %c0_195 = arith.constant 0 : index
    %c36_196 = arith.constant 36 : index
    %372 = vector.load %arg8[%c0_195, %c36_196] : memref<4x49xf32, #tpu.memory_space<vmem>>, vector<4x1xf32>
    %373 = vector.broadcast %372 : vector<4x1xf32> to vector<4x256xf32>
    %374 = arith.mulf %371, %373 : vector<4x256xf32>
    %375 = arith.addf %370, %374 : vector<4x256xf32>
    %c0_197 = arith.constant 0 : index
    %c174_198 = arith.constant 174 : index
    %376 = vector.load %arg11[%c0_197, %c174_198] : memref<4x512xf32, #tpu.memory_space<vmem>>, vector<4x256xf32>
    %c0_199 = arith.constant 0 : index
    %c43_200 = arith.constant 43 : index
    %377 = vector.load %arg8[%c0_199, %c43_200] : memref<4x49xf32, #tpu.memory_space<vmem>>, vector<4x1xf32>
    %378 = vector.broadcast %377 : vector<4x1xf32> to vector<4x256xf32>
    %379 = arith.mulf %376, %378 : vector<4x256xf32>
    %380 = arith.addf %375, %379 : vector<4x256xf32>
    %c1_201 = arith.constant 1 : index
    %c0_202 = arith.constant 0 : index
    %381 = vector.load %arg1[%c1_201, %c0_202] : memref<7x256xf32, #tpu.memory_space<vmem>>, vector<1x256xf32>
    %382 = vector.broadcast %381 : vector<1x256xf32> to vector<4x256xf32>
    %383 = arith.mulf %380, %382 : vector<4x256xf32>
    %384 = arith.addf %344, %383 : vector<4x256xf32>
    %cst_203 = arith.constant 0.000000e+00 : f32
    %385 = vector.broadcast %cst_203 : f32 to vector<4x256xf32>
    %c0_204 = arith.constant 0 : index
    %c79_205 = arith.constant 79 : index
    %386 = vector.load %arg11[%c0_204, %c79_205] : memref<4x512xf32, #tpu.memory_space<vmem>>, vector<4x256xf32>
    %c0_206 = arith.constant 0 : index
    %c2_207 = arith.constant 2 : index
    %387 = vector.load %arg8[%c0_206, %c2_207] : memref<4x49xf32, #tpu.memory_space<vmem>>, vector<4x1xf32>
    %388 = vector.broadcast %387 : vector<4x1xf32> to vector<4x256xf32>
    %389 = arith.mulf %386, %388 : vector<4x256xf32>
    %390 = arith.addf %385, %389 : vector<4x256xf32>
    %c0_208 = arith.constant 0 : index
    %c95_209 = arith.constant 95 : index
    %391 = vector.load %arg11[%c0_208, %c95_209] : memref<4x512xf32, #tpu.memory_space<vmem>>, vector<4x256xf32>
    %c0_210 = arith.constant 0 : index
    %c9_211 = arith.constant 9 : index
    %392 = vector.load %arg8[%c0_210, %c9_211] : memref<4x49xf32, #tpu.memory_space<vmem>>, vector<4x1xf32>
    %393 = vector.broadcast %392 : vector<4x1xf32> to vector<4x256xf32>
    %394 = arith.mulf %391, %393 : vector<4x256xf32>
    %395 = arith.addf %390, %394 : vector<4x256xf32>
    %c0_212 = arith.constant 0 : index
    %c111_213 = arith.constant 111 : index
    %396 = vector.load %arg11[%c0_212, %c111_213] : memref<4x512xf32, #tpu.memory_space<vmem>>, vector<4x256xf32>
    %c0_214 = arith.constant 0 : index
    %c16_215 = arith.constant 16 : index
    %397 = vector.load %arg8[%c0_214, %c16_215] : memref<4x49xf32, #tpu.memory_space<vmem>>, vector<4x1xf32>
    %398 = vector.broadcast %397 : vector<4x1xf32> to vector<4x256xf32>
    %399 = arith.mulf %396, %398 : vector<4x256xf32>
    %400 = arith.addf %395, %399 : vector<4x256xf32>
    %c0_216 = arith.constant 0 : index
    %c127_217 = arith.constant 127 : index
    %401 = vector.load %arg11[%c0_216, %c127_217] : memref<4x512xf32, #tpu.memory_space<vmem>>, vector<4x256xf32>
    %c0_218 = arith.constant 0 : index
    %c23_219 = arith.constant 23 : index
    %402 = vector.load %arg8[%c0_218, %c23_219] : memref<4x49xf32, #tpu.memory_space<vmem>>, vector<4x1xf32>
    %403 = vector.broadcast %402 : vector<4x1xf32> to vector<4x256xf32>
    %404 = arith.mulf %401, %403 : vector<4x256xf32>
    %405 = arith.addf %400, %404 : vector<4x256xf32>
    %c0_220 = arith.constant 0 : index
    %c143_221 = arith.constant 143 : index
    %406 = vector.load %arg11[%c0_220, %c143_221] : memref<4x512xf32, #tpu.memory_space<vmem>>, vector<4x256xf32>
    %c0_222 = arith.constant 0 : index
    %c30_223 = arith.constant 30 : index
    %407 = vector.load %arg8[%c0_222, %c30_223] : memref<4x49xf32, #tpu.memory_space<vmem>>, vector<4x1xf32>
    %408 = vector.broadcast %407 : vector<4x1xf32> to vector<4x256xf32>
    %409 = arith.mulf %406, %408 : vector<4x256xf32>
    %410 = arith.addf %405, %409 : vector<4x256xf32>
    %c0_224 = arith.constant 0 : index
    %c159_225 = arith.constant 159 : index
    %411 = vector.load %arg11[%c0_224, %c159_225] : memref<4x512xf32, #tpu.memory_space<vmem>>, vector<4x256xf32>
    %c0_226 = arith.constant 0 : index
    %c37_227 = arith.constant 37 : index
    %412 = vector.load %arg8[%c0_226, %c37_227] : memref<4x49xf32, #tpu.memory_space<vmem>>, vector<4x1xf32>
    %413 = vector.broadcast %412 : vector<4x1xf32> to vector<4x256xf32>
    %414 = arith.mulf %411, %413 : vector<4x256xf32>
    %415 = arith.addf %410, %414 : vector<4x256xf32>
    %c0_228 = arith.constant 0 : index
    %c175_229 = arith.constant 175 : index
    %416 = vector.load %arg11[%c0_228, %c175_229] : memref<4x512xf32, #tpu.memory_space<vmem>>, vector<4x256xf32>
    %c0_230 = arith.constant 0 : index
    %c44_231 = arith.constant 44 : index
    %417 = vector.load %arg8[%c0_230, %c44_231] : memref<4x49xf32, #tpu.memory_space<vmem>>, vector<4x1xf32>
    %418 = vector.broadcast %417 : vector<4x1xf32> to vector<4x256xf32>
    %419 = arith.mulf %416, %418 : vector<4x256xf32>
    %420 = arith.addf %415, %419 : vector<4x256xf32>
    %c2_232 = arith.constant 2 : index
    %c0_233 = arith.constant 0 : index
    %421 = vector.load %arg1[%c2_232, %c0_233] : memref<7x256xf32, #tpu.memory_space<vmem>>, vector<1x256xf32>
    %422 = vector.broadcast %421 : vector<1x256xf32> to vector<4x256xf32>
    %423 = arith.mulf %420, %422 : vector<4x256xf32>
    %424 = arith.addf %384, %423 : vector<4x256xf32>
    %cst_234 = arith.constant 0.000000e+00 : f32
    %425 = vector.broadcast %cst_234 : f32 to vector<4x256xf32>
    %c0_235 = arith.constant 0 : index
    %c80_236 = arith.constant 80 : index
    %426 = vector.load %arg11[%c0_235, %c80_236] : memref<4x512xf32, #tpu.memory_space<vmem>>, vector<4x256xf32>
    %c0_237 = arith.constant 0 : index
    %c3_238 = arith.constant 3 : index
    %427 = vector.load %arg8[%c0_237, %c3_238] : memref<4x49xf32, #tpu.memory_space<vmem>>, vector<4x1xf32>
    %428 = vector.broadcast %427 : vector<4x1xf32> to vector<4x256xf32>
    %429 = arith.mulf %426, %428 : vector<4x256xf32>
    %430 = arith.addf %425, %429 : vector<4x256xf32>
    %c0_239 = arith.constant 0 : index
    %c96_240 = arith.constant 96 : index
    %431 = vector.load %arg11[%c0_239, %c96_240] : memref<4x512xf32, #tpu.memory_space<vmem>>, vector<4x256xf32>
    %c0_241 = arith.constant 0 : index
    %c10_242 = arith.constant 10 : index
    %432 = vector.load %arg8[%c0_241, %c10_242] : memref<4x49xf32, #tpu.memory_space<vmem>>, vector<4x1xf32>
    %433 = vector.broadcast %432 : vector<4x1xf32> to vector<4x256xf32>
    %434 = arith.mulf %431, %433 : vector<4x256xf32>
    %435 = arith.addf %430, %434 : vector<4x256xf32>
    %c0_243 = arith.constant 0 : index
    %c112_244 = arith.constant 112 : index
    %436 = vector.load %arg11[%c0_243, %c112_244] : memref<4x512xf32, #tpu.memory_space<vmem>>, vector<4x256xf32>
    %c0_245 = arith.constant 0 : index
    %c17_246 = arith.constant 17 : index
    %437 = vector.load %arg8[%c0_245, %c17_246] : memref<4x49xf32, #tpu.memory_space<vmem>>, vector<4x1xf32>
    %438 = vector.broadcast %437 : vector<4x1xf32> to vector<4x256xf32>
    %439 = arith.mulf %436, %438 : vector<4x256xf32>
    %440 = arith.addf %435, %439 : vector<4x256xf32>
    %c0_247 = arith.constant 0 : index
    %c128_248 = arith.constant 128 : index
    %441 = vector.load %arg11[%c0_247, %c128_248] : memref<4x512xf32, #tpu.memory_space<vmem>>, vector<4x256xf32>
    %c0_249 = arith.constant 0 : index
    %c24_250 = arith.constant 24 : index
    %442 = vector.load %arg8[%c0_249, %c24_250] : memref<4x49xf32, #tpu.memory_space<vmem>>, vector<4x1xf32>
    %443 = vector.broadcast %442 : vector<4x1xf32> to vector<4x256xf32>
    %444 = arith.mulf %441, %443 : vector<4x256xf32>
    %445 = arith.addf %440, %444 : vector<4x256xf32>
    %c0_251 = arith.constant 0 : index
    %c144_252 = arith.constant 144 : index
    %446 = vector.load %arg11[%c0_251, %c144_252] : memref<4x512xf32, #tpu.memory_space<vmem>>, vector<4x256xf32>
    %c0_253 = arith.constant 0 : index
    %c31_254 = arith.constant 31 : index
    %447 = vector.load %arg8[%c0_253, %c31_254] : memref<4x49xf32, #tpu.memory_space<vmem>>, vector<4x1xf32>
    %448 = vector.broadcast %447 : vector<4x1xf32> to vector<4x256xf32>
    %449 = arith.mulf %446, %448 : vector<4x256xf32>
    %450 = arith.addf %445, %449 : vector<4x256xf32>
    %c0_255 = arith.constant 0 : index
    %c160_256 = arith.constant 160 : index
    %451 = vector.load %arg11[%c0_255, %c160_256] : memref<4x512xf32, #tpu.memory_space<vmem>>, vector<4x256xf32>
    %c0_257 = arith.constant 0 : index
    %c38_258 = arith.constant 38 : index
    %452 = vector.load %arg8[%c0_257, %c38_258] : memref<4x49xf32, #tpu.memory_space<vmem>>, vector<4x1xf32>
    %453 = vector.broadcast %452 : vector<4x1xf32> to vector<4x256xf32>
    %454 = arith.mulf %451, %453 : vector<4x256xf32>
    %455 = arith.addf %450, %454 : vector<4x256xf32>
    %c0_259 = arith.constant 0 : index
    %c176_260 = arith.constant 176 : index
    %456 = vector.load %arg11[%c0_259, %c176_260] : memref<4x512xf32, #tpu.memory_space<vmem>>, vector<4x256xf32>
    %c0_261 = arith.constant 0 : index
    %c45_262 = arith.constant 45 : index
    %457 = vector.load %arg8[%c0_261, %c45_262] : memref<4x49xf32, #tpu.memory_space<vmem>>, vector<4x1xf32>
    %458 = vector.broadcast %457 : vector<4x1xf32> to vector<4x256xf32>
    %459 = arith.mulf %456, %458 : vector<4x256xf32>
    %460 = arith.addf %455, %459 : vector<4x256xf32>
    %461 = arith.addf %424, %460 : vector<4x256xf32>
    %cst_263 = arith.constant 0.000000e+00 : f32
    %462 = vector.broadcast %cst_263 : f32 to vector<4x256xf32>
    %c0_264 = arith.constant 0 : index
    %c81_265 = arith.constant 81 : index
    %463 = vector.load %arg11[%c0_264, %c81_265] : memref<4x512xf32, #tpu.memory_space<vmem>>, vector<4x256xf32>
    %c0_266 = arith.constant 0 : index
    %c4_267 = arith.constant 4 : index
    %464 = vector.load %arg8[%c0_266, %c4_267] : memref<4x49xf32, #tpu.memory_space<vmem>>, vector<4x1xf32>
    %465 = vector.broadcast %464 : vector<4x1xf32> to vector<4x256xf32>
    %466 = arith.mulf %463, %465 : vector<4x256xf32>
    %467 = arith.addf %462, %466 : vector<4x256xf32>
    %c0_268 = arith.constant 0 : index
    %c97_269 = arith.constant 97 : index
    %468 = vector.load %arg11[%c0_268, %c97_269] : memref<4x512xf32, #tpu.memory_space<vmem>>, vector<4x256xf32>
    %c0_270 = arith.constant 0 : index
    %c11_271 = arith.constant 11 : index
    %469 = vector.load %arg8[%c0_270, %c11_271] : memref<4x49xf32, #tpu.memory_space<vmem>>, vector<4x1xf32>
    %470 = vector.broadcast %469 : vector<4x1xf32> to vector<4x256xf32>
    %471 = arith.mulf %468, %470 : vector<4x256xf32>
    %472 = arith.addf %467, %471 : vector<4x256xf32>
    %c0_272 = arith.constant 0 : index
    %c113_273 = arith.constant 113 : index
    %473 = vector.load %arg11[%c0_272, %c113_273] : memref<4x512xf32, #tpu.memory_space<vmem>>, vector<4x256xf32>
    %c0_274 = arith.constant 0 : index
    %c18_275 = arith.constant 18 : index
    %474 = vector.load %arg8[%c0_274, %c18_275] : memref<4x49xf32, #tpu.memory_space<vmem>>, vector<4x1xf32>
    %475 = vector.broadcast %474 : vector<4x1xf32> to vector<4x256xf32>
    %476 = arith.mulf %473, %475 : vector<4x256xf32>
    %477 = arith.addf %472, %476 : vector<4x256xf32>
    %c0_276 = arith.constant 0 : index
    %c129_277 = arith.constant 129 : index
    %478 = vector.load %arg11[%c0_276, %c129_277] : memref<4x512xf32, #tpu.memory_space<vmem>>, vector<4x256xf32>
    %c0_278 = arith.constant 0 : index
    %c25_279 = arith.constant 25 : index
    %479 = vector.load %arg8[%c0_278, %c25_279] : memref<4x49xf32, #tpu.memory_space<vmem>>, vector<4x1xf32>
    %480 = vector.broadcast %479 : vector<4x1xf32> to vector<4x256xf32>
    %481 = arith.mulf %478, %480 : vector<4x256xf32>
    %482 = arith.addf %477, %481 : vector<4x256xf32>
    %c0_280 = arith.constant 0 : index
    %c145_281 = arith.constant 145 : index
    %483 = vector.load %arg11[%c0_280, %c145_281] : memref<4x512xf32, #tpu.memory_space<vmem>>, vector<4x256xf32>
    %c0_282 = arith.constant 0 : index
    %c32_283 = arith.constant 32 : index
    %484 = vector.load %arg8[%c0_282, %c32_283] : memref<4x49xf32, #tpu.memory_space<vmem>>, vector<4x1xf32>
    %485 = vector.broadcast %484 : vector<4x1xf32> to vector<4x256xf32>
    %486 = arith.mulf %483, %485 : vector<4x256xf32>
    %487 = arith.addf %482, %486 : vector<4x256xf32>
    %c0_284 = arith.constant 0 : index
    %c161_285 = arith.constant 161 : index
    %488 = vector.load %arg11[%c0_284, %c161_285] : memref<4x512xf32, #tpu.memory_space<vmem>>, vector<4x256xf32>
    %c0_286 = arith.constant 0 : index
    %c39_287 = arith.constant 39 : index
    %489 = vector.load %arg8[%c0_286, %c39_287] : memref<4x49xf32, #tpu.memory_space<vmem>>, vector<4x1xf32>
    %490 = vector.broadcast %489 : vector<4x1xf32> to vector<4x256xf32>
    %491 = arith.mulf %488, %490 : vector<4x256xf32>
    %492 = arith.addf %487, %491 : vector<4x256xf32>
    %c0_288 = arith.constant 0 : index
    %c177_289 = arith.constant 177 : index
    %493 = vector.load %arg11[%c0_288, %c177_289] : memref<4x512xf32, #tpu.memory_space<vmem>>, vector<4x256xf32>
    %c0_290 = arith.constant 0 : index
    %c46_291 = arith.constant 46 : index
    %494 = vector.load %arg8[%c0_290, %c46_291] : memref<4x49xf32, #tpu.memory_space<vmem>>, vector<4x1xf32>
    %495 = vector.broadcast %494 : vector<4x1xf32> to vector<4x256xf32>
    %496 = arith.mulf %493, %495 : vector<4x256xf32>
    %497 = arith.addf %492, %496 : vector<4x256xf32>
    %c4_292 = arith.constant 4 : index
    %c0_293 = arith.constant 0 : index
    %498 = vector.load %arg1[%c4_292, %c0_293] : memref<7x256xf32, #tpu.memory_space<vmem>>, vector<1x256xf32>
    %499 = vector.broadcast %498 : vector<1x256xf32> to vector<4x256xf32>
    %500 = arith.mulf %497, %499 : vector<4x256xf32>
    %501 = arith.addf %461, %500 : vector<4x256xf32>
    %cst_294 = arith.constant 0.000000e+00 : f32
    %502 = vector.broadcast %cst_294 : f32 to vector<4x256xf32>
    %c0_295 = arith.constant 0 : index
    %c82_296 = arith.constant 82 : index
    %503 = vector.load %arg11[%c0_295, %c82_296] : memref<4x512xf32, #tpu.memory_space<vmem>>, vector<4x256xf32>
    %c0_297 = arith.constant 0 : index
    %c5_298 = arith.constant 5 : index
    %504 = vector.load %arg8[%c0_297, %c5_298] : memref<4x49xf32, #tpu.memory_space<vmem>>, vector<4x1xf32>
    %505 = vector.broadcast %504 : vector<4x1xf32> to vector<4x256xf32>
    %506 = arith.mulf %503, %505 : vector<4x256xf32>
    %507 = arith.addf %502, %506 : vector<4x256xf32>
    %c0_299 = arith.constant 0 : index
    %c98_300 = arith.constant 98 : index
    %508 = vector.load %arg11[%c0_299, %c98_300] : memref<4x512xf32, #tpu.memory_space<vmem>>, vector<4x256xf32>
    %c0_301 = arith.constant 0 : index
    %c12_302 = arith.constant 12 : index
    %509 = vector.load %arg8[%c0_301, %c12_302] : memref<4x49xf32, #tpu.memory_space<vmem>>, vector<4x1xf32>
    %510 = vector.broadcast %509 : vector<4x1xf32> to vector<4x256xf32>
    %511 = arith.mulf %508, %510 : vector<4x256xf32>
    %512 = arith.addf %507, %511 : vector<4x256xf32>
    %c0_303 = arith.constant 0 : index
    %c114_304 = arith.constant 114 : index
    %513 = vector.load %arg11[%c0_303, %c114_304] : memref<4x512xf32, #tpu.memory_space<vmem>>, vector<4x256xf32>
    %c0_305 = arith.constant 0 : index
    %c19_306 = arith.constant 19 : index
    %514 = vector.load %arg8[%c0_305, %c19_306] : memref<4x49xf32, #tpu.memory_space<vmem>>, vector<4x1xf32>
    %515 = vector.broadcast %514 : vector<4x1xf32> to vector<4x256xf32>
    %516 = arith.mulf %513, %515 : vector<4x256xf32>
    %517 = arith.addf %512, %516 : vector<4x256xf32>
    %c0_307 = arith.constant 0 : index
    %c130_308 = arith.constant 130 : index
    %518 = vector.load %arg11[%c0_307, %c130_308] : memref<4x512xf32, #tpu.memory_space<vmem>>, vector<4x256xf32>
    %c0_309 = arith.constant 0 : index
    %c26_310 = arith.constant 26 : index
    %519 = vector.load %arg8[%c0_309, %c26_310] : memref<4x49xf32, #tpu.memory_space<vmem>>, vector<4x1xf32>
    %520 = vector.broadcast %519 : vector<4x1xf32> to vector<4x256xf32>
    %521 = arith.mulf %518, %520 : vector<4x256xf32>
    %522 = arith.addf %517, %521 : vector<4x256xf32>
    %c0_311 = arith.constant 0 : index
    %c146_312 = arith.constant 146 : index
    %523 = vector.load %arg11[%c0_311, %c146_312] : memref<4x512xf32, #tpu.memory_space<vmem>>, vector<4x256xf32>
    %c0_313 = arith.constant 0 : index
    %c33_314 = arith.constant 33 : index
    %524 = vector.load %arg8[%c0_313, %c33_314] : memref<4x49xf32, #tpu.memory_space<vmem>>, vector<4x1xf32>
    %525 = vector.broadcast %524 : vector<4x1xf32> to vector<4x256xf32>
    %526 = arith.mulf %523, %525 : vector<4x256xf32>
    %527 = arith.addf %522, %526 : vector<4x256xf32>
    %c0_315 = arith.constant 0 : index
    %c162_316 = arith.constant 162 : index
    %528 = vector.load %arg11[%c0_315, %c162_316] : memref<4x512xf32, #tpu.memory_space<vmem>>, vector<4x256xf32>
    %c0_317 = arith.constant 0 : index
    %c40_318 = arith.constant 40 : index
    %529 = vector.load %arg8[%c0_317, %c40_318] : memref<4x49xf32, #tpu.memory_space<vmem>>, vector<4x1xf32>
    %530 = vector.broadcast %529 : vector<4x1xf32> to vector<4x256xf32>
    %531 = arith.mulf %528, %530 : vector<4x256xf32>
    %532 = arith.addf %527, %531 : vector<4x256xf32>
    %c0_319 = arith.constant 0 : index
    %c178_320 = arith.constant 178 : index
    %533 = vector.load %arg11[%c0_319, %c178_320] : memref<4x512xf32, #tpu.memory_space<vmem>>, vector<4x256xf32>
    %c0_321 = arith.constant 0 : index
    %c47_322 = arith.constant 47 : index
    %534 = vector.load %arg8[%c0_321, %c47_322] : memref<4x49xf32, #tpu.memory_space<vmem>>, vector<4x1xf32>
    %535 = vector.broadcast %534 : vector<4x1xf32> to vector<4x256xf32>
    %536 = arith.mulf %533, %535 : vector<4x256xf32>
    %537 = arith.addf %532, %536 : vector<4x256xf32>
    %c5_323 = arith.constant 5 : index
    %c0_324 = arith.constant 0 : index
    %538 = vector.load %arg1[%c5_323, %c0_324] : memref<7x256xf32, #tpu.memory_space<vmem>>, vector<1x256xf32>
    %539 = vector.broadcast %538 : vector<1x256xf32> to vector<4x256xf32>
    %540 = arith.mulf %537, %539 : vector<4x256xf32>
    %541 = arith.addf %501, %540 : vector<4x256xf32>
    %cst_325 = arith.constant 0.000000e+00 : f32
    %542 = vector.broadcast %cst_325 : f32 to vector<4x256xf32>
    %c0_326 = arith.constant 0 : index
    %c83_327 = arith.constant 83 : index
    %543 = vector.load %arg11[%c0_326, %c83_327] : memref<4x512xf32, #tpu.memory_space<vmem>>, vector<4x256xf32>
    %c0_328 = arith.constant 0 : index
    %c6_329 = arith.constant 6 : index
    %544 = vector.load %arg8[%c0_328, %c6_329] : memref<4x49xf32, #tpu.memory_space<vmem>>, vector<4x1xf32>
    %545 = vector.broadcast %544 : vector<4x1xf32> to vector<4x256xf32>
    %546 = arith.mulf %543, %545 : vector<4x256xf32>
    %547 = arith.addf %542, %546 : vector<4x256xf32>
    %c0_330 = arith.constant 0 : index
    %c99_331 = arith.constant 99 : index
    %548 = vector.load %arg11[%c0_330, %c99_331] : memref<4x512xf32, #tpu.memory_space<vmem>>, vector<4x256xf32>
    %c0_332 = arith.constant 0 : index
    %c13_333 = arith.constant 13 : index
    %549 = vector.load %arg8[%c0_332, %c13_333] : memref<4x49xf32, #tpu.memory_space<vmem>>, vector<4x1xf32>
    %550 = vector.broadcast %549 : vector<4x1xf32> to vector<4x256xf32>
    %551 = arith.mulf %548, %550 : vector<4x256xf32>
    %552 = arith.addf %547, %551 : vector<4x256xf32>
    %c0_334 = arith.constant 0 : index
    %c115_335 = arith.constant 115 : index
    %553 = vector.load %arg11[%c0_334, %c115_335] : memref<4x512xf32, #tpu.memory_space<vmem>>, vector<4x256xf32>
    %c0_336 = arith.constant 0 : index
    %c20_337 = arith.constant 20 : index
    %554 = vector.load %arg8[%c0_336, %c20_337] : memref<4x49xf32, #tpu.memory_space<vmem>>, vector<4x1xf32>
    %555 = vector.broadcast %554 : vector<4x1xf32> to vector<4x256xf32>
    %556 = arith.mulf %553, %555 : vector<4x256xf32>
    %557 = arith.addf %552, %556 : vector<4x256xf32>
    %c0_338 = arith.constant 0 : index
    %c131_339 = arith.constant 131 : index
    %558 = vector.load %arg11[%c0_338, %c131_339] : memref<4x512xf32, #tpu.memory_space<vmem>>, vector<4x256xf32>
    %c0_340 = arith.constant 0 : index
    %c27_341 = arith.constant 27 : index
    %559 = vector.load %arg8[%c0_340, %c27_341] : memref<4x49xf32, #tpu.memory_space<vmem>>, vector<4x1xf32>
    %560 = vector.broadcast %559 : vector<4x1xf32> to vector<4x256xf32>
    %561 = arith.mulf %558, %560 : vector<4x256xf32>
    %562 = arith.addf %557, %561 : vector<4x256xf32>
    %c0_342 = arith.constant 0 : index
    %c147_343 = arith.constant 147 : index
    %563 = vector.load %arg11[%c0_342, %c147_343] : memref<4x512xf32, #tpu.memory_space<vmem>>, vector<4x256xf32>
    %c0_344 = arith.constant 0 : index
    %c34_345 = arith.constant 34 : index
    %564 = vector.load %arg8[%c0_344, %c34_345] : memref<4x49xf32, #tpu.memory_space<vmem>>, vector<4x1xf32>
    %565 = vector.broadcast %564 : vector<4x1xf32> to vector<4x256xf32>
    %566 = arith.mulf %563, %565 : vector<4x256xf32>
    %567 = arith.addf %562, %566 : vector<4x256xf32>
    %c0_346 = arith.constant 0 : index
    %c163_347 = arith.constant 163 : index
    %568 = vector.load %arg11[%c0_346, %c163_347] : memref<4x512xf32, #tpu.memory_space<vmem>>, vector<4x256xf32>
    %c0_348 = arith.constant 0 : index
    %c41_349 = arith.constant 41 : index
    %569 = vector.load %arg8[%c0_348, %c41_349] : memref<4x49xf32, #tpu.memory_space<vmem>>, vector<4x1xf32>
    %570 = vector.broadcast %569 : vector<4x1xf32> to vector<4x256xf32>
    %571 = arith.mulf %568, %570 : vector<4x256xf32>
    %572 = arith.addf %567, %571 : vector<4x256xf32>
    %c0_350 = arith.constant 0 : index
    %c179_351 = arith.constant 179 : index
    %573 = vector.load %arg11[%c0_350, %c179_351] : memref<4x512xf32, #tpu.memory_space<vmem>>, vector<4x256xf32>
    %c0_352 = arith.constant 0 : index
    %c48_353 = arith.constant 48 : index
    %574 = vector.load %arg8[%c0_352, %c48_353] : memref<4x49xf32, #tpu.memory_space<vmem>>, vector<4x1xf32>
    %575 = vector.broadcast %574 : vector<4x1xf32> to vector<4x256xf32>
    %576 = arith.mulf %573, %575 : vector<4x256xf32>
    %577 = arith.addf %572, %576 : vector<4x256xf32>
    %c6_354 = arith.constant 6 : index
    %c0_355 = arith.constant 0 : index
    %578 = vector.load %arg1[%c6_354, %c0_355] : memref<7x256xf32, #tpu.memory_space<vmem>>, vector<1x256xf32>
    %579 = vector.broadcast %578 : vector<1x256xf32> to vector<4x256xf32>
    %580 = arith.mulf %577, %579 : vector<4x256xf32>
    %581 = arith.addf %541, %580 : vector<4x256xf32>
    %c0_356 = arith.constant 0 : index
    %c0_357 = arith.constant 0 : index
    %582 = vector.load %arg9[%c0_356, %c0_357] : memref<4x1xf32, #tpu.memory_space<vmem>>, vector<4x1xf32>
    %583 = vector.broadcast %582 : vector<4x1xf32> to vector<4x256xf32>
    %584 = arith.addf %581, %583 : vector<4x256xf32>
    %c0_358 = arith.constant 0 : index
    %c0_359 = arith.constant 0 : index
    %c0_360 = arith.constant 0 : index
    %585 = vector.load %arg2[%c0_358, %c0_359, %c0_360] : memref<1x4x256xf32, #tpu.memory_space<vmem>>, vector<1x4x256xf32>
    %586 = vector.shape_cast %585 : vector<1x4x256xf32> to vector<4x256xf32>
    %587 = arith.addf %586, %584 : vector<4x256xf32>
    %c0_361 = arith.constant 0 : index
    %c0_362 = arith.constant 0 : index
    %c0_363 = arith.constant 0 : index
    %588 = vector.load %arg10[%c0_361, %c0_362, %c0_363] : memref<1x4x256xf32, #tpu.memory_space<vmem>>, vector<1x4x256xf32>
    %589 = vector.shape_cast %588 : vector<1x4x256xf32> to vector<4x256xf32>
    %590 = vector.shape_cast %587 : vector<4x256xf32> to vector<1x4x256xf32>
    tpu.vector_store %arg10[%c0_361, %c0_362, %c0_363], %590 {strides = array<i32>} : memref<1x4x256xf32, #tpu.memory_space<vmem>>, vector<1x4x256xf32>,
    return
  }
  func.func @transform_0(%arg0: i32) -> (i32, i32) {
    %c0_i32 = arith.constant 0 : i32
    %c0_i32_0 = arith.constant 0 : i32
    %c0_i32_1 = arith.constant 0 : i32
    return %c0_i32, %c0_i32_0 : i32, i32
  }
  func.func @transform_1(%arg0: i32) -> (i32, i32, i32) {
    %c0_i32 = arith.constant 0 : i32
    %c0_i32_0 = arith.constant 0 : i32
    %c0_i32_1 = arith.constant 0 : i32
    return %arg0, %c0_i32, %c0_i32_0 : i32, i32, i32
  }
  func.func @transform_2(%arg0: i32) -> (i32, i32) {
    %c0_i32 = arith.constant 0 : i32
    %c0_i32_0 = arith.constant 0 : i32
    %c0_i32_1 = arith.constant 0 : i32
    return %c0_i32, %c0_i32_0 : i32, i32
  }
  func.func @transform_3(%arg0: i32) -> (i32, i32) {
    %c0_i32 = arith.constant 0 : i32
    %c0_i32_0 = arith.constant 0 : i32
    %c0_i32_1 = arith.constant 0 : i32
    return %c0_i32, %c0_i32_0 : i32, i32
  }
  func.func @transform_4(%arg0: i32) -> (i32, i32) {
    %c0_i32 = arith.constant 0 : i32
    %c0_i32_0 = arith.constant 0 : i32
    %c0_i32_1 = arith.constant 0 : i32
    return %c0_i32, %c0_i32_0 : i32, i32
  }
  func.func @transform_5(%arg0: i32) -> (i32, i32) {
    %c0_i32 = arith.constant 0 : i32
    %c0_i32_0 = arith.constant 0 : i32
    %c0_i32_1 = arith.constant 0 : i32
    return %c0_i32, %c0_i32_0 : i32, i32
  }
  func.func @transform_6(%arg0: i32) -> (i32, i32) {
    %c0_i32 = arith.constant 0 : i32
    %c0_i32_0 = arith.constant 0 : i32
    %c0_i32_1 = arith.constant 0 : i32
    return %c0_i32, %c0_i32_0 : i32, i32
  }
  func.func @transform_7(%arg0: i32) -> (i32, i32) {
    %c0_i32 = arith.constant 0 : i32
    %c0_i32_0 = arith.constant 0 : i32
    %c0_i32_1 = arith.constant 0 : i32
    return %c0_i32, %c0_i32_0 : i32, i32
  }
  func.func @transform_8(%arg0: i32) -> (i32, i32) {
    %c0_i32 = arith.constant 0 : i32
    %c0_i32_0 = arith.constant 0 : i32
    %c0_i32_1 = arith.constant 0 : i32
    return %c0_i32, %c0_i32_0 : i32, i32
  }
  func.func @transform_9(%arg0: i32) -> (i32, i32, i32) {
    %c0_i32 = arith.constant 0 : i32
    %c0_i32_0 = arith.constant 0 : i32
    %c0_i32_1 = arith.constant 0 : i32
    return %arg0, %c0_i32, %c0_i32_0 : i32, i32, i32
  }
}

</mosaic_0001>

<llo_original>
// kernel: tpu_custom_call.1
$region0: #{tpu_custom_call.1}
  #allocation0 [shape = 'u32[]', space=smem, size = 0x4, offset = 0x4, fixed_abs, tag = 'smem constant byte address 0x4 - core index']
  #allocation1 [shape = 'u32[144,128]{1,0:T(1,128)}', space=vmem, size = 0x12000, scoped, tag = 'internal scratch']
  #allocation2 [shape = 'f32[4,512]{1,0:T(4,128)}', space=vmem, size = 0x2000, scoped, tag = 'scratch operand']
  %s0 = inlined_call_operand.vmem [shape: f32[7,256], index: 0, kind: input, shape index: {}]
  %s1 = inlined_call_operand.vmem [shape: f32[2,4,256], index: 1, kind: input, shape index: {}]
  %s2 = inlined_call_operand.vmem [shape: f32[4,49], index: 2, kind: input, shape index: {}]
  %s3 = inlined_call_operand.vmem [shape: bf16[32,4], index: 3, kind: input, shape index: {}]
  %s4 = inlined_call_operand.vmem [shape: f32[32,1], index: 4, kind: input, shape index: {}]
  %s5 = inlined_call_operand.vmem [shape: bf16[4,16], index: 5, kind: input, shape index: {}]
  %s6 = inlined_call_operand.vmem [shape: f32[4,1], index: 6, kind: input, shape index: {}]
  %s7 = inlined_call_operand.vmem [shape: f32[4,49], index: 7, kind: input, shape index: {}]
  %s8 = inlined_call_operand.vmem [shape: f32[4,1], index: 8, kind: input, shape index: {}]
  %s9 = inlined_call_operand.hbm [shape: f32[2,4,256], index: 9, kind: output, shape index: {}]
  %s10 = sld [smem:[#allocation0]]
  $region69: #{tpu_custom_call.1} parent=0
    _
  %s12 = ssub.s32 1, %s10
  %s13 = scalar_select 0, %s12, %s10
  $region1: #{tpu_custom_call.1} parent=0
    #allocation3 [shape = 'u8[8192]{0}', space=vmem, size = 0x2000, scoped, tag = 'output window, operand 0']
    #allocation4 [shape = 's32[2]{0}', space=sflag, size = 0x8, scoped, tag = 'scoped memory for tpu_custom_call.1']
    %14 = vsyncpa [#allocation4], 0
    %s15 = scalar_lea.sflag [#allocation4], 1
    %16 = vsyncpa %s15, 0
    loop: start=0, step=1, limit=4
    $region2: #{tpu_custom_call.1} parent=1 // loop_pre_header
      _
    $region3: #{tpu_custom_call.1} parent=1 // loop_header
      %s18 = sphi 0, %s22
      %p19 = scmp.ge.s32.totalorder %s18, 4
      %s26 = sphi 0, %s26
      %s28 = sphi 0, %s26
      %s29 = sphi 0, %s28
      %s43 = sphi 0, %s29
      %s49 = sphi 0, %s51
      %s52 = sphi 0, %s49
      %s53 = sphi 0, %s52
      %s69 = sphi 0, %s53
      %s73 = sphi 0, %s73
      %s75 = sphi 0, %s73
      %s76 = sphi 0, %s75
      %s90 = sphi 0, %s76
      %s94 = sphi 0, %s94
      %s96 = sphi 0, %s94
      %s97 = sphi 0, %s96
      %s111 = sphi 0, %s97
      %s115 = sphi 0, %s115
      %s117 = sphi 0, %s115
      %s118 = sphi 0, %s117
      %s132 = sphi 0, %s118
      %s136 = sphi 0, %s136
      %s138 = sphi 0, %s136
      %s139 = sphi 0, %s138
      %s153 = sphi 0, %s139
      %s157 = sphi 0, %s157
      %s159 = sphi 0, %s157
      %s160 = sphi 0, %s159
      %s174 = sphi 0, %s160
      %s178 = sphi 0, %s178
      %s180 = sphi 0, %s178
      %s181 = sphi 0, %s180
      %s195 = sphi 0, %s181
      %s199 = sphi 0, %s199
      %s201 = sphi 0, %s199
      %s202 = sphi 0, %s201
      %s216 = sphi 0, %s202
      %s222 = sphi 0, %s224
      %s225 = sphi 0, %s222
      %s226 = sphi 0, %s225
      %s242 = sphi 0, %s226
    $region4: #{tpu_custom_call.1} parent=1 // loop_header_branch
      %21 = sbr.rel (%p19) target = $region8
    $region5: #{tpu_custom_call.1} parent=1 // loop_body
      %s23 = ssub.s32 %s18, 1
      %s24 = ssub.s32 %s18, 2
      %s25 = sadd.s32 %s18, 1
      %s27 = sadd.s32 %s26, 1
      %p30 = scmp.eq.s32.totalorder %s18, 1
      %p31 = scmp.ne.s32.totalorder %s26, %s28
      %p32 = scmp.eq.s32.totalorder %s18, 0
      %p33 = por %p31, %p32
      %p34 = scmp.ne.s32.totalorder %s26, %s28
      %p35 = scmp.eq.s32.totalorder %s23, 1
      %p36 = por %p34, %p35
      %p37 = scmp.ne.s32.totalorder %s28, %s29
      %p38 = scmp.eq.s32.totalorder %s23, 0
      %p39 = por %p37, %p38
      %p40 = scmp.ne.s32.totalorder %s28, %s29
      %p41 = scmp.eq.s32.totalorder %s24, 1
      %p42 = por %p40, %p41
      %p44 = scmp.ne.s32.totalorder %s29, %s43
      %p45 = scmp.eq.s32.totalorder %s24, 0
      %p46 = por %p44, %p45
      %s47 = ssub.s32 %s18, %s25
      %p48 = scmp.eq.s32.totalorder %s47, 0
      %s50 = sadd.s32 %s49, 1
      %s51 = scalar_select %p48, %s49, %s50
      %p54 = pneg %p48
      %p55 = scmp.eq.s32.totalorder %s18, 1
      %p56 = por %p54, %p55
      %p57 = scmp.ne.s32.totalorder %s49, %s52
      %p58 = scmp.eq.s32.totalorder %s18, 0
      %p59 = por %p57, %p58
      %p60 = scmp.ne.s32.totalorder %s49, %s52
      %p61 = scmp.eq.s32.totalorder %s23, 1
      %p62 = por %p60, %p61
      %p63 = scmp.ne.s32.totalorder %s52, %s53
      %p64 = scmp.eq.s32.totalorder %s23, 0
      %p65 = por %p63, %p64
      %p66 = scmp.ne.s32.totalorder %s52, %s53
      %p67 = scmp.eq.s32.totalorder %s24, 1
      %p68 = por %p66, %p67
      %p70 = scmp.ne.s32.totalorder %s53, %s69
      %p71 = scmp.eq.s32.totalorder %s24, 0
      %p72 = por %p70, %p71
      %s74 = sadd.s32 %s73, 1
      %p77 = scmp.eq.s32.totalorder %s18, 1
      %p78 = scmp.ne.s32.totalorder %s73, %s75
      %p79 = scmp.eq.s32.totalorder %s18, 0
      %p80 = por %p78, %p79
      %p81 = scmp.ne.s32.totalorder %s73, %s75
      %p82 = scmp.eq.s32.totalorder %s23, 1
      %p83 = por %p81, %p82
      %p84 = scmp.ne.s32.totalorder %s75, %s76
      %p85 = scmp.eq.s32.totalorder %s23, 0
      %p86 = por %p84, %p85
      %p87 = scmp.ne.s32.totalorder %s75, %s76
      %p88 = scmp.eq.s32.totalorder %s24, 1
      %p89 = por %p87, %p88
      %p91 = scmp.ne.s32.totalorder %s76, %s90
      %p92 = scmp.eq.s32.totalorder %s24, 0
      %p93 = por %p91, %p92
      %s95 = sadd.s32 %s94, 1
      %p98 = scmp.eq.s32.totalorder %s18, 1
      %p99 = scmp.ne.s32.totalorder %s94, %s96
      %p100 = scmp.eq.s32.totalorder %s18, 0
      %p101 = por %p99, %p100
      %p102 = scmp.ne.s32.totalorder %s94, %s96
      %p103 = scmp.eq.s32.totalorder %s23, 1
      %p104 = por %p102, %p103
      %p105 = scmp.ne.s32.totalorder %s96, %s97
      %p106 = scmp.eq.s32.totalorder %s23, 0
      %p107 = por %p105, %p106
      %p108 = scmp.ne.s32.totalorder %s96, %s97
      %p109 = scmp.eq.s32.totalorder %s24, 1
      %p110 = por %p108, %p109
      %p112 = scmp.ne.s32.totalorder %s97, %s111
      %p113 = scmp.eq.s32.totalorder %s24, 0
      %p114 = por %p112, %p113
      %s116 = sadd.s32 %s115, 1
      %p119 = scmp.eq.s32.totalorder %s18, 1
      %p120 = scmp.ne.s32.totalorder %s115, %s117
      %p121 = scmp.eq.s32.totalorder %s18, 0
      %p122 = por %p120, %p121
      %p123 = scmp.ne.s32.totalorder %s115, %s117
      %p124 = scmp.eq.s32.totalorder %s23, 1
      %p125 = por %p123, %p124
      %p126 = scmp.ne.s32.totalorder %s117, %s118
      %p127 = scmp.eq.s32.totalorder %s23, 0
      %p128 = por %p126, %p127
      %p129 = scmp.ne.s32.totalorder %s117, %s118
      %p130 = scmp.eq.s32.totalorder %s24, 1
      %p131 = por %p129, %p130
      %p133 = scmp.ne.s32.totalorder %s118, %s132
      %p134 = scmp.eq.s32.totalorder %s24, 0
      %p135 = por %p133, %p134
      %s137 = sadd.s32 %s136, 1
      %p140 = scmp.eq.s32.totalorder %s18, 1
      %p141 = scmp.ne.s32.totalorder %s136, %s138
      %p142 = scmp.eq.s32.totalorder %s18, 0
      %p143 = por %p141, %p142
      %p144 = scmp.ne.s32.totalorder %s136, %s138
      %p145 = scmp.eq.s32.totalorder %s23, 1
      %p146 = por %p144, %p145
      %p147 = scmp.ne.s32.totalorder %s138, %s139
      %p148 = scmp.eq.s32.totalorder %s23, 0
      %p149 = por %p147, %p148
      %p150 = scmp.ne.s32.totalorder %s138, %s139
      %p151 = scmp.eq.s32.totalorder %s24, 1
      %p152 = por %p150, %p151
      %p154 = scmp.ne.s32.totalorder %s139, %s153
      %p155 = scmp.eq.s32.totalorder %s24, 0
      %p156 = por %p154, %p155
      %s158 = sadd.s32 %s157, 1
      %p161 = scmp.eq.s32.totalorder %s18, 1
      %p162 = scmp.ne.s32.totalorder %s157, %s159
      %p163 = scmp.eq.s32.totalorder %s18, 0
      %p164 = por %p162, %p163
      %p165 = scmp.ne.s32.totalorder %s157, %s159
      %p166 = scmp.eq.s32.totalorder %s23, 1
      %p167 = por %p165, %p166
      %p168 = scmp.ne.s32.totalorder %s159, %s160
      %p169 = scmp.eq.s32.totalorder %s23, 0
      %p170 = por %p168, %p169
      %p171 = scmp.ne.s32.totalorder %s159, %s160
      %p172 = scmp.eq.s32.totalorder %s24, 1
      %p173 = por %p171, %p172
      %p175 = scmp.ne.s32.totalorder %s160, %s174
      %p176 = scmp.eq.s32.totalorder %s24, 0
      %p177 = por %p175, %p176
      %s179 = sadd.s32 %s178, 1
      %p182 = scmp.eq.s32.totalorder %s18, 1
      %p183 = scmp.ne.s32.totalorder %s178, %s180
      %p184 = scmp.eq.s32.totalorder %s18, 0
      %p185 = por %p183, %p184
      %p186 = scmp.ne.s32.totalorder %s178, %s180
      %p187 = scmp.eq.s32.totalorder %s23, 1
      %p188 = por %p186, %p187
      %p189 = scmp.ne.s32.totalorder %s180, %s181
      %p190 = scmp.eq.s32.totalorder %s23, 0
      %p191 = por %p189, %p190
      %p192 = scmp.ne.s32.totalorder %s180, %s181
      %p193 = scmp.eq.s32.totalorder %s24, 1
      %p194 = por %p192, %p193
      %p196 = scmp.ne.s32.totalorder %s181, %s195
      %p197 = scmp.eq.s32.totalorder %s24, 0
      %p198 = por %p196, %p197
      %s200 = sadd.s32 %s199, 1
      %p203 = scmp.eq.s32.totalorder %s18, 1
      %p204 = scmp.ne.s32.totalorder %s199, %s201
      %p205 = scmp.eq.s32.totalorder %s18, 0
      %p206 = por %p204, %p205
      %p207 = scmp.ne.s32.totalorder %s199, %s201
      %p208 = scmp.eq.s32.totalorder %s23, 1
      %p209 = por %p207, %p208
      %p210 = scmp.ne.s32.totalorder %s201, %s202
      %p211 = scmp.eq.s32.totalorder %s23, 0
      %p212 = por %p210, %p211
      %p213 = scmp.ne.s32.totalorder %s201, %s202
      %p214 = scmp.eq.s32.totalorder %s24, 1
      %p215 = por %p213, %p214
      %p217 = scmp.ne.s32.totalorder %s202, %s216
      %p218 = scmp.eq.s32.totalorder %s24, 0
      %p219 = por %p217, %p218
      %s220 = ssub.s32 %s18, %s25
      %p221 = scmp.eq.s32.totalorder %s220, 0
      %s223 = sadd.s32 %s222, 1
      %s224 = scalar_select %p221, %s222, %s223
      %p227 = pneg %p221
      %p228 = scmp.eq.s32.totalorder %s18, 1
      %p229 = por %p227, %p228
      %p230 = scmp.ne.s32.totalorder %s222, %s225
      %p231 = scmp.eq.s32.totalorder %s18, 0
      %p232 = por %p230, %p231
      %p233 = scmp.ne.s32.totalorder %s222, %s225
      %p234 = scmp.eq.s32.totalorder %s23, 1
      %p235 = por %p233, %p234
      %p236 = scmp.ne.s32.totalorder %s225, %s226
      %p237 = scmp.eq.s32.totalorder %s23, 0
      %p238 = por %p236, %p237
      %p239 = scmp.ne.s32.totalorder %s225, %s226
      %p240 = scmp.eq.s32.totalorder %s24, 1
      %p241 = por %p239, %p240
      %p243 = scmp.ne.s32.totalorder %s226, %s242
      %p244 = scmp.eq.s32.totalorder %s24, 0
      %p245 = por %p243, %p244
      %p246 = scmp.le.s32.totalorder 1, %s18
      %p247 = scmp.lt.s32.totalorder %s18, 3
      %p248 = pnand %p246, %p247
      %p249 = pneg %p248
      // Predicated region
      $region9: #{tpu_custom_call.1} parent=5 // pred_check
        _
      $region10: #{tpu_custom_call.1} parent=5 // pred_check_branch
        %251 = sbr.rel (%p248) target = $region12
      $region11: #{tpu_custom_call.1} parent=5 // pred_region
        %s252 = ssub.s32 %s18, 1
        // Predicated region
        $region13: #{tpu_custom_call.1} parent=11 // pred_check
          %p253 = pneg %p39
        $region14: #{tpu_custom_call.1} parent=11 // pred_check_branch
          %255 = sbr.rel (%p253) target = $region16
        $region15: #{tpu_custom_call.1} parent=11 // pred_region
          _
        $region16: #{tpu_custom_call.1} parent=11 // pred_fallthru
          _
        // Predicated region
        $region17: #{tpu_custom_call.1} parent=11 // pred_check
          %p256 = pneg %p86
        $region18: #{tpu_custom_call.1} parent=11 // pred_check_branch
          %258 = sbr.rel (%p256) target = $region20
        $region19: #{tpu_custom_call.1} parent=11 // pred_region
          _
        $region20: #{tpu_custom_call.1} parent=11 // pred_fallthru
          _
        // Predicated region
        $region21: #{tpu_custom_call.1} parent=11 // pred_check
          %p259 = pneg %p107
        $region22: #{tpu_custom_call.1} parent=11 // pred_check_branch
          %261 = sbr.rel (%p259) target = $region24
        $region23: #{tpu_custom_call.1} parent=11 // pred_region
          _
        $region24: #{tpu_custom_call.1} parent=11 // pred_fallthru
          _
        // Predicated region
        $region25: #{tpu_custom_call.1} parent=11 // pred_check
          %p262 = pneg %p128
        $region26: #{tpu_custom_call.1} parent=11 // pred_check_branch
          %264 = sbr.rel (%p262) target = $region28
        $region27: #{tpu_custom_call.1} parent=11 // pred_region
          _
        $region28: #{tpu_custom_call.1} parent=11 // pred_fallthru
          _
        // Predicated region
        $region29: #{tpu_custom_call.1} parent=11 // pred_check
          %p265 = pneg %p149
        $region30: #{tpu_custom_call.1} parent=11 // pred_check_branch
          %267 = sbr.rel (%p265) target = $region32
        $region31: #{tpu_custom_call.1} parent=11 // pred_region
          _
        $region32: #{tpu_custom_call.1} parent=11 // pred_fallthru
          _
        // Predicated region
        $region33: #{tpu_custom_call.1} parent=11 // pred_check
          %p268 = pneg %p170
        $region34: #{tpu_custom_call.1} parent=11 // pred_check_branch
          %270 = sbr.rel (%p268) target = $region36
        $region35: #{tpu_custom_call.1} parent=11 // pred_region
          _
        $region36: #{tpu_custom_call.1} parent=11 // pred_fallthru
          _
        // Predicated region
        $region37: #{tpu_custom_call.1} parent=11 // pred_check
          %p271 = pneg %p191
        $region38: #{tpu_custom_call.1} parent=11 // pred_check_branch
          %273 = sbr.rel (%p271) target = $region40
        $region39: #{tpu_custom_call.1} parent=11 // pred_region
          _
        $region40: #{tpu_custom_call.1} parent=11 // pred_fallthru
          _
        // Predicated region
        $region41: #{tpu_custom_call.1} parent=11 // pred_check
          %p274 = pneg %p212
        $region42: #{tpu_custom_call.1} parent=11 // pred_check_branch
          %276 = sbr.rel (%p274) target = $region44
        $region43: #{tpu_custom_call.1} parent=11 // pred_region
          _
        $region44: #{tpu_custom_call.1} parent=11 // pred_fallthru
          _
      $region12: #{tpu_custom_call.1} parent=5 // pred_fallthru
        _
      %p277 = scmp.lt.s32.totalorder %s18, 2
      // Predicated region
      $region45: #{tpu_custom_call.1} parent=5 // pred_check
        %p278 = pneg %p277
      $region46: #{tpu_custom_call.1} parent=5 // pred_check_branch
        %280 = sbr.rel (%p278) target = $region48
      $region47: #{tpu_custom_call.1} parent=5 // pred_region
        // Predicated region
        $region49: #{tpu_custom_call.1} parent=47 // pred_check
          %p281 = pneg %p59
        $region50: #{tpu_custom_call.1} parent=47 // pred_check_branch
          %283 = sbr.rel (%p281) target = $region52
        $region51: #{tpu_custom_call.1} parent=47 // pred_region
          %p284 = scmp.lt.s32.totalorder %s18, 1
          %s285 = scalar_select %p284, %s18, 1
          %s286 = smul.addr %s285, 2
          %s287 = smul.addr %s286, 4
          %s288 = scalar_lea.vmem %s1, %s287
        $region52: #{tpu_custom_call.1} parent=47 // pred_fallthru
          _
      $region48: #{tpu_custom_call.1} parent=5 // pred_fallthru
        _
      %p289 = scmp.le.s32.totalorder 1, %s18
      %p290 = scmp.lt.s32.totalorder %s18, 3
      %p291 = pnand %p289, %p290
      %p292 = pneg %p291
      // Predicated region
      $region53: #{tpu_custom_call.1} parent=5 // pred_check
        _
      $region54: #{tpu_custom_call.1} parent=5 // pred_check_branch
        %294 = sbr.rel (%p291) target = $region56
      $region55: #{tpu_custom_call.1} parent=5 // pred_region
        %s295 = ssub.s32 %s18, 1
        %p296 = pneg %p39
        %p297 = pneg %p36
        %p298 = scmp.lt.s32.totalorder %s23, 1
        %s299 = scalar_select %p298, %s23, 1
        %s300 = smul.addr %s299, 2
        %s301 = smul.addr %s300, 4
        %s302 = scalar_lea.vmem %s1, %s301
        %p303 = pneg %p65
        %p304 = pneg %p62
        %p305 = pneg %p86
        %p306 = pneg %p83
        %p307 = pneg %p107
        %p308 = pneg %p104
        %p309 = pneg %p128
        %p310 = pneg %p125
        %p311 = pneg %p149
        %p312 = pneg %p146
        %p313 = pneg %p170
        %p314 = pneg %p167
        %p315 = pneg %p191
        %p316 = pneg %p188
        %p317 = pneg %p212
        %p318 = pneg %p209
        %p319 = pneg %p238
        %p320 = pneg %p235
        %s321 = sand.u32 %s225, 1
        %s322 = scalar_lea.sflag [#allocation4], %s321
        %s323 = sand.u32 %s225, 1
        %s324 = smul.addr %s323, 8
        %s325 = scalar_lea.vmem [#allocation3], %s324
        %p326 = scmp.lt.s32.totalorder %s23, 1
        %s327 = scalar_select %p326, %s23, 1
        %s328 = smul.addr %s327, 2
        %s329 = smul.addr %s328, 4
        %s330 = scalar_lea.vmem %s1, %s329
        %332 = vst [vmem:[#allocation2] sm:$0xf] 0.0
        %333 = vst [vmem:[#allocation2 + $0xc] sm:$0xf] 0.0
        %v334 = vld [vmem:[%s330] sm:$0xff]
        %335 = vst [vmem:[#allocation2 + $0x4] sm:$0xff] %v334
        %v336 = vld [vmem:[#allocation2] sm:$0xff]
        %v337 = vld [vmem:[#allocation2 + $0x8] sm:$0xf]
        %v338 = vld [vmem:[%s2] sm:$0xf]
        %340 = vset.pattern.permute.xlu0 0
        %341 = vperm.xlu0 %340, %v338
        %v342 = vpop.permute.xlu0 %341
        %v344 = vunpack.c.l.s4 839922192
        %v345 = vunpack.c.0.s8 %v344
        %v346 = vlaneseq
        %v347 = vshrl.u32 %v346, 7
        %v348 = vsub.s32 %v345, %v347
        %v349 = vrot.slane %v342, %v348
        %v351 = vmul.f32 %v336, %v349
        %v352 = vmul.f32 %v337, %v349
        %v353 = vadd.f32 %v351, 0.0
        %v354 = vadd.f32 %v352, 0.0
        %355 = vset.pattern.permute.xlu0 7
        %356 = vperm.xlu0 %355, %v338
        %v357 = vpop.permute.xlu0 %356
        %v359 = vunpack.c.l.s4 839922192
        %v360 = vunpack.c.0.s8 %v359
        %v361 = vlaneseq
        %v362 = vshrl.u32 %v361, 7
        %v363 = vsub.s32 %v360, %v362
        %v364 = vrot.slane %v357, %v363
        %v366 = vmul.f32 %v336, %v364
        %v367 = vmul.f32 %v337, %v364
        %370 = vrot.lane.b32.xlu0 %v366, 112
        %v371 = vpop.permute.xlu0 %370
        %372 = vrot.lane.b32.xlu0 %v367, 112
        %v373 = vpop.permute.xlu0 %372
        %v374 = vrot.slane %v371, 4
        %v375 = vrot.slane %v373, 4
        %vm376 = vcmask 1043456
        %v377 = vsel %vm376, %v374, %v375
        %vm378 = vcmask 916480
        %v379 = vsel %vm378, %v371, %v377
        %v382 = vadd.f32 %v353, %v379
        %v383 = vadd.f32 %v354, %v373
        %384 = vset.pattern.permute.xlu0 14
        %385 = vperm.xlu0 %384, %v338
        %v386 = vpop.permute.xlu0 %385
        %v388 = vunpack.c.l.s4 839922192
        %v389 = vunpack.c.0.s8 %v388
        %v390 = vlaneseq
        %v391 = vshrl.u32 %v390, 7
        %v392 = vsub.s32 %v389, %v391
        %v393 = vrot.slane %v386, %v392
        %v395 = vmul.f32 %v336, %v393
        %v396 = vmul.f32 %v337, %v393
        %399 = vrot.lane.b32.xlu0 %v395, 96
        %v400 = vpop.permute.xlu0 %399
        %401 = vrot.lane.b32.xlu0 %v396, 96
        %v402 = vpop.permute.xlu0 %401
        %v403 = vrot.slane %v400, 4
        %v404 = vrot.slane %v402, 4
        %v405 = vsel %vm376, %v403, %v404
        %vm406 = vcmask 785408
        %v407 = vsel %vm406, %v400, %v405
        %v410 = vadd.f32 %v382, %v407
        %v411 = vadd.f32 %v383, %v402
        %412 = vset.pattern.permute.xlu0 21
        %413 = vperm.xlu0 %412, %v338
        %v414 = vpop.permute.xlu0 %413
        %v416 = vunpack.c.l.s4 839922192
        %v417 = vunpack.c.0.s8 %v416
        %v418 = vlaneseq
        %v419 = vshrl.u32 %v418, 7
        %v420 = vsub.s32 %v417, %v419
        %v421 = vrot.slane %v414, %v420
        %v423 = vmul.f32 %v336, %v421
        %v424 = vmul.f32 %v337, %v421
        %427 = vrot.lane.b32.xlu0 %v423, 80
        %v428 = vpop.permute.xlu0 %427
        %429 = vrot.lane.b32.xlu0 %v424, 80
        %v430 = vpop.permute.xlu0 %429
        %v431 = vrot.slane %v428, 4
        %v432 = vrot.slane %v430, 4
        %v433 = vsel %vm376, %v431, %v432
        %vm434 = vcmask 654336
        %v435 = vsel %vm434, %v428, %v433
        %v438 = vadd.f32 %v410, %v435
        %v439 = vadd.f32 %v411, %v430
        %v440 = vld [vmem:[#allocation2 + $0x4] sm:$0xff]
        %v441 = vld [vmem:[#allocation2 + $0xc] sm:$0xf]
        %442 = vset.pattern.permute.xlu0 28
        %443 = vperm.xlu0 %442, %v338
        %v444 = vpop.permute.xlu0 %443
        %v446 = vunpack.c.l.s4 839922192
        %v447 = vunpack.c.0.s8 %v446
        %v448 = vlaneseq
        %v449 = vshrl.u32 %v448, 7
        %v450 = vsub.s32 %v447, %v449
        %v451 = vrot.slane %v444, %v450
        %v453 = vmul.f32 %v440, %v451
        %v454 = vmul.f32 %v441, %v451
        %457 = vrot.lane.b32.xlu0 %v453, 64
        %v458 = vpop.permute.xlu0 %457
        %459 = vrot.lane.b32.xlu0 %v454, 64
        %v460 = vpop.permute.xlu0 %459
        %v461 = vrot.slane %v458, 4
        %vm462 = vcmask 523264
        %v463 = vsel %vm462, %v461, %v458
        %v464 = vsel %vm462, %v461, %v460
        %v467 = vadd.f32 %v438, %v463
        %v468 = vadd.f32 %v439, %v464
        %469 = vset.pattern.permute.xlu0 35
        %470 = vperm.xlu0 %469, %v338
        %v471 = vpop.permute.xlu0 %470
        %v473 = vunpack.c.l.s4 839922192
        %v474 = vunpack.c.0.s8 %v473
        %v475 = vlaneseq
        %v476 = vshrl.u32 %v475, 7
        %v477 = vsub.s32 %v474, %v476
        %v478 = vrot.slane %v471, %v477
        %v480 = vmul.f32 %v440, %v478
        %v481 = vmul.f32 %v441, %v478
        %484 = vrot.lane.b32.xlu0 %v480, 48
        %v485 = vpop.permute.xlu0 %484
        %486 = vrot.lane.b32.xlu0 %v481, 48
        %v487 = vpop.permute.xlu0 %486
        %v488 = vrot.slane %v485, 4
        %vm489 = vcmask 392192
        %v490 = vsel %vm489, %v488, %v485
        %v491 = vsel %vm489, %v488, %v487
        %v494 = vadd.f32 %v467, %v490
        %v495 = vadd.f32 %v468, %v491
        %496 = vset.pattern.permute.xlu0 42
        %497 = vperm.xlu0 %496, %v338
        %v498 = vpop.permute.xlu0 %497
        %v500 = vunpack.c.l.s4 839922192
        %v501 = vunpack.c.0.s8 %v500
        %v502 = vlaneseq
        %v503 = vshrl.u32 %v502, 7
        %v504 = vsub.s32 %v501, %v503
        %v505 = vrot.slane %v498, %v504
        %v507 = vmul.f32 %v440, %v505
        %v508 = vmul.f32 %v441, %v505
        %511 = vrot.lane.b32.xlu0 %v507, 32
        %v512 = vpop.permute.xlu0 %511
        %513 = vrot.lane.b32.xlu0 %v508, 32
        %v514 = vpop.permute.xlu0 %513
        %v515 = vrot.slane %v512, 4
        %vm516 = vcmask 261120
        %v517 = vsel %vm516, %v515, %v512
        %v518 = vsel %vm516, %v515, %v514
        %v521 = vadd.f32 %v494, %v517
        %v522 = vadd.f32 %v495, %v518
        %v523 = vld [vmem:[%s0] ss:$8 sm:$0x3]
        %v525 = vlaneseq
        %v526 = vshrl.u32 %v525, 7
        %v527 = vsub.s32 0, %v526
        %v528 = vrot.slane %v523, %v527
        %v529 = vlaneseq
        %v530 = vshrl.u32 %v529, 7
        %v531 = vsub.s32 1, %v530
        %v532 = vrot.slane %v523, %v531
        %v533 = vcombine.low %v528, %v532
        %534 = vrot.lane.b32.xlu0 %v533, 77
        %v535 = vpop.permute.xlu0 %534
        %v536 = vrot.slane %v535, 4
        %vm537 = vcmask 629760
        %v538 = vsel %vm537, %v536, %v535
        %v541 = vmul.f32 %v521, %v538
        %v542 = vmul.f32 %v522, %v536
        %v543 = vadd.f32 %v541, 0.0
        %v544 = vadd.f32 %v542, 0.0
        %v545 = vld [vmem:[#allocation2] sm:$0xff]
        %v546 = vld [vmem:[#allocation2 + $0x8] sm:$0xf]
        %v547 = vld [vmem:[%s2] sm:$0xf]
        %549 = vset.pattern.permute.xlu0 1
        %550 = vperm.xlu0 %549, %v547
        %v551 = vpop.permute.xlu0 %550
        %v553 = vunpack.c.l.s4 839922192
        %v554 = vunpack.c.0.s8 %v553
        %v555 = vlaneseq
        %v556 = vshrl.u32 %v555, 7
        %v557 = vsub.s32 %v554, %v556
        %v558 = vrot.slane %v551, %v557
        %v560 = vmul.f32 %v545, %v558
        %v561 = vmul.f32 %v546, %v558
        %v562 = vadd.f32 %v560, 0.0
        %v563 = vadd.f32 %v561, 0.0
        %564 = vset.pattern.permute.xlu0 8
        %565 = vperm.xlu0 %564, %v547
        %v566 = vpop.permute.xlu0 %565
        %v568 = vunpack.c.l.s4 839922192
        %v569 = vunpack.c.0.s8 %v568
        %v570 = vlaneseq
        %v571 = vshrl.u32 %v570, 7
        %v572 = vsub.s32 %v569, %v571
        %v573 = vrot.slane %v566, %v572
        %v575 = vmul.f32 %v545, %v573
        %v576 = vmul.f32 %v546, %v573
        %579 = vrot.lane.b32.xlu0 %v575, 112
        %v580 = vpop.permute.xlu0 %579
        %581 = vrot.lane.b32.xlu0 %v576, 112
        %v582 = vpop.permute.xlu0 %581
        %v583 = vrot.slane %v580, 4
        %v584 = vrot.slane %v582, 4
        %v585 = vsel %vm376, %v583, %v584
        %v586 = vsel %vm378, %v580, %v585
        %v589 = vadd.f32 %v562, %v586
        %v590 = vadd.f32 %v563, %v582
        %591 = vset.pattern.permute.xlu0 15
        %592 = vperm.xlu0 %591, %v547
        %v593 = vpop.permute.xlu0 %592
        %v595 = vunpack.c.l.s4 839922192
        %v596 = vunpack.c.0.s8 %v595
        %v597 = vlaneseq
        %v598 = vshrl.u32 %v597, 7
        %v599 = vsub.s32 %v596, %v598
        %v600 = vrot.slane %v593, %v599
        %v602 = vmul.f32 %v545, %v600
        %v603 = vmul.f32 %v546, %v600
        %606 = vrot.lane.b32.xlu0 %v602, 96
        %v607 = vpop.permute.xlu0 %606
        %608 = vrot.lane.b32.xlu0 %v603, 96
        %v609 = vpop.permute.xlu0 %608
        %v610 = vrot.slane %v607, 4
        %v611 = vrot.slane %v609, 4
        %v612 = vsel %vm376, %v610, %v611
        %v613 = vsel %vm406, %v607, %v612
        %v616 = vadd.f32 %v589, %v613
        %v617 = vadd.f32 %v590, %v609
        %618 = vset.pattern.permute.xlu0 22
        %619 = vperm.xlu0 %618, %v547
        %v620 = vpop.permute.xlu0 %619
        %v622 = vunpack.c.l.s4 839922192
        %v623 = vunpack.c.0.s8 %v622
        %v624 = vlaneseq
        %v625 = vshrl.u32 %v624, 7
        %v626 = vsub.s32 %v623, %v625
        %v627 = vrot.slane %v620, %v626
        %v629 = vmul.f32 %v545, %v627
        %v630 = vmul.f32 %v546, %v627
        %633 = vrot.lane.b32.xlu0 %v629, 80
        %v634 = vpop.permute.xlu0 %633
        %635 = vrot.lane.b32.xlu0 %v630, 80
        %v636 = vpop.permute.xlu0 %635
        %v637 = vrot.slane %v634, 4
        %v638 = vrot.slane %v636, 4
        %v639 = vsel %vm376, %v637, %v638
        %v640 = vsel %vm434, %v634, %v639
        %v643 = vadd.f32 %v616, %v640
        %v644 = vadd.f32 %v617, %v636
        %v645 = vld [vmem:[#allocation2 + $0x4] sm:$0xff]
        %v646 = vld [vmem:[#allocation2 + $0xc] sm:$0xf]
        %647 = vset.pattern.permute.xlu0 29
        %648 = vperm.xlu0 %647, %v547
        %v649 = vpop.permute.xlu0 %648
        %v651 = vunpack.c.l.s4 839922192
        %v652 = vunpack.c.0.s8 %v651
        %v653 = vlaneseq
        %v654 = vshrl.u32 %v653, 7
        %v655 = vsub.s32 %v652, %v654
        %v656 = vrot.slane %v649, %v655
        %v658 = vmul.f32 %v645, %v656
        %v659 = vmul.f32 %v646, %v656
        %662 = vrot.lane.b32.xlu0 %v658, 64
        %v663 = vpop.permute.xlu0 %662
        %664 = vrot.lane.b32.xlu0 %v659, 64
        %v665 = vpop.permute.xlu0 %664
        %v666 = vrot.slane %v663, 4
        %v667 = vsel %vm462, %v666, %v663
        %v668 = vsel %vm462, %v666, %v665
        %v671 = vadd.f32 %v643, %v667
        %v672 = vadd.f32 %v644, %v668
        %673 = vset.pattern.permute.xlu0 36
        %674 = vperm.xlu0 %673, %v547
        %v675 = vpop.permute.xlu0 %674
        %v677 = vunpack.c.l.s4 839922192
        %v678 = vunpack.c.0.s8 %v677
        %v679 = vlaneseq
        %v680 = vshrl.u32 %v679, 7
        %v681 = vsub.s32 %v678, %v680
        %v682 = vrot.slane %v675, %v681
        %v684 = vmul.f32 %v645, %v682
        %v685 = vmul.f32 %v646, %v682
        %688 = vrot.lane.b32.xlu0 %v684, 48
        %v689 = vpop.permute.xlu0 %688
        %690 = vrot.lane.b32.xlu0 %v685, 48
        %v691 = vpop.permute.xlu0 %690
        %v692 = vrot.slane %v689, 4
        %v693 = vsel %vm489, %v692, %v689
        %v694 = vsel %vm489, %v692, %v691
        %v697 = vadd.f32 %v671, %v693
        %v698 = vadd.f32 %v672, %v694
        %699 = vset.pattern.permute.xlu0 43
        %700 = vperm.xlu0 %699, %v547
        %v701 = vpop.permute.xlu0 %700
        %v703 = vunpack.c.l.s4 839922192
        %v704 = vunpack.c.0.s8 %v703
        %v705 = vlaneseq
        %v706 = vshrl.u32 %v705, 7
        %v707 = vsub.s32 %v704, %v706
        %v708 = vrot.slane %v701, %v707
        %v710 = vmul.f32 %v645, %v708
        %v711 = vmul.f32 %v646, %v708
        %714 = vrot.lane.b32.xlu0 %v710, 32
        %v715 = vpop.permute.xlu0 %714
        %716 = vrot.lane.b32.xlu0 %v711, 32
        %v717 = vpop.permute.xlu0 %716
        %v718 = vrot.slane %v715, 4
        %v719 = vsel %vm516, %v718, %v715
        %v720 = vsel %vm516, %v718, %v717
        %v723 = vadd.f32 %v697, %v719
        %v724 = vadd.f32 %v698, %v720
        %s725 = scalar_lea.vmem %s0, 1
        %v726 = vld [vmem:[%s725] ss:$8 sm:$0x3]
        %v728 = vlaneseq
        %v729 = vshrl.u32 %v728, 7
        %v730 = vsub.s32 0, %v729
        %v731 = vrot.slane %v726, %v730
        %v732 = vlaneseq
        %v733 = vshrl.u32 %v732, 7
        %v734 = vsub.s32 1, %v733
        %v735 = vrot.slane %v726, %v734
        %v736 = vcombine.low %v731, %v735
        %737 = vrot.lane.b32.xlu0 %v736, 78
        %v738 = vpop.permute.xlu0 %737
        %v739 = vrot.slane %v738, 4
        %vm740 = vcmask 637952
        %v741 = vsel %vm740, %v739, %v738
        %v744 = vmul.f32 %v723, %v741
        %v745 = vmul.f32 %v724, %v739
        %748 = vrot.lane.b32.xlu0 %v744, 127
        %v749 = vpop.permute.xlu0 %748
        %750 = vrot.lane.b32.xlu0 %v745, 127
        %v751 = vpop.permute.xlu0 %750
        %v752 = vrot.slane %v749, 4
        %v753 = vrot.slane %v751, 4
        %v754 = vsel %vm376, %v752, %v753
        %vm755 = vcmask 1039360
        %v756 = vsel %vm755, %v749, %v754
        %v759 = vadd.f32 %v543, %v756
        %v760 = vadd.f32 %v544, %v751
        %v761 = vld [vmem:[#allocation2] sm:$0xff]
        %v762 = vld [vmem:[#allocation2 + $0x8] sm:$0xf]
        %v763 = vld [vmem:[%s2] sm:$0xf]
        %765 = vset.pattern.permute.xlu0 2
        %766 = vperm.xlu0 %765, %v763
        %v767 = vpop.permute.xlu0 %766
        %v769 = vunpack.c.l.s4 839922192
        %v770 = vunpack.c.0.s8 %v769
        %v771 = vlaneseq
        %v772 = vshrl.u32 %v771, 7
        %v773 = vsub.s32 %v770, %v772
        %v774 = vrot.slane %v767, %v773
        %v776 = vmul.f32 %v761, %v774
        %v777 = vmul.f32 %v762, %v774
        %v778 = vadd.f32 %v776, 0.0
        %v779 = vadd.f32 %v777, 0.0
        %780 = vset.pattern.permute.xlu0 9
        %781 = vperm.xlu0 %780, %v763
        %v782 = vpop.permute.xlu0 %781
        %v784 = vunpack.c.l.s4 839922192
        %v785 = vunpack.c.0.s8 %v784
        %v786 = vlaneseq
        %v787 = vshrl.u32 %v786, 7
        %v788 = vsub.s32 %v785, %v787
        %v789 = vrot.slane %v782, %v788
        %v791 = vmul.f32 %v761, %v789
        %v792 = vmul.f32 %v762, %v789
        %795 = vrot.lane.b32.xlu0 %v791, 112
        %v796 = vpop.permute.xlu0 %795
        %797 = vrot.lane.b32.xlu0 %v792, 112
        %v798 = vpop.permute.xlu0 %797
        %v799 = vrot.slane %v796, 4
        %v800 = vrot.slane %v798, 4
        %v801 = vsel %vm376, %v799, %v800
        %v802 = vsel %vm378, %v796, %v801
        %v805 = vadd.f32 %v778, %v802
        %v806 = vadd.f32 %v779, %v798
        %807 = vset.pattern.permute.xlu0 16
        %808 = vperm.xlu0 %807, %v763
        %v809 = vpop.permute.xlu0 %808
        %v811 = vunpack.c.l.s4 839922192
        %v812 = vunpack.c.0.s8 %v811
        %v813 = vlaneseq
        %v814 = vshrl.u32 %v813, 7
        %v815 = vsub.s32 %v812, %v814
        %v816 = vrot.slane %v809, %v815
        %v818 = vmul.f32 %v761, %v816
        %v819 = vmul.f32 %v762, %v816
        %822 = vrot.lane.b32.xlu0 %v818, 96
        %v823 = vpop.permute.xlu0 %822
        %824 = vrot.lane.b32.xlu0 %v819, 96
        %v825 = vpop.permute.xlu0 %824
        %v826 = vrot.slane %v823, 4
        %v827 = vrot.slane %v825, 4
        %v828 = vsel %vm376, %v826, %v827
        %v829 = vsel %vm406, %v823, %v828
        %v832 = vadd.f32 %v805, %v829
        %v833 = vadd.f32 %v806, %v825
        %834 = vset.pattern.permute.xlu0 23
        %835 = vperm.xlu0 %834, %v763
        %v836 = vpop.permute.xlu0 %835
        %v838 = vunpack.c.l.s4 839922192
        %v839 = vunpack.c.0.s8 %v838
        %v840 = vlaneseq
        %v841 = vshrl.u32 %v840, 7
        %v842 = vsub.s32 %v839, %v841
        %v843 = vrot.slane %v836, %v842
        %v845 = vmul.f32 %v761, %v843
        %v846 = vmul.f32 %v762, %v843
        %849 = vrot.lane.b32.xlu0 %v845, 80
        %v850 = vpop.permute.xlu0 %849
        %851 = vrot.lane.b32.xlu0 %v846, 80
        %v852 = vpop.permute.xlu0 %851
        %v853 = vrot.slane %v850, 4
        %v854 = vrot.slane %v852, 4
        %v855 = vsel %vm376, %v853, %v854
        %v856 = vsel %vm434, %v850, %v855
        %v859 = vadd.f32 %v832, %v856
        %v860 = vadd.f32 %v833, %v852
        %v861 = vld [vmem:[#allocation2 + $0x4] sm:$0xff]
        %v862 = vld [vmem:[#allocation2 + $0xc] sm:$0xf]
        %863 = vset.pattern.permute.xlu0 30
        %864 = vperm.xlu0 %863, %v763
        %v865 = vpop.permute.xlu0 %864
        %v867 = vunpack.c.l.s4 839922192
        %v868 = vunpack.c.0.s8 %v867
        %v869 = vlaneseq
        %v870 = vshrl.u32 %v869, 7
        %v871 = vsub.s32 %v868, %v870
        %v872 = vrot.slane %v865, %v871
        %v874 = vmul.f32 %v861, %v872
        %v875 = vmul.f32 %v862, %v872
        %878 = vrot.lane.b32.xlu0 %v874, 64
        %v879 = vpop.permute.xlu0 %878
        %880 = vrot.lane.b32.xlu0 %v875, 64
        %v881 = vpop.permute.xlu0 %880
        %v882 = vrot.slane %v879, 4
        %v883 = vsel %vm462, %v882, %v879
        %v884 = vsel %vm462, %v882, %v881
        %v887 = vadd.f32 %v859, %v883
        %v888 = vadd.f32 %v860, %v884
        %889 = vset.pattern.permute.xlu0 37
        %890 = vperm.xlu0 %889, %v763
        %v891 = vpop.permute.xlu0 %890
        %v893 = vunpack.c.l.s4 839922192
        %v894 = vunpack.c.0.s8 %v893
        %v895 = vlaneseq
        %v896 = vshrl.u32 %v895, 7
        %v897 = vsub.s32 %v894, %v896
        %v898 = vrot.slane %v891, %v897
        %v900 = vmul.f32 %v861, %v898
        %v901 = vmul.f32 %v862, %v898
        %904 = vrot.lane.b32.xlu0 %v900, 48
        %v905 = vpop.permute.xlu0 %904
        %906 = vrot.lane.b32.xlu0 %v901, 48
        %v907 = vpop.permute.xlu0 %906
        %v908 = vrot.slane %v905, 4
        %v909 = vsel %vm489, %v908, %v905
        %v910 = vsel %vm489, %v908, %v907
        %v913 = vadd.f32 %v887, %v909
        %v914 = vadd.f32 %v888, %v910
        %915 = vset.pattern.permute.xlu0 44
        %916 = vperm.xlu0 %915, %v763
        %v917 = vpop.permute.xlu0 %916
        %v919 = vunpack.c.l.s4 839922192
        %v920 = vunpack.c.0.s8 %v919
        %v921 = vlaneseq
        %v922 = vshrl.u32 %v921, 7
        %v923 = vsub.s32 %v920, %v922
        %v924 = vrot.slane %v917, %v923
        %v926 = vmul.f32 %v861, %v924
        %v927 = vmul.f32 %v862, %v924
        %930 = vrot.lane.b32.xlu0 %v926, 32
        %v931 = vpop.permute.xlu0 %930
        %932 = vrot.lane.b32.xlu0 %v927, 32
        %v933 = vpop.permute.xlu0 %932
        %v934 = vrot.slane %v931, 4
        %v935 = vsel %vm516, %v934, %v931
        %v936 = vsel %vm516, %v934, %v933
        %v939 = vadd.f32 %v913, %v935
        %v940 = vadd.f32 %v914, %v936
        %s941 = scalar_lea.vmem %s0, 2
        %v942 = vld [vmem:[%s941] ss:$8 sm:$0x3]
        %v944 = vlaneseq
        %v945 = vshrl.u32 %v944, 7
        %v946 = vsub.s32 0, %v945
        %v947 = vrot.slane %v942, %v946
        %v948 = vlaneseq
        %v949 = vshrl.u32 %v948, 7
        %v950 = vsub.s32 1, %v949
        %v951 = vrot.slane %v942, %v950
        %v952 = vcombine.low %v947, %v951
        %953 = vrot.lane.b32.xlu0 %v952, 79
        %v954 = vpop.permute.xlu0 %953
        %v955 = vrot.slane %v954, 4
        %vm956 = vcmask 646144
        %v957 = vsel %vm956, %v955, %v954
        %v960 = vmul.f32 %v939, %v957
        %v961 = vmul.f32 %v940, %v955
        %964 = vrot.lane.b32.xlu0 %v960, 126
        %v965 = vpop.permute.xlu0 %964
        %966 = vrot.lane.b32.xlu0 %v961, 126
        %v967 = vpop.permute.xlu0 %966
        %v968 = vrot.slane %v965, 4
        %v969 = vrot.slane %v967, 4
        %v970 = vsel %vm376, %v968, %v969
        %vm971 = vcmask 1031168
        %v972 = vsel %vm971, %v965, %v970
        %v975 = vadd.f32 %v759, %v972
        %v976 = vadd.f32 %v760, %v967
        %v977 = vld [vmem:[#allocation2] sm:$0xff]
        %v978 = vld [vmem:[#allocation2 + $0x8] sm:$0xf]
        %v979 = vld [vmem:[%s2] sm:$0xf]
        %981 = vset.pattern.permute.xlu0 3
        %982 = vperm.xlu0 %981, %v979
        %v983 = vpop.permute.xlu0 %982
        %v985 = vunpack.c.l.s4 839922192
        %v986 = vunpack.c.0.s8 %v985
        %v987 = vlaneseq
        %v988 = vshrl.u32 %v987, 7
        %v989 = vsub.s32 %v986, %v988
        %v990 = vrot.slane %v983, %v989
        %v992 = vmul.f32 %v977, %v990
        %v993 = vmul.f32 %v978, %v990
        %v994 = vadd.f32 %v992, 0.0
        %v995 = vadd.f32 %v993, 0.0
        %996 = vset.pattern.permute.xlu0 10
        %997 = vperm.xlu0 %996, %v979
        %v998 = vpop.permute.xlu0 %997
        %v1000 = vunpack.c.l.s4 839922192
        %v1001 = vunpack.c.0.s8 %v1000
        %v1002 = vlaneseq
        %v1003 = vshrl.u32 %v1002, 7
        %v1004 = vsub.s32 %v1001, %v1003
        %v1005 = vrot.slane %v998, %v1004
        %v1007 = vmul.f32 %v977, %v1005
        %v1008 = vmul.f32 %v978, %v1005
        %1011 = vrot.lane.b32.xlu0 %v1007, 112
        %v1012 = vpop.permute.xlu0 %1011
        %1013 = vrot.lane.b32.xlu0 %v1008, 112
        %v1014 = vpop.permute.xlu0 %1013
        %v1015 = vrot.slane %v1012, 4
        %v1016 = vrot.slane %v1014, 4
        %v1017 = vsel %vm376, %v1015, %v1016
        %v1018 = vsel %vm378, %v1012, %v1017
        %v1021 = vadd.f32 %v994, %v1018
        %v1022 = vadd.f32 %v995, %v1014
        %1023 = vset.pattern.permute.xlu0 17
        %1024 = vperm.xlu0 %1023, %v979
        %v1025 = vpop.permute.xlu0 %1024
        %v1027 = vunpack.c.l.s4 839922192
        %v1028 = vunpack.c.0.s8 %v1027
        %v1029 = vlaneseq
        %v1030 = vshrl.u32 %v1029, 7
        %v1031 = vsub.s32 %v1028, %v1030
        %v1032 = vrot.slane %v1025, %v1031
        %v1034 = vmul.f32 %v977, %v1032
        %v1035 = vmul.f32 %v978, %v1032
        %1038 = vrot.lane.b32.xlu0 %v1034, 96
        %v1039 = vpop.permute.xlu0 %1038
        %1040 = vrot.lane.b32.xlu0 %v1035, 96
        %v1041 = vpop.permute.xlu0 %1040
        %v1042 = vrot.slane %v1039, 4
        %v1043 = vrot.slane %v1041, 4
        %v1044 = vsel %vm376, %v1042, %v1043
        %v1045 = vsel %vm406, %v1039, %v1044
        %v1048 = vadd.f32 %v1021, %v1045
        %v1049 = vadd.f32 %v1022, %v1041
        %v1050 = vld [vmem:[#allocation2 + $0x4] sm:$0xff]
        %1051 = vset.pattern.permute.xlu0 24
        %1052 = vperm.xlu0 %1051, %v979
        %v1053 = vpop.permute.xlu0 %1052
        %v1055 = vunpack.c.l.s4 839922192
        %v1056 = vunpack.c.0.s8 %v1055
        %v1057 = vlaneseq
        %v1058 = vshrl.u32 %v1057, 7
        %v1059 = vsub.s32 %v1056, %v1058
        %v1060 = vrot.slane %v1053, %v1059
        %v1062 = vmul.f32 %v1050, %v1060
        %1064 = vrot.lane.b32.xlu0 %v1062, 80
        %v1065 = vpop.permute.xlu0 %1064
        %v1066 = vrot.slane %v1065, 4
        %v1067 = vsel %vm434, %v1066, %v1065
        %v1070 = vadd.f32 %v1048, %v1067
        %v1071 = vadd.f32 %v1049, %v1066
        %v1072 = vld [vmem:[#allocation2 + $0x4] sm:$0xff]
        %v1073 = vld [vmem:[#allocation2 + $0xc] sm:$0xf]
        %1074 = vset.pattern.permute.xlu0 31
        %1075 = vperm.xlu0 %1074, %v979
        %v1076 = vpop.permute.xlu0 %1075
        %v1078 = vunpack.c.l.s4 839922192
        %v1079 = vunpack.c.0.s8 %v1078
        %v1080 = vlaneseq
        %v1081 = vshrl.u32 %v1080, 7
        %v1082 = vsub.s32 %v1079, %v1081
        %v1083 = vrot.slane %v1076, %v1082
        %v1085 = vmul.f32 %v1072, %v1083
        %v1086 = vmul.f32 %v1073, %v1083
        %1089 = vrot.lane.b32.xlu0 %v1085, 64
        %v1090 = vpop.permute.xlu0 %1089
        %1091 = vrot.lane.b32.xlu0 %v1086, 64
        %v1092 = vpop.permute.xlu0 %1091
        %v1093 = vrot.slane %v1090, 4
        %v1094 = vsel %vm462, %v1093, %v1090
        %v1095 = vsel %vm462, %v1093, %v1092
        %v1098 = vadd.f32 %v1070, %v1094
        %v1099 = vadd.f32 %v1071, %v1095
        %1100 = vset.pattern.permute.xlu0 38
        %1101 = vperm.xlu0 %1100, %v979
        %v1102 = vpop.permute.xlu0 %1101
        %v1104 = vunpack.c.l.s4 839922192
        %v1105 = vunpack.c.0.s8 %v1104
        %v1106 = vlaneseq
        %v1107 = vshrl.u32 %v1106, 7
        %v1108 = vsub.s32 %v1105, %v1107
        %v1109 = vrot.slane %v1102, %v1108
        %v1111 = vmul.f32 %v1072, %v1109
        %v1112 = vmul.f32 %v1073, %v1109
        %1115 = vrot.lane.b32.xlu0 %v1111, 48
        %v1116 = vpop.permute.xlu0 %1115
        %1117 = vrot.lane.b32.xlu0 %v1112, 48
        %v1118 = vpop.permute.xlu0 %1117
        %v1119 = vrot.slane %v1116, 4
        %v1120 = vsel %vm489, %v1119, %v1116
        %v1121 = vsel %vm489, %v1119, %v1118
        %v1124 = vadd.f32 %v1098, %v1120
        %v1125 = vadd.f32 %v1099, %v1121
        %1126 = vset.pattern.permute.xlu0 45
        %1127 = vperm.xlu0 %1126, %v979
        %v1128 = vpop.permute.xlu0 %1127
        %v1130 = vunpack.c.l.s4 839922192
        %v1131 = vunpack.c.0.s8 %v1130
        %v1132 = vlaneseq
        %v1133 = vshrl.u32 %v1132, 7
        %v1134 = vsub.s32 %v1131, %v1133
        %v1135 = vrot.slane %v1128, %v1134
        %v1137 = vmul.f32 %v1072, %v1135
        %v1138 = vmul.f32 %v1073, %v1135
        %1141 = vrot.lane.b32.xlu0 %v1137, 32
        %v1142 = vpop.permute.xlu0 %1141
        %1143 = vrot.lane.b32.xlu0 %v1138, 32
        %v1144 = vpop.permute.xlu0 %1143
        %v1145 = vrot.slane %v1142, 4
        %v1146 = vsel %vm516, %v1145, %v1142
        %v1147 = vsel %vm516, %v1145, %v1144
        %v1150 = vadd.f32 %v1124, %v1146
        %v1151 = vadd.f32 %v1125, %v1147
        %1154 = vrot.lane.b32.xlu0 %v1150, 125
        %v1155 = vpop.permute.xlu0 %1154
        %1156 = vrot.lane.b32.xlu0 %v1151, 125
        %v1157 = vpop.permute.xlu0 %1156
        %v1158 = vrot.slane %v1155, 4
        %v1159 = vrot.slane %v1157, 4
        %v1160 = vsel %vm376, %v1158, %v1159
        %vm1161 = vcmask 1022976
        %v1162 = vsel %vm1161, %v1155, %v1160
        %v1165 = vadd.f32 %v975, %v1162
        %v1166 = vadd.f32 %v976, %v1157
        %1167 = vset.pattern.permute.xlu0 4
        %1168 = vperm.xlu0 %1167, %v979
        %v1169 = vpop.permute.xlu0 %1168
        %v1171 = vunpack.c.l.s4 839922192
        %v1172 = vunpack.c.0.s8 %v1171
        %v1173 = vlaneseq
        %v1174 = vshrl.u32 %v1173, 7
        %v1175 = vsub.s32 %v1172, %v1174
        %v1176 = vrot.slane %v1169, %v1175
        %v1178 = vmul.f32 %v977, %v1176
        %v1179 = vmul.f32 %v978, %v1176
        %v1180 = vadd.f32 %v1178, 0.0
        %v1181 = vadd.f32 %v1179, 0.0
        %1182 = vset.pattern.permute.xlu0 11
        %1183 = vperm.xlu0 %1182, %v979
        %v1184 = vpop.permute.xlu0 %1183
        %v1186 = vunpack.c.l.s4 839922192
        %v1187 = vunpack.c.0.s8 %v1186
        %v1188 = vlaneseq
        %v1189 = vshrl.u32 %v1188, 7
        %v1190 = vsub.s32 %v1187, %v1189
        %v1191 = vrot.slane %v1184, %v1190
        %v1193 = vmul.f32 %v977, %v1191
        %v1194 = vmul.f32 %v978, %v1191
        %1197 = vrot.lane.b32.xlu0 %v1193, 112
        %v1198 = vpop.permute.xlu0 %1197
        %1199 = vrot.lane.b32.xlu0 %v1194, 112
        %v1200 = vpop.permute.xlu0 %1199
        %v1201 = vrot.slane %v1198, 4
        %v1202 = vrot.slane %v1200, 4
        %v1203 = vsel %vm376, %v1201, %v1202
        %v1204 = vsel %vm378, %v1198, %v1203
        %v1207 = vadd.f32 %v1180, %v1204
        %v1208 = vadd.f32 %v1181, %v1200
        %1209 = vset.pattern.permute.xlu0 18
        %1210 = vperm.xlu0 %1209, %v979
        %v1211 = vpop.permute.xlu0 %1210
        %v1213 = vunpack.c.l.s4 839922192
        %v1214 = vunpack.c.0.s8 %v1213
        %v1215 = vlaneseq
        %v1216 = vshrl.u32 %v1215, 7
        %v1217 = vsub.s32 %v1214, %v1216
        %v1218 = vrot.slane %v1211, %v1217
        %v1220 = vmul.f32 %v977, %v1218
        %v1221 = vmul.f32 %v978, %v1218
        %1224 = vrot.lane.b32.xlu0 %v1220, 96
        %v1225 = vpop.permute.xlu0 %1224
        %1226 = vrot.lane.b32.xlu0 %v1221, 96
        %v1227 = vpop.permute.xlu0 %1226
        %v1228 = vrot.slane %v1225, 4
        %v1229 = vrot.slane %v1227, 4
        %v1230 = vsel %vm376, %v1228, %v1229
        %v1231 = vsel %vm406, %v1225, %v1230
        %v1234 = vadd.f32 %v1207, %v1231
        %v1235 = vadd.f32 %v1208, %v1227
        %1236 = vset.pattern.permute.xlu0 25
        %1237 = vperm.xlu0 %1236, %v979
        %v1238 = vpop.permute.xlu0 %1237
        %v1240 = vunpack.c.l.s4 839922192
        %v1241 = vunpack.c.0.s8 %v1240
        %v1242 = vlaneseq
        %v1243 = vshrl.u32 %v1242, 7
        %v1244 = vsub.s32 %v1241, %v1243
        %v1245 = vrot.slane %v1238, %v1244
        %v1247 = vmul.f32 %v1072, %v1245
        %v1248 = vmul.f32 %v1073, %v1245
        %1251 = vrot.lane.b32.xlu0 %v1247, 80
        %v1252 = vpop.permute.xlu0 %1251
        %1253 = vrot.lane.b32.xlu0 %v1248, 80
        %v1254 = vpop.permute.xlu0 %1253
        %v1255 = vrot.slane %v1252, 4
        %v1256 = vsel %vm434, %v1255, %v1252
        %v1257 = vsel %vm434, %v1255, %v1254
        %v1260 = vadd.f32 %v1234, %v1256
        %v1261 = vadd.f32 %v1235, %v1257
        %1262 = vset.pattern.permute.xlu0 32
        %1263 = vperm.xlu0 %1262, %v979
        %v1264 = vpop.permute.xlu0 %1263
        %v1266 = vunpack.c.l.s4 839922192
        %v1267 = vunpack.c.0.s8 %v1266
        %v1268 = vlaneseq
        %v1269 = vshrl.u32 %v1268, 7
        %v1270 = vsub.s32 %v1267, %v1269
        %v1271 = vrot.slane %v1264, %v1270
        %v1273 = vmul.f32 %v1072, %v1271
        %v1274 = vmul.f32 %v1073, %v1271
        %1277 = vrot.lane.b32.xlu0 %v1273, 64
        %v1278 = vpop.permute.xlu0 %1277
        %1279 = vrot.lane.b32.xlu0 %v1274, 64
        %v1280 = vpop.permute.xlu0 %1279
        %v1281 = vrot.slane %v1278, 4
        %v1282 = vsel %vm462, %v1281, %v1278
        %v1283 = vsel %vm462, %v1281, %v1280
        %v1286 = vadd.f32 %v1260, %v1282
        %v1287 = vadd.f32 %v1261, %v1283
        %1288 = vset.pattern.permute.xlu0 39
        %1289 = vperm.xlu0 %1288, %v979
        %v1290 = vpop.permute.xlu0 %1289
        %v1292 = vunpack.c.l.s4 839922192
        %v1293 = vunpack.c.0.s8 %v1292
        %v1294 = vlaneseq
        %v1295 = vshrl.u32 %v1294, 7
        %v1296 = vsub.s32 %v1293, %v1295
        %v1297 = vrot.slane %v1290, %v1296
        %v1299 = vmul.f32 %v1072, %v1297
        %v1300 = vmul.f32 %v1073, %v1297
        %1303 = vrot.lane.b32.xlu0 %v1299, 48
        %v1304 = vpop.permute.xlu0 %1303
        %1305 = vrot.lane.b32.xlu0 %v1300, 48
        %v1306 = vpop.permute.xlu0 %1305
        %v1307 = vrot.slane %v1304, 4
        %v1308 = vsel %vm489, %v1307, %v1304
        %v1309 = vsel %vm489, %v1307, %v1306
        %v1312 = vadd.f32 %v1286, %v1308
        %v1313 = vadd.f32 %v1287, %v1309
        %1314 = vset.pattern.permute.xlu0 46
        %1315 = vperm.xlu0 %1314, %v979
        %v1316 = vpop.permute.xlu0 %1315
        %v1318 = vunpack.c.l.s4 839922192
        %v1319 = vunpack.c.0.s8 %v1318
        %v1320 = vlaneseq
        %v1321 = vshrl.u32 %v1320, 7
        %v1322 = vsub.s32 %v1319, %v1321
        %v1323 = vrot.slane %v1316, %v1322
        %v1325 = vmul.f32 %v1072, %v1323
        %v1326 = vmul.f32 %v1073, %v1323
        %1329 = vrot.lane.b32.xlu0 %v1325, 32
        %v1330 = vpop.permute.xlu0 %1329
        %1331 = vrot.lane.b32.xlu0 %v1326, 32
        %v1332 = vpop.permute.xlu0 %1331
        %v1333 = vrot.slane %v1330, 4
        %v1334 = vsel %vm516, %v1333, %v1330
        %v1335 = vsel %vm516, %v1333, %v1332
        %v1338 = vadd.f32 %v1312, %v1334
        %v1339 = vadd.f32 %v1313, %v1335
        %s1340 = scalar_lea.vmem %s0, 4
        %v1341 = vld [vmem:[%s1340] ss:$8 sm:$0x3]
        %v1343 = vlaneseq
        %v1344 = vshrl.u32 %v1343, 7
        %v1345 = vsub.s32 0, %v1344
        %v1346 = vrot.slane %v1341, %v1345
        %v1347 = vlaneseq
        %v1348 = vshrl.u32 %v1347, 7
        %v1349 = vsub.s32 1, %v1348
        %v1350 = vrot.slane %v1341, %v1349
        %v1351 = vcombine.low %v1346, %v1350
        %1352 = vrot.lane.b32.xlu0 %v1351, 81
        %v1353 = vpop.permute.xlu0 %1352
        %v1354 = vrot.slane %v1353, 4
        %vm1355 = vcmask 662528
        %v1356 = vsel %vm1355, %v1354, %v1353
        %v1359 = vmul.f32 %v1338, %v1356
        %v1360 = vmul.f32 %v1339, %v1354
        %1363 = vrot.lane.b32.xlu0 %v1359, 124
        %v1364 = vpop.permute.xlu0 %1363
        %1365 = vrot.lane.b32.xlu0 %v1360, 124
        %v1366 = vpop.permute.xlu0 %1365
        %v1367 = vrot.slane %v1364, 4
        %v1368 = vrot.slane %v1366, 4
        %v1369 = vsel %vm376, %v1367, %v1368
        %vm1370 = vcmask 1014784
        %v1371 = vsel %vm1370, %v1364, %v1369
        %v1374 = vadd.f32 %v1165, %v1371
        %v1375 = vadd.f32 %v1166, %v1366
        %v1376 = vld [vmem:[#allocation2] sm:$0xff]
        %v1377 = vld [vmem:[#allocation2 + $0x8] sm:$0xf]
        %v1378 = vld [vmem:[%s2] sm:$0xf]
        %1380 = vset.pattern.permute.xlu0 5
        %1381 = vperm.xlu0 %1380, %v1378
        %v1382 = vpop.permute.xlu0 %1381
        %v1384 = vunpack.c.l.s4 839922192
        %v1385 = vunpack.c.0.s8 %v1384
        %v1386 = vlaneseq
        %v1387 = vshrl.u32 %v1386, 7
        %v1388 = vsub.s32 %v1385, %v1387
        %v1389 = vrot.slane %v1382, %v1388
        %v1391 = vmul.f32 %v1376, %v1389
        %v1392 = vmul.f32 %v1377, %v1389
        %v1393 = vadd.f32 %v1391, 0.0
        %v1394 = vadd.f32 %v1392, 0.0
        %1395 = vset.pattern.permute.xlu0 12
        %1396 = vperm.xlu0 %1395, %v1378
        %v1397 = vpop.permute.xlu0 %1396
        %v1399 = vunpack.c.l.s4 839922192
        %v1400 = vunpack.c.0.s8 %v1399
        %v1401 = vlaneseq
        %v1402 = vshrl.u32 %v1401, 7
        %v1403 = vsub.s32 %v1400, %v1402
        %v1404 = vrot.slane %v1397, %v1403
        %v1406 = vmul.f32 %v1376, %v1404
        %v1407 = vmul.f32 %v1377, %v1404
        %1410 = vrot.lane.b32.xlu0 %v1406, 112
        %v1411 = vpop.permute.xlu0 %1410
        %1412 = vrot.lane.b32.xlu0 %v1407, 112
        %v1413 = vpop.permute.xlu0 %1412
        %v1414 = vrot.slane %v1411, 4
        %v1415 = vrot.slane %v1413, 4
        %v1416 = vsel %vm376, %v1414, %v1415
        %v1417 = vsel %vm378, %v1411, %v1416
        %v1420 = vadd.f32 %v1393, %v1417
        %v1421 = vadd.f32 %v1394, %v1413
        %1422 = vset.pattern.permute.xlu0 19
        %1423 = vperm.xlu0 %1422, %v1378
        %v1424 = vpop.permute.xlu0 %1423
        %v1426 = vunpack.c.l.s4 839922192
        %v1427 = vunpack.c.0.s8 %v1426
        %v1428 = vlaneseq
        %v1429 = vshrl.u32 %v1428, 7
        %v1430 = vsub.s32 %v1427, %v1429
        %v1431 = vrot.slane %v1424, %v1430
        %v1433 = vmul.f32 %v1376, %v1431
        %v1434 = vmul.f32 %v1377, %v1431
        %1437 = vrot.lane.b32.xlu0 %v1433, 96
        %v1438 = vpop.permute.xlu0 %1437
        %1439 = vrot.lane.b32.xlu0 %v1434, 96
        %v1440 = vpop.permute.xlu0 %1439
        %v1441 = vrot.slane %v1438, 4
        %v1442 = vrot.slane %v1440, 4
        %v1443 = vsel %vm376, %v1441, %v1442
        %v1444 = vsel %vm406, %v1438, %v1443
        %v1447 = vadd.f32 %v1420, %v1444
        %v1448 = vadd.f32 %v1421, %v1440
        %v1449 = vld [vmem:[#allocation2 + $0x4] sm:$0xff]
        %v1450 = vld [vmem:[#allocation2 + $0xc] sm:$0xf]
        %1451 = vset.pattern.permute.xlu0 26
        %1452 = vperm.xlu0 %1451, %v1378
        %v1453 = vpop.permute.xlu0 %1452
        %v1455 = vunpack.c.l.s4 839922192
        %v1456 = vunpack.c.0.s8 %v1455
        %v1457 = vlaneseq
        %v1458 = vshrl.u32 %v1457, 7
        %v1459 = vsub.s32 %v1456, %v1458
        %v1460 = vrot.slane %v1453, %v1459
        %v1462 = vmul.f32 %v1449, %v1460
        %v1463 = vmul.f32 %v1450, %v1460
        %1466 = vrot.lane.b32.xlu0 %v1462, 80
        %v1467 = vpop.permute.xlu0 %1466
        %1468 = vrot.lane.b32.xlu0 %v1463, 80
        %v1469 = vpop.permute.xlu0 %1468
        %v1470 = vrot.slane %v1467, 4
        %v1471 = vsel %vm434, %v1470, %v1467
        %v1472 = vsel %vm434, %v1470, %v1469
        %v1475 = vadd.f32 %v1447, %v1471
        %v1476 = vadd.f32 %v1448, %v1472
        %1477 = vset.pattern.permute.xlu0 33
        %1478 = vperm.xlu0 %1477, %v1378
        %v1479 = vpop.permute.xlu0 %1478
        %v1481 = vunpack.c.l.s4 839922192
        %v1482 = vunpack.c.0.s8 %v1481
        %v1483 = vlaneseq
        %v1484 = vshrl.u32 %v1483, 7
        %v1485 = vsub.s32 %v1482, %v1484
        %v1486 = vrot.slane %v1479, %v1485
        %v1488 = vmul.f32 %v1449, %v1486
        %v1489 = vmul.f32 %v1450, %v1486
        %1492 = vrot.lane.b32.xlu0 %v1488, 64
        %v1493 = vpop.permute.xlu0 %1492
        %1494 = vrot.lane.b32.xlu0 %v1489, 64
        %v1495 = vpop.permute.xlu0 %1494
        %v1496 = vrot.slane %v1493, 4
        %v1497 = vsel %vm462, %v1496, %v1493
        %v1498 = vsel %vm462, %v1496, %v1495
        %v1501 = vadd.f32 %v1475, %v1497
        %v1502 = vadd.f32 %v1476, %v1498
        %1503 = vset.pattern.permute.xlu0 40
        %1504 = vperm.xlu0 %1503, %v1378
        %v1505 = vpop.permute.xlu0 %1504
        %v1507 = vunpack.c.l.s4 839922192
        %v1508 = vunpack.c.0.s8 %v1507
        %v1509 = vlaneseq
        %v1510 = vshrl.u32 %v1509, 7
        %v1511 = vsub.s32 %v1508, %v1510
        %v1512 = vrot.slane %v1505, %v1511
        %v1514 = vmul.f32 %v1449, %v1512
        %v1515 = vmul.f32 %v1450, %v1512
        %1518 = vrot.lane.b32.xlu0 %v1514, 48
        %v1519 = vpop.permute.xlu0 %1518
        %1520 = vrot.lane.b32.xlu0 %v1515, 48
        %v1521 = vpop.permute.xlu0 %1520
        %v1522 = vrot.slane %v1519, 4
        %v1523 = vsel %vm489, %v1522, %v1519
        %v1524 = vsel %vm489, %v1522, %v1521
        %v1527 = vadd.f32 %v1501, %v1523
        %v1528 = vadd.f32 %v1502, %v1524
        %1529 = vset.pattern.permute.xlu0 47
        %1530 = vperm.xlu0 %1529, %v1378
        %v1531 = vpop.permute.xlu0 %1530
        %v1533 = vunpack.c.l.s4 839922192
        %v1534 = vunpack.c.0.s8 %v1533
        %v1535 = vlaneseq
        %v1536 = vshrl.u32 %v1535, 7
        %v1537 = vsub.s32 %v1534, %v1536
        %v1538 = vrot.slane %v1531, %v1537
        %v1540 = vmul.f32 %v1449, %v1538
        %v1541 = vmul.f32 %v1450, %v1538
        %1544 = vrot.lane.b32.xlu0 %v1540, 32
        %v1545 = vpop.permute.xlu0 %1544
        %1546 = vrot.lane.b32.xlu0 %v1541, 32
        %v1547 = vpop.permute.xlu0 %1546
        %v1548 = vrot.slane %v1545, 4
        %v1549 = vsel %vm516, %v1548, %v1545
        %v1550 = vsel %vm516, %v1548, %v1547
        %v1553 = vadd.f32 %v1527, %v1549
        %v1554 = vadd.f32 %v1528, %v1550
        %s1555 = scalar_lea.vmem %s0, 5
        %v1556 = vld [vmem:[%s1555] ss:$8 sm:$0x3]
        %v1558 = vlaneseq
        %v1559 = vshrl.u32 %v1558, 7
        %v1560 = vsub.s32 0, %v1559
        %v1561 = vrot.slane %v1556, %v1560
        %v1562 = vlaneseq
        %v1563 = vshrl.u32 %v1562, 7
        %v1564 = vsub.s32 1, %v1563
        %v1565 = vrot.slane %v1556, %v1564
        %v1566 = vcombine.low %v1561, %v1565
        %1567 = vrot.lane.b32.xlu0 %v1566, 82
        %v1568 = vpop.permute.xlu0 %1567
        %v1569 = vrot.slane %v1568, 4
        %vm1570 = vcmask 670720
        %v1571 = vsel %vm1570, %v1569, %v1568
        %v1574 = vmul.f32 %v1553, %v1571
        %v1575 = vmul.f32 %v1554, %v1569
        %1578 = vrot.lane.b32.xlu0 %v1574, 123
        %v1579 = vpop.permute.xlu0 %1578
        %1580 = vrot.lane.b32.xlu0 %v1575, 123
        %v1581 = vpop.permute.xlu0 %1580
        %v1582 = vrot.slane %v1579, 4
        %v1583 = vrot.slane %v1581, 4
        %v1584 = vsel %vm376, %v1582, %v1583
        %vm1585 = vcmask 1006592
        %v1586 = vsel %vm1585, %v1579, %v1584
        %v1589 = vadd.f32 %v1374, %v1586
        %v1590 = vadd.f32 %v1375, %v1581
        %v1591 = vld [vmem:[#allocation2] sm:$0xff]
        %v1592 = vld [vmem:[#allocation2 + $0x8] sm:$0xf]
        %v1593 = vld [vmem:[%s2] sm:$0xf]
        %1595 = vset.pattern.permute.xlu0 6
        %1596 = vperm.xlu0 %1595, %v1593
        %v1597 = vpop.permute.xlu0 %1596
        %v1599 = vunpack.c.l.s4 839922192
        %v1600 = vunpack.c.0.s8 %v1599
        %v1601 = vlaneseq
        %v1602 = vshrl.u32 %v1601, 7
        %v1603 = vsub.s32 %v1600, %v1602
        %v1604 = vrot.slane %v1597, %v1603
        %v1606 = vmul.f32 %v1591, %v1604
        %v1607 = vmul.f32 %v1592, %v1604
        %v1608 = vadd.f32 %v1606, 0.0
        %v1609 = vadd.f32 %v1607, 0.0
        %1610 = vset.pattern.permute.xlu0 13
        %1611 = vperm.xlu0 %1610, %v1593
        %v1612 = vpop.permute.xlu0 %1611
        %v1614 = vunpack.c.l.s4 839922192
        %v1615 = vunpack.c.0.s8 %v1614
        %v1616 = vlaneseq
        %v1617 = vshrl.u32 %v1616, 7
        %v1618 = vsub.s32 %v1615, %v1617
        %v1619 = vrot.slane %v1612, %v1618
        %v1621 = vmul.f32 %v1591, %v1619
        %v1622 = vmul.f32 %v1592, %v1619
        %1625 = vrot.lane.b32.xlu0 %v1621, 112
        %v1626 = vpop.permute.xlu0 %1625
        %1627 = vrot.lane.b32.xlu0 %v1622, 112
        %v1628 = vpop.permute.xlu0 %1627
        %v1629 = vrot.slane %v1626, 4
        %v1630 = vrot.slane %v1628, 4
        %v1631 = vsel %vm376, %v1629, %v1630
        %v1632 = vsel %vm378, %v1626, %v1631
        %v1635 = vadd.f32 %v1608, %v1632
        %v1636 = vadd.f32 %v1609, %v1628
        %1637 = vset.pattern.permute.xlu0 20
        %1638 = vperm.xlu0 %1637, %v1593
        %v1639 = vpop.permute.xlu0 %1638
        %v1641 = vunpack.c.l.s4 839922192
        %v1642 = vunpack.c.0.s8 %v1641
        %v1643 = vlaneseq
        %v1644 = vshrl.u32 %v1643, 7
        %v1645 = vsub.s32 %v1642, %v1644
        %v1646 = vrot.slane %v1639, %v1645
        %v1648 = vmul.f32 %v1591, %v1646
        %v1649 = vmul.f32 %v1592, %v1646
        %1652 = vrot.lane.b32.xlu0 %v1648, 96
        %v1653 = vpop.permute.xlu0 %1652
        %1654 = vrot.lane.b32.xlu0 %v1649, 96
        %v1655 = vpop.permute.xlu0 %1654
        %v1656 = vrot.slane %v1653, 4
        %v1657 = vrot.slane %v1655, 4
        %v1658 = vsel %vm376, %v1656, %v1657
        %v1659 = vsel %vm406, %v1653, %v1658
        %v1662 = vadd.f32 %v1635, %v1659
        %v1663 = vadd.f32 %v1636, %v1655
        %v1664 = vld [vmem:[#allocation2 + $0x4] sm:$0xff]
        %v1665 = vld [vmem:[#allocation2 + $0xc] sm:$0xf]
        %1666 = vset.pattern.permute.xlu0 27
        %1667 = vperm.xlu0 %1666, %v1593
        %v1668 = vpop.permute.xlu0 %1667
        %v1670 = vunpack.c.l.s4 839922192
        %v1671 = vunpack.c.0.s8 %v1670
        %v1672 = vlaneseq
        %v1673 = vshrl.u32 %v1672, 7
        %v1674 = vsub.s32 %v1671, %v1673
        %v1675 = vrot.slane %v1668, %v1674
        %v1677 = vmul.f32 %v1664, %v1675
        %v1678 = vmul.f32 %v1665, %v1675
        %1681 = vrot.lane.b32.xlu0 %v1677, 80
        %v1682 = vpop.permute.xlu0 %1681
        %1683 = vrot.lane.b32.xlu0 %v1678, 80
        %v1684 = vpop.permute.xlu0 %1683
        %v1685 = vrot.slane %v1682, 4
        %v1686 = vsel %vm434, %v1685, %v1682
        %v1687 = vsel %vm434, %v1685, %v1684
        %v1690 = vadd.f32 %v1662, %v1686
        %v1691 = vadd.f32 %v1663, %v1687
        %1692 = vset.pattern.permute.xlu0 34
        %1693 = vperm.xlu0 %1692, %v1593
        %v1694 = vpop.permute.xlu0 %1693
        %v1696 = vunpack.c.l.s4 839922192
        %v1697 = vunpack.c.0.s8 %v1696
        %v1698 = vlaneseq
        %v1699 = vshrl.u32 %v1698, 7
        %v1700 = vsub.s32 %v1697, %v1699
        %v1701 = vrot.slane %v1694, %v1700
        %v1703 = vmul.f32 %v1664, %v1701
        %v1704 = vmul.f32 %v1665, %v1701
        %1707 = vrot.lane.b32.xlu0 %v1703, 64
        %v1708 = vpop.permute.xlu0 %1707
        %1709 = vrot.lane.b32.xlu0 %v1704, 64
        %v1710 = vpop.permute.xlu0 %1709
        %v1711 = vrot.slane %v1708, 4
        %v1712 = vsel %vm462, %v1711, %v1708
        %v1713 = vsel %vm462, %v1711, %v1710
        %v1716 = vadd.f32 %v1690, %v1712
        %v1717 = vadd.f32 %v1691, %v1713
        %1718 = vset.pattern.permute.xlu0 41
        %1719 = vperm.xlu0 %1718, %v1593
        %v1720 = vpop.permute.xlu0 %1719
        %v1722 = vunpack.c.l.s4 839922192
        %v1723 = vunpack.c.0.s8 %v1722
        %v1724 = vlaneseq
        %v1725 = vshrl.u32 %v1724, 7
        %v1726 = vsub.s32 %v1723, %v1725
        %v1727 = vrot.slane %v1720, %v1726
        %v1729 = vmul.f32 %v1664, %v1727
        %v1730 = vmul.f32 %v1665, %v1727
        %1733 = vrot.lane.b32.xlu0 %v1729, 48
        %v1734 = vpop.permute.xlu0 %1733
        %1735 = vrot.lane.b32.xlu0 %v1730, 48
        %v1736 = vpop.permute.xlu0 %1735
        %v1737 = vrot.slane %v1734, 4
        %v1738 = vsel %vm489, %v1737, %v1734
        %v1739 = vsel %vm489, %v1737, %v1736
        %v1742 = vadd.f32 %v1716, %v1738
        %v1743 = vadd.f32 %v1717, %v1739
        %1744 = vset.pattern.permute.xlu0 48
        %1745 = vperm.xlu0 %1744, %v1593
        %v1746 = vpop.permute.xlu0 %1745
        %v1748 = vunpack.c.l.s4 839922192
        %v1749 = vunpack.c.0.s8 %v1748
        %v1750 = vlaneseq
        %v1751 = vshrl.u32 %v1750, 7
        %v1752 = vsub.s32 %v1749, %v1751
        %v1753 = vrot.slane %v1746, %v1752
        %v1755 = vmul.f32 %v1664, %v1753
        %v1756 = vmul.f32 %v1665, %v1753
        %1759 = vrot.lane.b32.xlu0 %v1755, 32
        %v1760 = vpop.permute.xlu0 %1759
        %1761 = vrot.lane.b32.xlu0 %v1756, 32
        %v1762 = vpop.permute.xlu0 %1761
        %v1763 = vrot.slane %v1760, 4
        %v1764 = vsel %vm516, %v1763, %v1760
        %v1765 = vsel %vm516, %v1763, %v1762
        %v1768 = vadd.f32 %v1742, %v1764
        %v1769 = vadd.f32 %v1743, %v1765
        %s1770 = scalar_lea.vmem %s0, 6
        %v1771 = vld [vmem:[%s1770] ss:$8 sm:$0x3]
        %v1773 = vlaneseq
        %v1774 = vshrl.u32 %v1773, 7
        %v1775 = vsub.s32 0, %v1774
        %v1776 = vrot.slane %v1771, %v1775
        %v1777 = vlaneseq
        %v1778 = vshrl.u32 %v1777, 7
        %v1779 = vsub.s32 1, %v1778
        %v1780 = vrot.slane %v1771, %v1779
        %v1781 = vcombine.low %v1776, %v1780
        %1782 = vrot.lane.b32.xlu0 %v1781, 83
        %v1783 = vpop.permute.xlu0 %1782
        %v1784 = vrot.slane %v1783, 4
        %vm1785 = vcmask 678912
        %v1786 = vsel %vm1785, %v1784, %v1783
        %v1789 = vmul.f32 %v1768, %v1786
        %v1790 = vmul.f32 %v1769, %v1784
        %1793 = vrot.lane.b32.xlu0 %v1789, 122
        %v1794 = vpop.permute.xlu0 %1793
        %1795 = vrot.lane.b32.xlu0 %v1790, 122
        %v1796 = vpop.permute.xlu0 %1795
        %v1797 = vrot.slane %v1794, 4
        %v1798 = vrot.slane %v1796, 4
        %v1799 = vsel %vm376, %v1797, %v1798
        %vm1800 = vcmask 998400
        %v1801 = vsel %vm1800, %v1794, %v1799
        %v1804 = vadd.f32 %v1589, %v1801
        %v1805 = vadd.f32 %v1590, %v1796
        %v1806 = vld [vmem:[%s3] sm:$0xf]
        %v1807 = vld [vmem:[%s3 + $0x4] sm:$0xf]
        %v1808 = vld [vmem:[%s3 + $0x8] sm:$0xf]
        %v1809 = vld [vmem:[%s3 + $0xc] sm:$0xf]
        %v1811 = vcombine.high %v1804, %v1804
        %v1813 = vpack.c.bf16 %v1804, %v1804
        %v1814 = vpack.c.bf16 %v1811, %v1811
        %v1815 = vpack.c.bf16 %v1805, %v1805
        %v1816 = vld [vmem:[%s4] sm:$0xff]
        %v1817 = vld [vmem:[%s4 + $0x8] sm:$0xff]
        %v1818 = vld [vmem:[%s4 + $0x10] sm:$0xff]
        %v1819 = vld [vmem:[%s4 + $0x18] sm:$0xff]
        %1821 = vset.pattern.permute.xlu0 0
        %1822 = vperm.xlu0 %1821, %v1816
        %v1823 = vpop.permute.xlu0 %1822
        %1826 = vset.pattern.permute.xlu0 0
        %1827 = vperm.xlu0 %1826, %v1817
        %v1828 = vpop.permute.xlu0 %1827
        %1831 = vset.pattern.permute.xlu0 0
        %1832 = vperm.xlu0 %1831, %v1818
        %v1833 = vpop.permute.xlu0 %1832
        %1836 = vset.pattern.permute.xlu0 0
        %1837 = vperm.xlu0 %1836, %v1819
        %v1838 = vpop.permute.xlu0 %1837
        %v1844 = vunpack.c.l.b16 %v1806
        %v1845 = vunpack.c.l.b16 %v1807
        %v1846 = vunpack.c.l.b16 %v1808
        %v1847 = vunpack.c.l.b16 %v1809
        %v1848 = vpack.c.b16 %v1845, %v1844
        %v1849 = vpack.c.b16 %v1847, %v1846
        %1853 = vrot.lane.b32.xlu0 %v1813, 51
        %v1854 = vpop.permute.xlu0 %1853
        %1855 = vrot.lane.b32.xlu0 %v1814, 51
        %v1856 = vpop.permute.xlu0 %1855
        %1857 = vrot.lane.b32.xlu0 %v1815, 51
        %v1858 = vpop.permute.xlu0 %1857
        %vm1859 = vcmask 416768
        %v1860 = vsel %vm1859, %v1854, %v1856
        %v1861 = vsel %vm1859, %v1856, %v1858
        %vm1862 = vcmask 31744
        %v1864 = vsel %vm1862, %v1848, 0
        %v1867 = vsel %vm1862, %v1849, 0
        %vm1869 = vcmask 1041408
        %v1871 = vsel %vm1869, %v1860, 0
        %v1874 = vsel %vm1869, %v1861, 0
        %1876 = vmatprep.subr.bf16.mxu0 0
        %1877 = vmatpush1.bf16.msra.mxu0 0
        %1878 = vmatprep.subr.bf16.mxu0 0
        %1879 = vmatpush1.bf16.msra.mxu0 0
        %1880 = vmatprep.subr.bf16.mxu0 0
        %1881 = vmatpush1.bf16.msra.mxu0 0
        %1882 = vmatprep.subr.bf16.mxu0 0
        %1883 = vmatpush1.bf16.msra.mxu0 0
        %1884 = vmatprep.subr.bf16.mxu0 0
        %1885 = vmatpush1.bf16.msra.mxu0 0
        %1886 = vmatprep.subr.bf16.mxu0 0
        %1887 = vmatpush1.bf16.msra.mxu0 0
        %1888 = vmatprep.subr.bf16.mxu0 0
        %1889 = vmatpush1.bf16.msra.mxu0 0
        %1890 = vmatprep.subr.bf16.mxu0 %v1874
        %1891 = vmatpush1.bf16.msra.mxu0 %v1871
        %1892 = vmatprep.subr.bf16.mxu0 0
        %1893 = vmatpush2.bf16.msra.mxu0 0
        %1894 = vmatprep.subr.bf16.mxu0 0
        %1895 = vmatpush2.bf16.msra.mxu0 0
        %1896 = vmatprep.subr.bf16.mxu0 0
        %1897 = vmatpush2.bf16.msra.mxu0 0
        %1898 = vmatprep.subr.bf16.mxu0 0
        %1899 = vmatpush2.bf16.msra.mxu0 0
        %1900 = vmatprep.subr.bf16.mxu0 0
        %1901 = vmatpush2.bf16.msra.mxu0 0
        %1902 = vmatprep.subr.bf16.mxu0 0
        %1903 = vmatpush2.bf16.msra.mxu0 0
        %1904 = vmatprep.subr.bf16.mxu0 0
        %1905 = vmatpush2.bf16.msra.mxu0 0
        %1906 = vmatprep.subr.bf16.mxu0 0
        %1907 = vmatpush2.bf16.msra.mxu0 0
        %1908 = vmatprep.mubr.bf16.mxu0 0
        %1909 = vmatmul.mubr.bf16.gmra.mxu0 %v1864
        %v1910 = vpop.f32.mrf.mxu0
        %v1911 = vadd.f32 %v1823, %v1910
        %v1912 = vpop.f32.mrf.mxu0
        %v1913 = vadd.f32 %v1823, %v1912
        %v1914 = vpop.f32.mrf.mxu0
        %v1915 = vadd.f32 %v1828, %v1914
        %v1916 = vpop.f32.mrf.mxu0
        %v1917 = vadd.f32 %v1828, %v1916
        %1918 = vmatprep.mubr.bf16.mxu0 0
        %1919 = vmatmul.mubr.bf16.gmra.mxu0 %v1867
        %v1920 = vpop.f32.mrf.mxu0
        %v1921 = vadd.f32 %v1833, %v1920
        %v1922 = vpop.f32.mrf.mxu0
        %v1923 = vadd.f32 %v1833, %v1922
        %v1924 = vpop.f32.mrf.mxu0
        %v1925 = vadd.f32 %v1838, %v1924
        %v1926 = vpop.f32.mrf.mxu0
        %v1927 = vadd.f32 %v1838, %v1926
        %1928 = vdwg.mxu0
        %v1929 = vmax.f32 %v1911, 0.0
        %v1930 = vmax.f32 %v1913, 0.0
        %v1931 = vmax.f32 %v1915, 0.0
        %v1932 = vmax.f32 %v1917, 0.0
        %v1933 = vmin.f32 %v1929, 6.0
        %v1934 = vmin.f32 %v1930, 6.0
        %v1935 = vmin.f32 %v1931, 6.0
        %v1936 = vmin.f32 %v1932, 6.0
        %v1937 = vmul.f32 %v1933, %v1921
        %v1938 = vmul.f32 %v1934, %v1923
        %v1939 = vmul.f32 %v1935, %v1925
        %v1940 = vmul.f32 %v1936, %v1927
        %v1941 = vld [vmem:[%s5] sm:$0x3]
        %v1942 = vpack.c.bf16 %v1939, %v1937
        %v1943 = vpack.c.bf16 %v1940, %v1938
        %v1944 = vld [vmem:[%s6] sm:$0xf]
        %1946 = vset.pattern.permute.xlu0 0
        %1947 = vperm.xlu0 %1946, %v1944
        %v1948 = vpop.permute.xlu0 %1947
        %vm1950 = vcmask 130048
        %v1952 = vsel %vm1950, %v1941, 0
        %1954 = vmatprep.subr.bf16.mxu0 0
        %1955 = vmatpush1.bf16.msra.mxu0 0
        %1956 = vmatprep.subr.bf16.mxu0 0
        %1957 = vmatpush1.bf16.msra.mxu0 0
        %1958 = vmatprep.subr.bf16.mxu0 0
        %1959 = vmatpush1.bf16.msra.mxu0 0
        %1960 = vmatprep.subr.bf16.mxu0 0
        %1961 = vmatpush1.bf16.msra.mxu0 0
        %1962 = vmatprep.subr.bf16.mxu0 0
        %1963 = vmatpush1.bf16.msra.mxu0 0
        %1964 = vmatprep.subr.bf16.mxu0 0
        %1965 = vmatpush1.bf16.msra.mxu0 0
        %1966 = vmatprep.subr.bf16.mxu0 0
        %1967 = vmatpush1.bf16.msra.mxu0 0
        %1968 = vmatprep.subr.bf16.mxu0 %v1943
        %1969 = vmatpush1.bf16.msra.mxu0 %v1942
        %1970 = vmatprep.subr.bf16.mxu0 0
        %1971 = vmatpush2.bf16.msra.mxu0 0
        %1972 = vmatprep.subr.bf16.mxu0 0
        %1973 = vmatpush2.bf16.msra.mxu0 0
        %1974 = vmatprep.subr.bf16.mxu0 0
        %1975 = vmatpush2.bf16.msra.mxu0 0
        %1976 = vmatprep.subr.bf16.mxu0 0
        %1977 = vmatpush2.bf16.msra.mxu0 0
        %1978 = vmatprep.subr.bf16.mxu0 0
        %1979 = vmatpush2.bf16.msra.mxu0 0
        %1980 = vmatprep.subr.bf16.mxu0 0
        %1981 = vmatpush2.bf16.msra.mxu0 0
        %1982 = vmatprep.subr.bf16.mxu0 0
        %1983 = vmatpush2.bf16.msra.mxu0 0
        %1984 = vmatprep.subr.bf16.mxu0 0
        %1985 = vmatpush2.bf16.msra.mxu0 0
        %1986 = vmatprep.mubr.bf16.mxu0 0
        %1987 = vmatmul.mubr.bf16.gmra.mxu0 %v1952
        %v1988 = vpop.f32.mrf.mxu0
        %v1989 = vadd.f32 %v1948, %v1988
        %v1990 = vpop.f32.mrf.mxu0
        %v1991 = vadd.f32 %v1948, %v1990
        %v1992 = vpop.f32.mrf.mxu0
        %v1993 = vpop.f32.mrf.mxu0
        %1994 = vdwg.mxu0
        %v1997 = vcombine.low %v1989, %v1991
        %1999 = vst [vmem:[#allocation2 + $0x4] sm:$0xff] %v1997
        %v2000 = vld [vmem:[#allocation2] sm:$0xff]
        %v2001 = vld [vmem:[#allocation2 + $0x8] sm:$0xf]
        %v2002 = vld [vmem:[%s7] sm:$0xf]
        %2004 = vset.pattern.permute.xlu0 0
        %2005 = vperm.xlu0 %2004, %v2002
        %v2006 = vpop.permute.xlu0 %2005
        %v2008 = vunpack.c.l.s4 839922192
        %v2009 = vunpack.c.0.s8 %v2008
        %v2010 = vlaneseq
        %v2011 = vshrl.u32 %v2010, 7
        %v2012 = vsub.s32 %v2009, %v2011
        %v2013 = vrot.slane %v2006, %v2012
        %v2015 = vmul.f32 %v2000, %v2013
        %v2016 = vmul.f32 %v2001, %v2013
        %v2017 = vadd.f32 %v2015, 0.0
        %v2018 = vadd.f32 %v2016, 0.0
        %2019 = vset.pattern.permute.xlu0 7
        %2020 = vperm.xlu0 %2019, %v2002
        %v2021 = vpop.permute.xlu0 %2020
        %v2023 = vunpack.c.l.s4 839922192
        %v2024 = vunpack.c.0.s8 %v2023
        %v2025 = vlaneseq
        %v2026 = vshrl.u32 %v2025, 7
        %v2027 = vsub.s32 %v2024, %v2026
        %v2028 = vrot.slane %v2021, %v2027
        %v2030 = vmul.f32 %v2000, %v2028
        %v2031 = vmul.f32 %v2001, %v2028
        %2034 = vrot.lane.b32.xlu0 %v2030, 112
        %v2035 = vpop.permute.xlu0 %2034
        %2036 = vrot.lane.b32.xlu0 %v2031, 112
        %v2037 = vpop.permute.xlu0 %2036
        %v2038 = vrot.slane %v2035, 4
        %v2039 = vrot.slane %v2037, 4
        %v2040 = vsel %vm376, %v2038, %v2039
        %v2041 = vsel %vm378, %v2035, %v2040
        %v2044 = vadd.f32 %v2017, %v2041
        %v2045 = vadd.f32 %v2018, %v2037
        %2046 = vset.pattern.permute.xlu0 14
        %2047 = vperm.xlu0 %2046, %v2002
        %v2048 = vpop.permute.xlu0 %2047
        %v2050 = vunpack.c.l.s4 839922192
        %v2051 = vunpack.c.0.s8 %v2050
        %v2052 = vlaneseq
        %v2053 = vshrl.u32 %v2052, 7
        %v2054 = vsub.s32 %v2051, %v2053
        %v2055 = vrot.slane %v2048, %v2054
        %v2057 = vmul.f32 %v2000, %v2055
        %v2058 = vmul.f32 %v2001, %v2055
        %2061 = vrot.lane.b32.xlu0 %v2057, 96
        %v2062 = vpop.permute.xlu0 %2061
        %2063 = vrot.lane.b32.xlu0 %v2058, 96
        %v2064 = vpop.permute.xlu0 %2063
        %v2065 = vrot.slane %v2062, 4
        %v2066 = vrot.slane %v2064, 4
        %v2067 = vsel %vm376, %v2065, %v2066
        %v2068 = vsel %vm406, %v2062, %v2067
        %v2071 = vadd.f32 %v2044, %v2068
        %v2072 = vadd.f32 %v2045, %v2064
        %2073 = vset.pattern.permute.xlu0 21
        %2074 = vperm.xlu0 %2073, %v2002
        %v2075 = vpop.permute.xlu0 %2074
        %v2077 = vunpack.c.l.s4 839922192
        %v2078 = vunpack.c.0.s8 %v2077
        %v2079 = vlaneseq
        %v2080 = vshrl.u32 %v2079, 7
        %v2081 = vsub.s32 %v2078, %v2080
        %v2082 = vrot.slane %v2075, %v2081
        %v2084 = vmul.f32 %v2000, %v2082
        %v2085 = vmul.f32 %v2001, %v2082
        %2088 = vrot.lane.b32.xlu0 %v2084, 80
        %v2089 = vpop.permute.xlu0 %2088
        %2090 = vrot.lane.b32.xlu0 %v2085, 80
        %v2091 = vpop.permute.xlu0 %2090
        %v2092 = vrot.slane %v2089, 4
        %v2093 = vrot.slane %v2091, 4
        %v2094 = vsel %vm376, %v2092, %v2093
        %v2095 = vsel %vm434, %v2089, %v2094
        %v2098 = vadd.f32 %v2071, %v2095
        %v2099 = vadd.f32 %v2072, %v2091
        %v2100 = vld [vmem:[#allocation2 + $0x4] sm:$0xff]
        %v2101 = vld [vmem:[#allocation2 + $0xc] sm:$0xf]
        %2102 = vset.pattern.permute.xlu0 28
        %2103 = vperm.xlu0 %2102, %v2002
        %v2104 = vpop.permute.xlu0 %2103
        %v2106 = vunpack.c.l.s4 839922192
        %v2107 = vunpack.c.0.s8 %v2106
        %v2108 = vlaneseq
        %v2109 = vshrl.u32 %v2108, 7
        %v2110 = vsub.s32 %v2107, %v2109
        %v2111 = vrot.slane %v2104, %v2110
        %v2113 = vmul.f32 %v2100, %v2111
        %v2114 = vmul.f32 %v2101, %v2111
        %2117 = vrot.lane.b32.xlu0 %v2113, 64
        %v2118 = vpop.permute.xlu0 %2117
        %2119 = vrot.lane.b32.xlu0 %v2114, 64
        %v2120 = vpop.permute.xlu0 %2119
        %v2121 = vrot.slane %v2118, 4
        %v2122 = vsel %vm462, %v2121, %v2118
        %v2123 = vsel %vm462, %v2121, %v2120
        %v2126 = vadd.f32 %v2098, %v2122
        %v2127 = vadd.f32 %v2099, %v2123
        %2128 = vset.pattern.permute.xlu0 35
        %2129 = vperm.xlu0 %2128, %v2002
        %v2130 = vpop.permute.xlu0 %2129
        %v2132 = vunpack.c.l.s4 839922192
        %v2133 = vunpack.c.0.s8 %v2132
        %v2134 = vlaneseq
        %v2135 = vshrl.u32 %v2134, 7
        %v2136 = vsub.s32 %v2133, %v2135
        %v2137 = vrot.slane %v2130, %v2136
        %v2139 = vmul.f32 %v2100, %v2137
        %v2140 = vmul.f32 %v2101, %v2137
        %2143 = vrot.lane.b32.xlu0 %v2139, 48
        %v2144 = vpop.permute.xlu0 %2143
        %2145 = vrot.lane.b32.xlu0 %v2140, 48
        %v2146 = vpop.permute.xlu0 %2145
        %v2147 = vrot.slane %v2144, 4
        %v2148 = vsel %vm489, %v2147, %v2144
        %v2149 = vsel %vm489, %v2147, %v2146
        %v2152 = vadd.f32 %v2126, %v2148
        %v2153 = vadd.f32 %v2127, %v2149
        %2154 = vset.pattern.permute.xlu0 42
        %2155 = vperm.xlu0 %2154, %v2002
        %v2156 = vpop.permute.xlu0 %2155
        %v2158 = vunpack.c.l.s4 839922192
        %v2159 = vunpack.c.0.s8 %v2158
        %v2160 = vlaneseq
        %v2161 = vshrl.u32 %v2160, 7
        %v2162 = vsub.s32 %v2159, %v2161
        %v2163 = vrot.slane %v2156, %v2162
        %v2165 = vmul.f32 %v2100, %v2163
        %v2166 = vmul.f32 %v2101, %v2163
        %2169 = vrot.lane.b32.xlu0 %v2165, 32
        %v2170 = vpop.permute.xlu0 %2169
        %2171 = vrot.lane.b32.xlu0 %v2166, 32
        %v2172 = vpop.permute.xlu0 %2171
        %v2173 = vrot.slane %v2170, 4
        %v2174 = vsel %vm516, %v2173, %v2170
        %v2175 = vsel %vm516, %v2173, %v2172
        %v2178 = vadd.f32 %v2152, %v2174
        %v2179 = vadd.f32 %v2153, %v2175
        %v2180 = vld [vmem:[%s0] ss:$8 sm:$0x3]
        %v2182 = vlaneseq
        %v2183 = vshrl.u32 %v2182, 7
        %v2184 = vsub.s32 0, %v2183
        %v2185 = vrot.slane %v2180, %v2184
        %v2186 = vlaneseq
        %v2187 = vshrl.u32 %v2186, 7
        %v2188 = vsub.s32 1, %v2187
        %v2189 = vrot.slane %v2180, %v2188
        %v2190 = vcombine.low %v2185, %v2189
        %2191 = vrot.lane.b32.xlu0 %v2190, 77
        %v2192 = vpop.permute.xlu0 %2191
        %v2193 = vrot.slane %v2192, 4
        %v2194 = vsel %vm537, %v2193, %v2192
        %v2197 = vmul.f32 %v2178, %v2194
        %v2198 = vmul.f32 %v2179, %v2193
        %v2199 = vadd.f32 %v2197, 0.0
        %v2200 = vadd.f32 %v2198, 0.0
        %v2201 = vld [vmem:[#allocation2] sm:$0xff]
        %v2202 = vld [vmem:[#allocation2 + $0x8] sm:$0xf]
        %v2203 = vld [vmem:[%s7] sm:$0xf]
        %2205 = vset.pattern.permute.xlu0 1
        %2206 = vperm.xlu0 %2205, %v2203
        %v2207 = vpop.permute.xlu0 %2206
        %v2209 = vunpack.c.l.s4 839922192
        %v2210 = vunpack.c.0.s8 %v2209
        %v2211 = vlaneseq
        %v2212 = vshrl.u32 %v2211, 7
        %v2213 = vsub.s32 %v2210, %v2212
        %v2214 = vrot.slane %v2207, %v2213
        %v2216 = vmul.f32 %v2201, %v2214
        %v2217 = vmul.f32 %v2202, %v2214
        %v2218 = vadd.f32 %v2216, 0.0
        %v2219 = vadd.f32 %v2217, 0.0
        %2220 = vset.pattern.permute.xlu0 8
        %2221 = vperm.xlu0 %2220, %v2203
        %v2222 = vpop.permute.xlu0 %2221
        %v2224 = vunpack.c.l.s4 839922192
        %v2225 = vunpack.c.0.s8 %v2224
        %v2226 = vlaneseq
        %v2227 = vshrl.u32 %v2226, 7
        %v2228 = vsub.s32 %v2225, %v2227
        %v2229 = vrot.slane %v2222, %v2228
        %v2231 = vmul.f32 %v2201, %v2229
        %v2232 = vmul.f32 %v2202, %v2229
        %2235 = vrot.lane.b32.xlu0 %v2231, 112
        %v2236 = vpop.permute.xlu0 %2235
        %2237 = vrot.lane.b32.xlu0 %v2232, 112
        %v2238 = vpop.permute.xlu0 %2237
        %v2239 = vrot.slane %v2236, 4
        %v2240 = vrot.slane %v2238, 4
        %v2241 = vsel %vm376, %v2239, %v2240
        %v2242 = vsel %vm378, %v2236, %v2241
        %v2245 = vadd.f32 %v2218, %v2242
        %v2246 = vadd.f32 %v2219, %v2238
        %2247 = vset.pattern.permute.xlu0 15
        %2248 = vperm.xlu0 %2247, %v2203
        %v2249 = vpop.permute.xlu0 %2248
        %v2251 = vunpack.c.l.s4 839922192
        %v2252 = vunpack.c.0.s8 %v2251
        %v2253 = vlaneseq
        %v2254 = vshrl.u32 %v2253, 7
        %v2255 = vsub.s32 %v2252, %v2254
        %v2256 = vrot.slane %v2249, %v2255
        %v2258 = vmul.f32 %v2201, %v2256
        %v2259 = vmul.f32 %v2202, %v2256
        %2262 = vrot.lane.b32.xlu0 %v2258, 96
        %v2263 = vpop.permute.xlu0 %2262
        %2264 = vrot.lane.b32.xlu0 %v2259, 96
        %v2265 = vpop.permute.xlu0 %2264
        %v2266 = vrot.slane %v2263, 4
        %v2267 = vrot.slane %v2265, 4
        %v2268 = vsel %vm376, %v2266, %v2267
        %v2269 = vsel %vm406, %v2263, %v2268
        %v2272 = vadd.f32 %v2245, %v2269
        %v2273 = vadd.f32 %v2246, %v2265
        %2274 = vset.pattern.permute.xlu0 22
        %2275 = vperm.xlu0 %2274, %v2203
        %v2276 = vpop.permute.xlu0 %2275
        %v2278 = vunpack.c.l.s4 839922192
        %v2279 = vunpack.c.0.s8 %v2278
        %v2280 = vlaneseq
        %v2281 = vshrl.u32 %v2280, 7
        %v2282 = vsub.s32 %v2279, %v2281
        %v2283 = vrot.slane %v2276, %v2282
        %v2285 = vmul.f32 %v2201, %v2283
        %v2286 = vmul.f32 %v2202, %v2283
        %2289 = vrot.lane.b32.xlu0 %v2285, 80
        %v2290 = vpop.permute.xlu0 %2289
        %2291 = vrot.lane.b32.xlu0 %v2286, 80
        %v2292 = vpop.permute.xlu0 %2291
        %v2293 = vrot.slane %v2290, 4
        %v2294 = vrot.slane %v2292, 4
        %v2295 = vsel %vm376, %v2293, %v2294
        %v2296 = vsel %vm434, %v2290, %v2295
        %v2299 = vadd.f32 %v2272, %v2296
        %v2300 = vadd.f32 %v2273, %v2292
        %v2301 = vld [vmem:[#allocation2 + $0x4] sm:$0xff]
        %v2302 = vld [vmem:[#allocation2 + $0xc] sm:$0xf]
        %2303 = vset.pattern.permute.xlu0 29
        %2304 = vperm.xlu0 %2303, %v2203
        %v2305 = vpop.permute.xlu0 %2304
        %v2307 = vunpack.c.l.s4 839922192
        %v2308 = vunpack.c.0.s8 %v2307
        %v2309 = vlaneseq
        %v2310 = vshrl.u32 %v2309, 7
        %v2311 = vsub.s32 %v2308, %v2310
        %v2312 = vrot.slane %v2305, %v2311
        %v2314 = vmul.f32 %v2301, %v2312
        %v2315 = vmul.f32 %v2302, %v2312
        %2318 = vrot.lane.b32.xlu0 %v2314, 64
        %v2319 = vpop.permute.xlu0 %2318
        %2320 = vrot.lane.b32.xlu0 %v2315, 64
        %v2321 = vpop.permute.xlu0 %2320
        %v2322 = vrot.slane %v2319, 4
        %v2323 = vsel %vm462, %v2322, %v2319
        %v2324 = vsel %vm462, %v2322, %v2321
        %v2327 = vadd.f32 %v2299, %v2323
        %v2328 = vadd.f32 %v2300, %v2324
        %2329 = vset.pattern.permute.xlu0 36
        %2330 = vperm.xlu0 %2329, %v2203
        %v2331 = vpop.permute.xlu0 %2330
        %v2333 = vunpack.c.l.s4 839922192
        %v2334 = vunpack.c.0.s8 %v2333
        %v2335 = vlaneseq
        %v2336 = vshrl.u32 %v2335, 7
        %v2337 = vsub.s32 %v2334, %v2336
        %v2338 = vrot.slane %v2331, %v2337
        %v2340 = vmul.f32 %v2301, %v2338
        %v2341 = vmul.f32 %v2302, %v2338
        %2344 = vrot.lane.b32.xlu0 %v2340, 48
        %v2345 = vpop.permute.xlu0 %2344
        %2346 = vrot.lane.b32.xlu0 %v2341, 48
        %v2347 = vpop.permute.xlu0 %2346
        %v2348 = vrot.slane %v2345, 4
        %v2349 = vsel %vm489, %v2348, %v2345
        %v2350 = vsel %vm489, %v2348, %v2347
        %v2353 = vadd.f32 %v2327, %v2349
        %v2354 = vadd.f32 %v2328, %v2350
        %2355 = vset.pattern.permute.xlu0 43
        %2356 = vperm.xlu0 %2355, %v2203
        %v2357 = vpop.permute.xlu0 %2356
        %v2359 = vunpack.c.l.s4 839922192
        %v2360 = vunpack.c.0.s8 %v2359
        %v2361 = vlaneseq
        %v2362 = vshrl.u32 %v2361, 7
        %v2363 = vsub.s32 %v2360, %v2362
        %v2364 = vrot.slane %v2357, %v2363
        %v2366 = vmul.f32 %v2301, %v2364
        %v2367 = vmul.f32 %v2302, %v2364
        %2370 = vrot.lane.b32.xlu0 %v2366, 32
        %v2371 = vpop.permute.xlu0 %2370
        %2372 = vrot.lane.b32.xlu0 %v2367, 32
        %v2373 = vpop.permute.xlu0 %2372
        %v2374 = vrot.slane %v2371, 4
        %v2375 = vsel %vm516, %v2374, %v2371
        %v2376 = vsel %vm516, %v2374, %v2373
        %v2379 = vadd.f32 %v2353, %v2375
        %v2380 = vadd.f32 %v2354, %v2376
        %v2381 = vld [vmem:[%s725] ss:$8 sm:$0x3]
        %v2383 = vlaneseq
        %v2384 = vshrl.u32 %v2383, 7
        %v2385 = vsub.s32 0, %v2384
        %v2386 = vrot.slane %v2381, %v2385
        %v2387 = vlaneseq
        %v2388 = vshrl.u32 %v2387, 7
        %v2389 = vsub.s32 1, %v2388
        %v2390 = vrot.slane %v2381, %v2389
        %v2391 = vcombine.low %v2386, %v2390
        %2392 = vrot.lane.b32.xlu0 %v2391, 78
        %v2393 = vpop.permute.xlu0 %2392
        %v2394 = vrot.slane %v2393, 4
        %v2395 = vsel %vm740, %v2394, %v2393
        %v2398 = vmul.f32 %v2379, %v2395
        %v2399 = vmul.f32 %v2380, %v2394
        %2402 = vrot.lane.b32.xlu0 %v2398, 127
        %v2403 = vpop.permute.xlu0 %2402
        %2404 = vrot.lane.b32.xlu0 %v2399, 127
        %v2405 = vpop.permute.xlu0 %2404
        %v2406 = vrot.slane %v2403, 4
        %v2407 = vrot.slane %v2405, 4
        %v2408 = vsel %vm376, %v2406, %v2407
        %v2409 = vsel %vm755, %v2403, %v2408
        %v2412 = vadd.f32 %v2199, %v2409
        %v2413 = vadd.f32 %v2200, %v2405
        %v2414 = vld [vmem:[#allocation2] sm:$0xff]
        %v2415 = vld [vmem:[#allocation2 + $0x8] sm:$0xf]
        %v2416 = vld [vmem:[%s7] sm:$0xf]
        %2418 = vset.pattern.permute.xlu0 2
        %2419 = vperm.xlu0 %2418, %v2416
        %v2420 = vpop.permute.xlu0 %2419
        %v2422 = vunpack.c.l.s4 839922192
        %v2423 = vunpack.c.0.s8 %v2422
        %v2424 = vlaneseq
        %v2425 = vshrl.u32 %v2424, 7
        %v2426 = vsub.s32 %v2423, %v2425
        %v2427 = vrot.slane %v2420, %v2426
        %v2429 = vmul.f32 %v2414, %v2427
        %v2430 = vmul.f32 %v2415, %v2427
        %v2431 = vadd.f32 %v2429, 0.0
        %v2432 = vadd.f32 %v2430, 0.0
        %2433 = vset.pattern.permute.xlu0 9
        %2434 = vperm.xlu0 %2433, %v2416
        %v2435 = vpop.permute.xlu0 %2434
        %v2437 = vunpack.c.l.s4 839922192
        %v2438 = vunpack.c.0.s8 %v2437
        %v2439 = vlaneseq
        %v2440 = vshrl.u32 %v2439, 7
        %v2441 = vsub.s32 %v2438, %v2440
        %v2442 = vrot.slane %v2435, %v2441
        %v2444 = vmul.f32 %v2414, %v2442
        %v2445 = vmul.f32 %v2415, %v2442
        %2448 = vrot.lane.b32.xlu0 %v2444, 112
        %v2449 = vpop.permute.xlu0 %2448
        %2450 = vrot.lane.b32.xlu0 %v2445, 112
        %v2451 = vpop.permute.xlu0 %2450
        %v2452 = vrot.slane %v2449, 4
        %v2453 = vrot.slane %v2451, 4
        %v2454 = vsel %vm376, %v2452, %v2453
        %v2455 = vsel %vm378, %v2449, %v2454
        %v2458 = vadd.f32 %v2431, %v2455
        %v2459 = vadd.f32 %v2432, %v2451
        %2460 = vset.pattern.permute.xlu0 16
        %2461 = vperm.xlu0 %2460, %v2416
        %v2462 = vpop.permute.xlu0 %2461
        %v2464 = vunpack.c.l.s4 839922192
        %v2465 = vunpack.c.0.s8 %v2464
        %v2466 = vlaneseq
        %v2467 = vshrl.u32 %v2466, 7
        %v2468 = vsub.s32 %v2465, %v2467
        %v2469 = vrot.slane %v2462, %v2468
        %v2471 = vmul.f32 %v2414, %v2469
        %v2472 = vmul.f32 %v2415, %v2469
        %2475 = vrot.lane.b32.xlu0 %v2471, 96
        %v2476 = vpop.permute.xlu0 %2475
        %2477 = vrot.lane.b32.xlu0 %v2472, 96
        %v2478 = vpop.permute.xlu0 %2477
        %v2479 = vrot.slane %v2476, 4
        %v2480 = vrot.slane %v2478, 4
        %v2481 = vsel %vm376, %v2479, %v2480
        %v2482 = vsel %vm406, %v2476, %v2481
        %v2485 = vadd.f32 %v2458, %v2482
        %v2486 = vadd.f32 %v2459, %v2478
        %2487 = vset.pattern.permute.xlu0 23
        %2488 = vperm.xlu0 %2487, %v2416
        %v2489 = vpop.permute.xlu0 %2488
        %v2491 = vunpack.c.l.s4 839922192
        %v2492 = vunpack.c.0.s8 %v2491
        %v2493 = vlaneseq
        %v2494 = vshrl.u32 %v2493, 7
        %v2495 = vsub.s32 %v2492, %v2494
        %v2496 = vrot.slane %v2489, %v2495
        %v2498 = vmul.f32 %v2414, %v2496
        %v2499 = vmul.f32 %v2415, %v2496
        %2502 = vrot.lane.b32.xlu0 %v2498, 80
        %v2503 = vpop.permute.xlu0 %2502
        %2504 = vrot.lane.b32.xlu0 %v2499, 80
        %v2505 = vpop.permute.xlu0 %2504
        %v2506 = vrot.slane %v2503, 4
        %v2507 = vrot.slane %v2505, 4
        %v2508 = vsel %vm376, %v2506, %v2507
        %v2509 = vsel %vm434, %v2503, %v2508
        %v2512 = vadd.f32 %v2485, %v2509
        %v2513 = vadd.f32 %v2486, %v2505
        %v2514 = vld [vmem:[#allocation2 + $0x4] sm:$0xff]
        %v2515 = vld [vmem:[#allocation2 + $0xc] sm:$0xf]
        %2516 = vset.pattern.permute.xlu0 30
        %2517 = vperm.xlu0 %2516, %v2416
        %v2518 = vpop.permute.xlu0 %2517
        %v2520 = vunpack.c.l.s4 839922192
        %v2521 = vunpack.c.0.s8 %v2520
        %v2522 = vlaneseq
        %v2523 = vshrl.u32 %v2522, 7
        %v2524 = vsub.s32 %v2521, %v2523
        %v2525 = vrot.slane %v2518, %v2524
        %v2527 = vmul.f32 %v2514, %v2525
        %v2528 = vmul.f32 %v2515, %v2525
        %2531 = vrot.lane.b32.xlu0 %v2527, 64
        %v2532 = vpop.permute.xlu0 %2531
        %2533 = vrot.lane.b32.xlu0 %v2528, 64
        %v2534 = vpop.permute.xlu0 %2533
        %v2535 = vrot.slane %v2532, 4
        %v2536 = vsel %vm462, %v2535, %v2532
        %v2537 = vsel %vm462, %v2535, %v2534
        %v2540 = vadd.f32 %v2512, %v2536
        %v2541 = vadd.f32 %v2513, %v2537
        %2542 = vset.pattern.permute.xlu0 37
        %2543 = vperm.xlu0 %2542, %v2416
        %v2544 = vpop.permute.xlu0 %2543
        %v2546 = vunpack.c.l.s4 839922192
        %v2547 = vunpack.c.0.s8 %v2546
        %v2548 = vlaneseq
        %v2549 = vshrl.u32 %v2548, 7
        %v2550 = vsub.s32 %v2547, %v2549
        %v2551 = vrot.slane %v2544, %v2550
        %v2553 = vmul.f32 %v2514, %v2551
        %v2554 = vmul.f32 %v2515, %v2551
        %2557 = vrot.lane.b32.xlu0 %v2553, 48
        %v2558 = vpop.permute.xlu0 %2557
        %2559 = vrot.lane.b32.xlu0 %v2554, 48
        %v2560 = vpop.permute.xlu0 %2559
        %v2561 = vrot.slane %v2558, 4
        %v2562 = vsel %vm489, %v2561, %v2558
        %v2563 = vsel %vm489, %v2561, %v2560
        %v2566 = vadd.f32 %v2540, %v2562
        %v2567 = vadd.f32 %v2541, %v2563
        %2568 = vset.pattern.permute.xlu0 44
        %2569 = vperm.xlu0 %2568, %v2416
        %v2570 = vpop.permute.xlu0 %2569
        %v2572 = vunpack.c.l.s4 839922192
        %v2573 = vunpack.c.0.s8 %v2572
        %v2574 = vlaneseq
        %v2575 = vshrl.u32 %v2574, 7
        %v2576 = vsub.s32 %v2573, %v2575
        %v2577 = vrot.slane %v2570, %v2576
        %v2579 = vmul.f32 %v2514, %v2577
        %v2580 = vmul.f32 %v2515, %v2577
        %2583 = vrot.lane.b32.xlu0 %v2579, 32
        %v2584 = vpop.permute.xlu0 %2583
        %2585 = vrot.lane.b32.xlu0 %v2580, 32
        %v2586 = vpop.permute.xlu0 %2585
        %v2587 = vrot.slane %v2584, 4
        %v2588 = vsel %vm516, %v2587, %v2584
        %v2589 = vsel %vm516, %v2587, %v2586
        %v2592 = vadd.f32 %v2566, %v2588
        %v2593 = vadd.f32 %v2567, %v2589
        %v2594 = vld [vmem:[%s941] ss:$8 sm:$0x3]
        %v2596 = vlaneseq
        %v2597 = vshrl.u32 %v2596, 7
        %v2598 = vsub.s32 0, %v2597
        %v2599 = vrot.slane %v2594, %v2598
        %v2600 = vlaneseq
        %v2601 = vshrl.u32 %v2600, 7
        %v2602 = vsub.s32 1, %v2601
        %v2603 = vrot.slane %v2594, %v2602
        %v2604 = vcombine.low %v2599, %v2603
        %2605 = vrot.lane.b32.xlu0 %v2604, 79
        %v2606 = vpop.permute.xlu0 %2605
        %v2607 = vrot.slane %v2606, 4
        %v2608 = vsel %vm956, %v2607, %v2606
        %v2611 = vmul.f32 %v2592, %v2608
        %v2612 = vmul.f32 %v2593, %v2607
        %2615 = vrot.lane.b32.xlu0 %v2611, 126
        %v2616 = vpop.permute.xlu0 %2615
        %2617 = vrot.lane.b32.xlu0 %v2612, 126
        %v2618 = vpop.permute.xlu0 %2617
        %v2619 = vrot.slane %v2616, 4
        %v2620 = vrot.slane %v2618, 4
        %v2621 = vsel %vm376, %v2619, %v2620
        %v2622 = vsel %vm971, %v2616, %v2621
        %v2625 = vadd.f32 %v2412, %v2622
        %v2626 = vadd.f32 %v2413, %v2618
        %v2627 = vld [vmem:[#allocation2] sm:$0xff]
        %v2628 = vld [vmem:[#allocation2 + $0x8] sm:$0xf]
        %v2629 = vld [vmem:[%s7] sm:$0xf]
        %2631 = vset.pattern.permute.xlu0 3
        %2632 = vperm.xlu0 %2631, %v2629
        %v2633 = vpop.permute.xlu0 %2632
        %v2635 = vunpack.c.l.s4 839922192
        %v2636 = vunpack.c.0.s8 %v2635
        %v2637 = vlaneseq
        %v2638 = vshrl.u32 %v2637, 7
        %v2639 = vsub.s32 %v2636, %v2638
        %v2640 = vrot.slane %v2633, %v2639
        %v2642 = vmul.f32 %v2627, %v2640
        %v2643 = vmul.f32 %v2628, %v2640
        %v2644 = vadd.f32 %v2642, 0.0
        %v2645 = vadd.f32 %v2643, 0.0
        %2646 = vset.pattern.permute.xlu0 10
        %2647 = vperm.xlu0 %2646, %v2629
        %v2648 = vpop.permute.xlu0 %2647
        %v2650 = vunpack.c.l.s4 839922192
        %v2651 = vunpack.c.0.s8 %v2650
        %v2652 = vlaneseq
        %v2653 = vshrl.u32 %v2652, 7
        %v2654 = vsub.s32 %v2651, %v2653
        %v2655 = vrot.slane %v2648, %v2654
        %v2657 = vmul.f32 %v2627, %v2655
        %v2658 = vmul.f32 %v2628, %v2655
        %2661 = vrot.lane.b32.xlu0 %v2657, 112
        %v2662 = vpop.permute.xlu0 %2661
        %2663 = vrot.lane.b32.xlu0 %v2658, 112
        %v2664 = vpop.permute.xlu0 %2663
        %v2665 = vrot.slane %v2662, 4
        %v2666 = vrot.slane %v2664, 4
        %v2667 = vsel %vm376, %v2665, %v2666
        %v2668 = vsel %vm378, %v2662, %v2667
        %v2671 = vadd.f32 %v2644, %v2668
        %v2672 = vadd.f32 %v2645, %v2664
        %2673 = vset.pattern.permute.xlu0 17
        %2674 = vperm.xlu0 %2673, %v2629
        %v2675 = vpop.permute.xlu0 %2674
        %v2677 = vunpack.c.l.s4 839922192
        %v2678 = vunpack.c.0.s8 %v2677
        %v2679 = vlaneseq
        %v2680 = vshrl.u32 %v2679, 7
        %v2681 = vsub.s32 %v2678, %v2680
        %v2682 = vrot.slane %v2675, %v2681
        %v2684 = vmul.f32 %v2627, %v2682
        %v2685 = vmul.f32 %v2628, %v2682
        %2688 = vrot.lane.b32.xlu0 %v2684, 96
        %v2689 = vpop.permute.xlu0 %2688
        %2690 = vrot.lane.b32.xlu0 %v2685, 96
        %v2691 = vpop.permute.xlu0 %2690
        %v2692 = vrot.slane %v2689, 4
        %v2693 = vrot.slane %v2691, 4
        %v2694 = vsel %vm376, %v2692, %v2693
        %v2695 = vsel %vm406, %v2689, %v2694
        %v2698 = vadd.f32 %v2671, %v2695
        %v2699 = vadd.f32 %v2672, %v2691
        %v2700 = vld [vmem:[#allocation2 + $0x4] sm:$0xff]
        %2701 = vset.pattern.permute.xlu0 24
        %2702 = vperm.xlu0 %2701, %v2629
        %v2703 = vpop.permute.xlu0 %2702
        %v2705 = vunpack.c.l.s4 839922192
        %v2706 = vunpack.c.0.s8 %v2705
        %v2707 = vlaneseq
        %v2708 = vshrl.u32 %v2707, 7
        %v2709 = vsub.s32 %v2706, %v2708
        %v2710 = vrot.slane %v2703, %v2709
        %v2712 = vmul.f32 %v2700, %v2710
        %2714 = vrot.lane.b32.xlu0 %v2712, 80
        %v2715 = vpop.permute.xlu0 %2714
        %v2716 = vrot.slane %v2715, 4
        %v2717 = vsel %vm434, %v2716, %v2715
        %v2720 = vadd.f32 %v2698, %v2717
        %v2721 = vadd.f32 %v2699, %v2716
        %v2722 = vld [vmem:[#allocation2 + $0x4] sm:$0xff]
        %v2723 = vld [vmem:[#allocation2 + $0xc] sm:$0xf]
        %2724 = vset.pattern.permute.xlu0 31
        %2725 = vperm.xlu0 %2724, %v2629
        %v2726 = vpop.permute.xlu0 %2725
        %v2728 = vunpack.c.l.s4 839922192
        %v2729 = vunpack.c.0.s8 %v2728
        %v2730 = vlaneseq
        %v2731 = vshrl.u32 %v2730, 7
        %v2732 = vsub.s32 %v2729, %v2731
        %v2733 = vrot.slane %v2726, %v2732
        %v2735 = vmul.f32 %v2722, %v2733
        %v2736 = vmul.f32 %v2723, %v2733
        %2739 = vrot.lane.b32.xlu0 %v2735, 64
        %v2740 = vpop.permute.xlu0 %2739
        %2741 = vrot.lane.b32.xlu0 %v2736, 64
        %v2742 = vpop.permute.xlu0 %2741
        %v2743 = vrot.slane %v2740, 4
        %v2744 = vsel %vm462, %v2743, %v2740
        %v2745 = vsel %vm462, %v2743, %v2742
        %v2748 = vadd.f32 %v2720, %v2744
        %v2749 = vadd.f32 %v2721, %v2745
        %2750 = vset.pattern.permute.xlu0 38
        %2751 = vperm.xlu0 %2750, %v2629
        %v2752 = vpop.permute.xlu0 %2751
        %v2754 = vunpack.c.l.s4 839922192
        %v2755 = vunpack.c.0.s8 %v2754
        %v2756 = vlaneseq
        %v2757 = vshrl.u32 %v2756, 7
        %v2758 = vsub.s32 %v2755, %v2757
        %v2759 = vrot.slane %v2752, %v2758
        %v2761 = vmul.f32 %v2722, %v2759
        %v2762 = vmul.f32 %v2723, %v2759
        %2765 = vrot.lane.b32.xlu0 %v2761, 48
        %v2766 = vpop.permute.xlu0 %2765
        %2767 = vrot.lane.b32.xlu0 %v2762, 48
        %v2768 = vpop.permute.xlu0 %2767
        %v2769 = vrot.slane %v2766, 4
        %v2770 = vsel %vm489, %v2769, %v2766
        %v2771 = vsel %vm489, %v2769, %v2768
        %v2774 = vadd.f32 %v2748, %v2770
        %v2775 = vadd.f32 %v2749, %v2771
        %2776 = vset.pattern.permute.xlu0 45
        %2777 = vperm.xlu0 %2776, %v2629
        %v2778 = vpop.permute.xlu0 %2777
        %v2780 = vunpack.c.l.s4 839922192
        %v2781 = vunpack.c.0.s8 %v2780
        %v2782 = vlaneseq
        %v2783 = vshrl.u32 %v2782, 7
        %v2784 = vsub.s32 %v2781, %v2783
        %v2785 = vrot.slane %v2778, %v2784
        %v2787 = vmul.f32 %v2722, %v2785
        %v2788 = vmul.f32 %v2723, %v2785
        %2791 = vrot.lane.b32.xlu0 %v2787, 32
        %v2792 = vpop.permute.xlu0 %2791
        %2793 = vrot.lane.b32.xlu0 %v2788, 32
        %v2794 = vpop.permute.xlu0 %2793
        %v2795 = vrot.slane %v2792, 4
        %v2796 = vsel %vm516, %v2795, %v2792
        %v2797 = vsel %vm516, %v2795, %v2794
        %v2800 = vadd.f32 %v2774, %v2796
        %v2801 = vadd.f32 %v2775, %v2797
        %2804 = vrot.lane.b32.xlu0 %v2800, 125
        %v2805 = vpop.permute.xlu0 %2804
        %2806 = vrot.lane.b32.xlu0 %v2801, 125
        %v2807 = vpop.permute.xlu0 %2806
        %v2808 = vrot.slane %v2805, 4
        %v2809 = vrot.slane %v2807, 4
        %v2810 = vsel %vm376, %v2808, %v2809
        %v2811 = vsel %vm1161, %v2805, %v2810
        %v2814 = vadd.f32 %v2625, %v2811
        %v2815 = vadd.f32 %v2626, %v2807
        %2816 = vset.pattern.permute.xlu0 4
        %2817 = vperm.xlu0 %2816, %v2629
        %v2818 = vpop.permute.xlu0 %2817
        %v2820 = vunpack.c.l.s4 839922192
        %v2821 = vunpack.c.0.s8 %v2820
        %v2822 = vlaneseq
        %v2823 = vshrl.u32 %v2822, 7
        %v2824 = vsub.s32 %v2821, %v2823
        %v2825 = vrot.slane %v2818, %v2824
        %v2827 = vmul.f32 %v2627, %v2825
        %v2828 = vmul.f32 %v2628, %v2825
        %v2829 = vadd.f32 %v2827, 0.0
        %v2830 = vadd.f32 %v2828, 0.0
        %2831 = vset.pattern.permute.xlu0 11
        %2832 = vperm.xlu0 %2831, %v2629
        %v2833 = vpop.permute.xlu0 %2832
        %v2835 = vunpack.c.l.s4 839922192
        %v2836 = vunpack.c.0.s8 %v2835
        %v2837 = vlaneseq
        %v2838 = vshrl.u32 %v2837, 7
        %v2839 = vsub.s32 %v2836, %v2838
        %v2840 = vrot.slane %v2833, %v2839
        %v2842 = vmul.f32 %v2627, %v2840
        %v2843 = vmul.f32 %v2628, %v2840
        %2846 = vrot.lane.b32.xlu0 %v2842, 112
        %v2847 = vpop.permute.xlu0 %2846
        %2848 = vrot.lane.b32.xlu0 %v2843, 112
        %v2849 = vpop.permute.xlu0 %2848
        %v2850 = vrot.slane %v2847, 4
        %v2851 = vrot.slane %v2849, 4
        %v2852 = vsel %vm376, %v2850, %v2851
        %v2853 = vsel %vm378, %v2847, %v2852
        %v2856 = vadd.f32 %v2829, %v2853
        %v2857 = vadd.f32 %v2830, %v2849
        %2858 = vset.pattern.permute.xlu0 18
        %2859 = vperm.xlu0 %2858, %v2629
        %v2860 = vpop.permute.xlu0 %2859
        %v2862 = vunpack.c.l.s4 839922192
        %v2863 = vunpack.c.0.s8 %v2862
        %v2864 = vlaneseq
        %v2865 = vshrl.u32 %v2864, 7
        %v2866 = vsub.s32 %v2863, %v2865
        %v2867 = vrot.slane %v2860, %v2866
        %v2869 = vmul.f32 %v2627, %v2867
        %v2870 = vmul.f32 %v2628, %v2867
        %2873 = vrot.lane.b32.xlu0 %v2869, 96
        %v2874 = vpop.permute.xlu0 %2873
        %2875 = vrot.lane.b32.xlu0 %v2870, 96
        %v2876 = vpop.permute.xlu0 %2875
        %v2877 = vrot.slane %v2874, 4
        %v2878 = vrot.slane %v2876, 4
        %v2879 = vsel %vm376, %v2877, %v2878
        %v2880 = vsel %vm406, %v2874, %v2879
        %v2883 = vadd.f32 %v2856, %v2880
        %v2884 = vadd.f32 %v2857, %v2876
        %2885 = vset.pattern.permute.xlu0 25
        %2886 = vperm.xlu0 %2885, %v2629
        %v2887 = vpop.permute.xlu0 %2886
        %v2889 = vunpack.c.l.s4 839922192
        %v2890 = vunpack.c.0.s8 %v2889
        %v2891 = vlaneseq
        %v2892 = vshrl.u32 %v2891, 7
        %v2893 = vsub.s32 %v2890, %v2892
        %v2894 = vrot.slane %v2887, %v2893
        %v2896 = vmul.f32 %v2722, %v2894
        %v2897 = vmul.f32 %v2723, %v2894
        %2900 = vrot.lane.b32.xlu0 %v2896, 80
        %v2901 = vpop.permute.xlu0 %2900
        %2902 = vrot.lane.b32.xlu0 %v2897, 80
        %v2903 = vpop.permute.xlu0 %2902
        %v2904 = vrot.slane %v2901, 4
        %v2905 = vsel %vm434, %v2904, %v2901
        %v2906 = vsel %vm434, %v2904, %v2903
        %v2909 = vadd.f32 %v2883, %v2905
        %v2910 = vadd.f32 %v2884, %v2906
        %2911 = vset.pattern.permute.xlu0 32
        %2912 = vperm.xlu0 %2911, %v2629
        %v2913 = vpop.permute.xlu0 %2912
        %v2915 = vunpack.c.l.s4 839922192
        %v2916 = vunpack.c.0.s8 %v2915
        %v2917 = vlaneseq
        %v2918 = vshrl.u32 %v2917, 7
        %v2919 = vsub.s32 %v2916, %v2918
        %v2920 = vrot.slane %v2913, %v2919
        %v2922 = vmul.f32 %v2722, %v2920
        %v2923 = vmul.f32 %v2723, %v2920
        %2926 = vrot.lane.b32.xlu0 %v2922, 64
        %v2927 = vpop.permute.xlu0 %2926
        %2928 = vrot.lane.b32.xlu0 %v2923, 64
        %v2929 = vpop.permute.xlu0 %2928
        %v2930 = vrot.slane %v2927, 4
        %v2931 = vsel %vm462, %v2930, %v2927
        %v2932 = vsel %vm462, %v2930, %v2929
        %v2935 = vadd.f32 %v2909, %v2931
        %v2936 = vadd.f32 %v2910, %v2932
        %2937 = vset.pattern.permute.xlu0 39
        %2938 = vperm.xlu0 %2937, %v2629
        %v2939 = vpop.permute.xlu0 %2938
        %v2941 = vunpack.c.l.s4 839922192
        %v2942 = vunpack.c.0.s8 %v2941
        %v2943 = vlaneseq
        %v2944 = vshrl.u32 %v2943, 7
        %v2945 = vsub.s32 %v2942, %v2944
        %v2946 = vrot.slane %v2939, %v2945
        %v2948 = vmul.f32 %v2722, %v2946
        %v2949 = vmul.f32 %v2723, %v2946
        %2952 = vrot.lane.b32.xlu0 %v2948, 48
        %v2953 = vpop.permute.xlu0 %2952
        %2954 = vrot.lane.b32.xlu0 %v2949, 48
        %v2955 = vpop.permute.xlu0 %2954
        %v2956 = vrot.slane %v2953, 4
        %v2957 = vsel %vm489, %v2956, %v2953
        %v2958 = vsel %vm489, %v2956, %v2955
        %v2961 = vadd.f32 %v2935, %v2957
        %v2962 = vadd.f32 %v2936, %v2958
        %2963 = vset.pattern.permute.xlu0 46
        %2964 = vperm.xlu0 %2963, %v2629
        %v2965 = vpop.permute.xlu0 %2964
        %v2967 = vunpack.c.l.s4 839922192
        %v2968 = vunpack.c.0.s8 %v2967
        %v2969 = vlaneseq
        %v2970 = vshrl.u32 %v2969, 7
        %v2971 = vsub.s32 %v2968, %v2970
        %v2972 = vrot.slane %v2965, %v2971
        %v2974 = vmul.f32 %v2722, %v2972
        %v2975 = vmul.f32 %v2723, %v2972
        %2978 = vrot.lane.b32.xlu0 %v2974, 32
        %v2979 = vpop.permute.xlu0 %2978
        %2980 = vrot.lane.b32.xlu0 %v2975, 32
        %v2981 = vpop.permute.xlu0 %2980
        %v2982 = vrot.slane %v2979, 4
        %v2983 = vsel %vm516, %v2982, %v2979
        %v2984 = vsel %vm516, %v2982, %v2981
        %v2987 = vadd.f32 %v2961, %v2983
        %v2988 = vadd.f32 %v2962, %v2984
        %v2989 = vld [vmem:[%s1340] ss:$8 sm:$0x3]
        %v2991 = vlaneseq
        %v2992 = vshrl.u32 %v2991, 7
        %v2993 = vsub.s32 0, %v2992
        %v2994 = vrot.slane %v2989, %v2993
        %v2995 = vlaneseq
        %v2996 = vshrl.u32 %v2995, 7
        %v2997 = vsub.s32 1, %v2996
        %v2998 = vrot.slane %v2989, %v2997
        %v2999 = vcombine.low %v2994, %v2998
        %3000 = vrot.lane.b32.xlu0 %v2999, 81
        %v3001 = vpop.permute.xlu0 %3000
        %v3002 = vrot.slane %v3001, 4
        %v3003 = vsel %vm1355, %v3002, %v3001
        %v3006 = vmul.f32 %v2987, %v3003
        %v3007 = vmul.f32 %v2988, %v3002
        %3010 = vrot.lane.b32.xlu0 %v3006, 124
        %v3011 = vpop.permute.xlu0 %3010
        %3012 = vrot.lane.b32.xlu0 %v3007, 124
        %v3013 = vpop.permute.xlu0 %3012
        %v3014 = vrot.slane %v3011, 4
        %v3015 = vrot.slane %v3013, 4
        %v3016 = vsel %vm376, %v3014, %v3015
        %v3017 = vsel %vm1370, %v3011, %v3016
        %v3020 = vadd.f32 %v2814, %v3017
        %v3021 = vadd.f32 %v2815, %v3013
        %v3022 = vld [vmem:[#allocation2] sm:$0xff]
        %v3023 = vld [vmem:[#allocation2 + $0x8] sm:$0xf]
        %v3024 = vld [vmem:[%s7] sm:$0xf]
        %3026 = vset.pattern.permute.xlu0 5
        %3027 = vperm.xlu0 %3026, %v3024
        %v3028 = vpop.permute.xlu0 %3027
        %v3030 = vunpack.c.l.s4 839922192
        %v3031 = vunpack.c.0.s8 %v3030
        %v3032 = vlaneseq
        %v3033 = vshrl.u32 %v3032, 7
        %v3034 = vsub.s32 %v3031, %v3033
        %v3035 = vrot.slane %v3028, %v3034
        %v3037 = vmul.f32 %v3022, %v3035
        %v3038 = vmul.f32 %v3023, %v3035
        %v3039 = vadd.f32 %v3037, 0.0
        %v3040 = vadd.f32 %v3038, 0.0
        %3041 = vset.pattern.permute.xlu0 12
        %3042 = vperm.xlu0 %3041, %v3024
        %v3043 = vpop.permute.xlu0 %3042
        %v3045 = vunpack.c.l.s4 839922192
        %v3046 = vunpack.c.0.s8 %v3045
        %v3047 = vlaneseq
        %v3048 = vshrl.u32 %v3047, 7
        %v3049 = vsub.s32 %v3046, %v3048
        %v3050 = vrot.slane %v3043, %v3049
        %v3052 = vmul.f32 %v3022, %v3050
        %v3053 = vmul.f32 %v3023, %v3050
        %3056 = vrot.lane.b32.xlu0 %v3052, 112
        %v3057 = vpop.permute.xlu0 %3056
        %3058 = vrot.lane.b32.xlu0 %v3053, 112
        %v3059 = vpop.permute.xlu0 %3058
        %v3060 = vrot.slane %v3057, 4
        %v3061 = vrot.slane %v3059, 4
        %v3062 = vsel %vm376, %v3060, %v3061
        %v3063 = vsel %vm378, %v3057, %v3062
        %v3066 = vadd.f32 %v3039, %v3063
        %v3067 = vadd.f32 %v3040, %v3059
        %3068 = vset.pattern.permute.xlu0 19
        %3069 = vperm.xlu0 %3068, %v3024
        %v3070 = vpop.permute.xlu0 %3069
        %v3072 = vunpack.c.l.s4 839922192
        %v3073 = vunpack.c.0.s8 %v3072
        %v3074 = vlaneseq
        %v3075 = vshrl.u32 %v3074, 7
        %v3076 = vsub.s32 %v3073, %v3075
        %v3077 = vrot.slane %v3070, %v3076
        %v3079 = vmul.f32 %v3022, %v3077
        %v3080 = vmul.f32 %v3023, %v3077
        %3083 = vrot.lane.b32.xlu0 %v3079, 96
        %v3084 = vpop.permute.xlu0 %3083
        %3085 = vrot.lane.b32.xlu0 %v3080, 96
        %v3086 = vpop.permute.xlu0 %3085
        %v3087 = vrot.slane %v3084, 4
        %v3088 = vrot.slane %v3086, 4
        %v3089 = vsel %vm376, %v3087, %v3088
        %v3090 = vsel %vm406, %v3084, %v3089
        %v3093 = vadd.f32 %v3066, %v3090
        %v3094 = vadd.f32 %v3067, %v3086
        %v3095 = vld [vmem:[#allocation2 + $0x4] sm:$0xff]
        %v3096 = vld [vmem:[#allocation2 + $0xc] sm:$0xf]
        %3097 = vset.pattern.permute.xlu0 26
        %3098 = vperm.xlu0 %3097, %v3024
        %v3099 = vpop.permute.xlu0 %3098
        %v3101 = vunpack.c.l.s4 839922192
        %v3102 = vunpack.c.0.s8 %v3101
        %v3103 = vlaneseq
        %v3104 = vshrl.u32 %v3103, 7
        %v3105 = vsub.s32 %v3102, %v3104
        %v3106 = vrot.slane %v3099, %v3105
        %v3108 = vmul.f32 %v3095, %v3106
        %v3109 = vmul.f32 %v3096, %v3106
        %3112 = vrot.lane.b32.xlu0 %v3108, 80
        %v3113 = vpop.permute.xlu0 %3112
        %3114 = vrot.lane.b32.xlu0 %v3109, 80
        %v3115 = vpop.permute.xlu0 %3114
        %v3116 = vrot.slane %v3113, 4
        %v3117 = vsel %vm434, %v3116, %v3113
        %v3118 = vsel %vm434, %v3116, %v3115
        %v3121 = vadd.f32 %v3093, %v3117
        %v3122 = vadd.f32 %v3094, %v3118
        %3123 = vset.pattern.permute.xlu0 33
        %3124 = vperm.xlu0 %3123, %v3024
        %v3125 = vpop.permute.xlu0 %3124
        %v3127 = vunpack.c.l.s4 839922192
        %v3128 = vunpack.c.0.s8 %v3127
        %v3129 = vlaneseq
        %v3130 = vshrl.u32 %v3129, 7
        %v3131 = vsub.s32 %v3128, %v3130
        %v3132 = vrot.slane %v3125, %v3131
        %v3134 = vmul.f32 %v3095, %v3132
        %v3135 = vmul.f32 %v3096, %v3132
        %3138 = vrot.lane.b32.xlu0 %v3134, 64
        %v3139 = vpop.permute.xlu0 %3138
        %3140 = vrot.lane.b32.xlu0 %v3135, 64
        %v3141 = vpop.permute.xlu0 %3140
        %v3142 = vrot.slane %v3139, 4
        %v3143 = vsel %vm462, %v3142, %v3139
        %v3144 = vsel %vm462, %v3142, %v3141
        %v3147 = vadd.f32 %v3121, %v3143
        %v3148 = vadd.f32 %v3122, %v3144
        %3149 = vset.pattern.permute.xlu0 40
        %3150 = vperm.xlu0 %3149, %v3024
        %v3151 = vpop.permute.xlu0 %3150
        %v3153 = vunpack.c.l.s4 839922192
        %v3154 = vunpack.c.0.s8 %v3153
        %v3155 = vlaneseq
        %v3156 = vshrl.u32 %v3155, 7
        %v3157 = vsub.s32 %v3154, %v3156
        %v3158 = vrot.slane %v3151, %v3157
        %v3160 = vmul.f32 %v3095, %v3158
        %v3161 = vmul.f32 %v3096, %v3158
        %3164 = vrot.lane.b32.xlu0 %v3160, 48
        %v3165 = vpop.permute.xlu0 %3164
        %3166 = vrot.lane.b32.xlu0 %v3161, 48
        %v3167 = vpop.permute.xlu0 %3166
        %v3168 = vrot.slane %v3165, 4
        %v3169 = vsel %vm489, %v3168, %v3165
        %v3170 = vsel %vm489, %v3168, %v3167
        %v3173 = vadd.f32 %v3147, %v3169
        %v3174 = vadd.f32 %v3148, %v3170
        %3175 = vset.pattern.permute.xlu0 47
        %3176 = vperm.xlu0 %3175, %v3024
        %v3177 = vpop.permute.xlu0 %3176
        %v3179 = vunpack.c.l.s4 839922192
        %v3180 = vunpack.c.0.s8 %v3179
        %v3181 = vlaneseq
        %v3182 = vshrl.u32 %v3181, 7
        %v3183 = vsub.s32 %v3180, %v3182
        %v3184 = vrot.slane %v3177, %v3183
        %v3186 = vmul.f32 %v3095, %v3184
        %v3187 = vmul.f32 %v3096, %v3184
        %3190 = vrot.lane.b32.xlu0 %v3186, 32
        %v3191 = vpop.permute.xlu0 %3190
        %3192 = vrot.lane.b32.xlu0 %v3187, 32
        %v3193 = vpop.permute.xlu0 %3192
        %v3194 = vrot.slane %v3191, 4
        %v3195 = vsel %vm516, %v3194, %v3191
        %v3196 = vsel %vm516, %v3194, %v3193
        %v3199 = vadd.f32 %v3173, %v3195
        %v3200 = vadd.f32 %v3174, %v3196
        %v3201 = vld [vmem:[%s1555] ss:$8 sm:$0x3]
        %v3203 = vlaneseq
        %v3204 = vshrl.u32 %v3203, 7
        %v3205 = vsub.s32 0, %v3204
        %v3206 = vrot.slane %v3201, %v3205
        %v3207 = vlaneseq
        %v3208 = vshrl.u32 %v3207, 7
        %v3209 = vsub.s32 1, %v3208
        %v3210 = vrot.slane %v3201, %v3209
        %v3211 = vcombine.low %v3206, %v3210
        %3212 = vrot.lane.b32.xlu0 %v3211, 82
        %v3213 = vpop.permute.xlu0 %3212
        %v3214 = vrot.slane %v3213, 4
        %v3215 = vsel %vm1570, %v3214, %v3213
        %v3218 = vmul.f32 %v3199, %v3215
        %v3219 = vmul.f32 %v3200, %v3214
        %3222 = vrot.lane.b32.xlu0 %v3218, 123
        %v3223 = vpop.permute.xlu0 %3222
        %3224 = vrot.lane.b32.xlu0 %v3219, 123
        %v3225 = vpop.permute.xlu0 %3224
        %v3226 = vrot.slane %v3223, 4
        %v3227 = vrot.slane %v3225, 4
        %v3228 = vsel %vm376, %v3226, %v3227
        %v3229 = vsel %vm1585, %v3223, %v3228
        %v3232 = vadd.f32 %v3020, %v3229
        %v3233 = vadd.f32 %v3021, %v3225
        %v3234 = vld [vmem:[#allocation2] sm:$0xff]
        %v3235 = vld [vmem:[#allocation2 + $0x8] sm:$0xf]
        %v3236 = vld [vmem:[%s7] sm:$0xf]
        %3238 = vset.pattern.permute.xlu0 6
        %3239 = vperm.xlu0 %3238, %v3236
        %v3240 = vpop.permute.xlu0 %3239
        %v3242 = vunpack.c.l.s4 839922192
        %v3243 = vunpack.c.0.s8 %v3242
        %v3244 = vlaneseq
        %v3245 = vshrl.u32 %v3244, 7
        %v3246 = vsub.s32 %v3243, %v3245
        %v3247 = vrot.slane %v3240, %v3246
        %v3249 = vmul.f32 %v3234, %v3247
        %v3250 = vmul.f32 %v3235, %v3247
        %v3251 = vadd.f32 %v3249, 0.0
        %v3252 = vadd.f32 %v3250, 0.0
        %3253 = vset.pattern.permute.xlu0 13
        %3254 = vperm.xlu0 %3253, %v3236
        %v3255 = vpop.permute.xlu0 %3254
        %v3257 = vunpack.c.l.s4 839922192
        %v3258 = vunpack.c.0.s8 %v3257
        %v3259 = vlaneseq
        %v3260 = vshrl.u32 %v3259, 7
        %v3261 = vsub.s32 %v3258, %v3260
        %v3262 = vrot.slane %v3255, %v3261
        %v3264 = vmul.f32 %v3234, %v3262
        %v3265 = vmul.f32 %v3235, %v3262
        %3268 = vrot.lane.b32.xlu0 %v3264, 112
        %v3269 = vpop.permute.xlu0 %3268
        %3270 = vrot.lane.b32.xlu0 %v3265, 112
        %v3271 = vpop.permute.xlu0 %3270
        %v3272 = vrot.slane %v3269, 4
        %v3273 = vrot.slane %v3271, 4
        %v3274 = vsel %vm376, %v3272, %v3273
        %v3275 = vsel %vm378, %v3269, %v3274
        %v3278 = vadd.f32 %v3251, %v3275
        %v3279 = vadd.f32 %v3252, %v3271
        %3280 = vset.pattern.permute.xlu0 20
        %3281 = vperm.xlu0 %3280, %v3236
        %v3282 = vpop.permute.xlu0 %3281
        %v3284 = vunpack.c.l.s4 839922192
        %v3285 = vunpack.c.0.s8 %v3284
        %v3286 = vlaneseq
        %v3287 = vshrl.u32 %v3286, 7
        %v3288 = vsub.s32 %v3285, %v3287
        %v3289 = vrot.slane %v3282, %v3288
        %v3291 = vmul.f32 %v3234, %v3289
        %v3292 = vmul.f32 %v3235, %v3289
        %3295 = vrot.lane.b32.xlu0 %v3291, 96
        %v3296 = vpop.permute.xlu0 %3295
        %3297 = vrot.lane.b32.xlu0 %v3292, 96
        %v3298 = vpop.permute.xlu0 %3297
        %v3299 = vrot.slane %v3296, 4
        %v3300 = vrot.slane %v3298, 4
        %v3301 = vsel %vm376, %v3299, %v3300
        %v3302 = vsel %vm406, %v3296, %v3301
        %v3305 = vadd.f32 %v3278, %v3302
        %v3306 = vadd.f32 %v3279, %v3298
        %v3307 = vld [vmem:[#allocation2 + $0x4] sm:$0xff]
        %v3308 = vld [vmem:[#allocation2 + $0xc] sm:$0xf]
        %3309 = vset.pattern.permute.xlu0 27
        %3310 = vperm.xlu0 %3309, %v3236
        %v3311 = vpop.permute.xlu0 %3310
        %v3313 = vunpack.c.l.s4 839922192
        %v3314 = vunpack.c.0.s8 %v3313
        %v3315 = vlaneseq
        %v3316 = vshrl.u32 %v3315, 7
        %v3317 = vsub.s32 %v3314, %v3316
        %v3318 = vrot.slane %v3311, %v3317
        %v3320 = vmul.f32 %v3307, %v3318
        %v3321 = vmul.f32 %v3308, %v3318
        %3324 = vrot.lane.b32.xlu0 %v3320, 80
        %v3325 = vpop.permute.xlu0 %3324
        %3326 = vrot.lane.b32.xlu0 %v3321, 80
        %v3327 = vpop.permute.xlu0 %3326
        %v3328 = vrot.slane %v3325, 4
        %v3329 = vsel %vm434, %v3328, %v3325
        %v3330 = vsel %vm434, %v3328, %v3327
        %v3333 = vadd.f32 %v3305, %v3329
        %v3334 = vadd.f32 %v3306, %v3330
        %3335 = vset.pattern.permute.xlu0 34
        %3336 = vperm.xlu0 %3335, %v3236
        %v3337 = vpop.permute.xlu0 %3336
        %v3339 = vunpack.c.l.s4 839922192
        %v3340 = vunpack.c.0.s8 %v3339
        %v3341 = vlaneseq
        %v3342 = vshrl.u32 %v3341, 7
        %v3343 = vsub.s32 %v3340, %v3342
        %v3344 = vrot.slane %v3337, %v3343
        %v3346 = vmul.f32 %v3307, %v3344
        %v3347 = vmul.f32 %v3308, %v3344
        %3350 = vrot.lane.b32.xlu0 %v3346, 64
        %v3351 = vpop.permute.xlu0 %3350
        %3352 = vrot.lane.b32.xlu0 %v3347, 64
        %v3353 = vpop.permute.xlu0 %3352
        %v3354 = vrot.slane %v3351, 4
        %v3355 = vsel %vm462, %v3354, %v3351
        %v3356 = vsel %vm462, %v3354, %v3353
        %v3359 = vadd.f32 %v3333, %v3355
        %v3360 = vadd.f32 %v3334, %v3356
        %3361 = vset.pattern.permute.xlu0 41
        %3362 = vperm.xlu0 %3361, %v3236
        %v3363 = vpop.permute.xlu0 %3362
        %v3365 = vunpack.c.l.s4 839922192
        %v3366 = vunpack.c.0.s8 %v3365
        %v3367 = vlaneseq
        %v3368 = vshrl.u32 %v3367, 7
        %v3369 = vsub.s32 %v3366, %v3368
        %v3370 = vrot.slane %v3363, %v3369
        %v3372 = vmul.f32 %v3307, %v3370
        %v3373 = vmul.f32 %v3308, %v3370
        %3376 = vrot.lane.b32.xlu0 %v3372, 48
        %v3377 = vpop.permute.xlu0 %3376
        %3378 = vrot.lane.b32.xlu0 %v3373, 48
        %v3379 = vpop.permute.xlu0 %3378
        %v3380 = vrot.slane %v3377, 4
        %v3381 = vsel %vm489, %v3380, %v3377
        %v3382 = vsel %vm489, %v3380, %v3379
        %v3385 = vadd.f32 %v3359, %v3381
        %v3386 = vadd.f32 %v3360, %v3382
        %3387 = vset.pattern.permute.xlu0 48
        %3388 = vperm.xlu0 %3387, %v3236
        %v3389 = vpop.permute.xlu0 %3388
        %v3391 = vunpack.c.l.s4 839922192
        %v3392 = vunpack.c.0.s8 %v3391
        %v3393 = vlaneseq
        %v3394 = vshrl.u32 %v3393, 7
        %v3395 = vsub.s32 %v3392, %v3394
        %v3396 = vrot.slane %v3389, %v3395
        %v3398 = vmul.f32 %v3307, %v3396
        %v3399 = vmul.f32 %v3308, %v3396
        %3402 = vrot.lane.b32.xlu0 %v3398, 32
        %v3403 = vpop.permute.xlu0 %3402
        %3404 = vrot.lane.b32.xlu0 %v3399, 32
        %v3405 = vpop.permute.xlu0 %3404
        %v3406 = vrot.slane %v3403, 4
        %v3407 = vsel %vm516, %v3406, %v3403
        %v3408 = vsel %vm516, %v3406, %v3405
        %v3411 = vadd.f32 %v3385, %v3407
        %v3412 = vadd.f32 %v3386, %v3408
        %v3413 = vld [vmem:[%s1770] ss:$8 sm:$0x3]
        %v3415 = vlaneseq
        %v3416 = vshrl.u32 %v3415, 7
        %v3417 = vsub.s32 0, %v3416
        %v3418 = vrot.slane %v3413, %v3417
        %v3419 = vlaneseq
        %v3420 = vshrl.u32 %v3419, 7
        %v3421 = vsub.s32 1, %v3420
        %v3422 = vrot.slane %v3413, %v3421
        %v3423 = vcombine.low %v3418, %v3422
        %3424 = vrot.lane.b32.xlu0 %v3423, 83
        %v3425 = vpop.permute.xlu0 %3424
        %v3426 = vrot.slane %v3425, 4
        %v3427 = vsel %vm1785, %v3426, %v3425
        %v3430 = vmul.f32 %v3411, %v3427
        %v3431 = vmul.f32 %v3412, %v3426
        %3434 = vrot.lane.b32.xlu0 %v3430, 122
        %v3435 = vpop.permute.xlu0 %3434
        %3436 = vrot.lane.b32.xlu0 %v3431, 122
        %v3437 = vpop.permute.xlu0 %3436
        %v3438 = vrot.slane %v3435, 4
        %v3439 = vrot.slane %v3437, 4
        %v3440 = vsel %vm376, %v3438, %v3439
        %v3441 = vsel %vm1800, %v3435, %v3440
        %v3444 = vadd.f32 %v3232, %v3441
        %v3445 = vadd.f32 %v3233, %v3437
        %v3446 = vld [vmem:[%s8] sm:$0xf]
        %3448 = vset.pattern.permute.xlu0 0
        %3449 = vperm.xlu0 %3448, %v3446
        %v3450 = vpop.permute.xlu0 %3449
        %v3452 = vunpack.c.l.s4 839922192
        %v3453 = vunpack.c.0.s8 %v3452
        %v3454 = vlaneseq
        %v3455 = vshrl.u32 %v3454, 7
        %v3456 = vsub.s32 %v3453, %v3455
        %v3457 = vrot.slane %v3450, %v3456
        %v3459 = vadd.f32 %v3444, %v3457
        %v3460 = vadd.f32 %v3445, %v3457
        %v3461 = vld [vmem:[%s330] sm:$0xff]
        %3464 = vrot.lane.b32.xlu0 %v3459, 51
        %v3465 = vpop.permute.xlu0 %3464
        %3466 = vrot.lane.b32.xlu0 %v3460, 51
        %v3467 = vpop.permute.xlu0 %3466
        %v3468 = vrot.slane %v3465, 4
        %v3469 = vrot.slane %v3467, 4
        %v3470 = vsel %vm376, %v3468, %v3469
        %vm3471 = vcmask 416768
        %v3472 = vsel %vm3471, %v3465, %v3470
        %v3474 = vadd.f32 %v3461, %v3472
        %3475 = vst [vmem:[%s325] sm:$0xff] %v3474
        %s3476 = sand.u32 %s225, 1
        %s3477 = scalar_lea.sflag [#allocation4], %s3476
        %s3478 = sand.u32 %s225, 1
        %s3479 = smul.addr %s3478, 8
        %s3480 = scalar_lea.vmem [#allocation3], %s3479
        // Predicated region
        $region57: #{tpu_custom_call.1} parent=55 // pred_check
          %p3481 = pneg %p235
        $region58: #{tpu_custom_call.1} parent=55 // pred_check_branch
          %3483 = sbr.rel (%p3481) target = $region60
        $region59: #{tpu_custom_call.1} parent=55 // pred_region
          %s3485 = ssub.s32 128, 128
          %3486 = vsyncadd %s3477, %s3485
          %s3487 = smul.addr %s23, 2
          %s3488 = smul.addr %s3487, 64
          %s3489 = scalar_lea.hbm %s9, %s3488
          %s3491 = sshll.u32 %s3480, 4
          %s3492 = int_to_ptr.vmem [resolvable:$true] %s3491
          %3494 = dma.vmem_to_hbm [thread:$0]  %s3492, 128, %s3489, %s3477
        $region60: #{tpu_custom_call.1} parent=55 // pred_fallthru
          _
      $region56: #{tpu_custom_call.1} parent=5 // pred_fallthru
        _
      %p3495 = scmp.le.s32.totalorder 2, %s18
      // Predicated region
      $region61: #{tpu_custom_call.1} parent=5 // pred_check
        %p3496 = pneg %p3495
      $region62: #{tpu_custom_call.1} parent=5 // pred_check_branch
        %3498 = sbr.rel (%p3496) target = $region64
      $region63: #{tpu_custom_call.1} parent=5 // pred_region
        %s3499 = ssub.s32 %s18, 2
        // Predicated region
        $region65: #{tpu_custom_call.1} parent=63 // pred_check
          %p3500 = pneg %p241
        $region66: #{tpu_custom_call.1} parent=63 // pred_check_branch
          %3502 = sbr.rel (%p3500) target = $region68
        $region67: #{tpu_custom_call.1} parent=63 // pred_region
          %s3503 = sand.u32 %s226, 1
          %s3504 = scalar_lea.sflag [#allocation4], %s3503
          %s3505 = sand.u32 %s226, 1
          %s3506 = smul.addr %s3505, 8
          %s3507 = scalar_lea.vmem [#allocation3], %s3506
          %3508 = dma.done %s3504, 128
        $region68: #{tpu_custom_call.1} parent=63 // pred_fallthru
          _
      $region64: #{tpu_custom_call.1} parent=5 // pred_fallthru
        _
    $region6: #{tpu_custom_call.1} parent=1 // loop_footer
      %s22 = sadd.s32 1, %s18
    $region7: #{tpu_custom_call.1} parent=1 // loop_footer_branch
      %17 = sbr.rel target = $region3
    $region8: #{tpu_custom_call.1} parent=1 // loop_exit
      _
    %3509 = vsyncpa [#allocation4], 1
    %s3510 = scalar_lea.sflag [#allocation4], 1
    %3511 = vsyncpa %s3510, 1

</llo_original>
